<compile_context>
chip_gen: v7x
topology: tpu7x:2x2x1
jax: 0.10.0
libtpu: 0.0.40
codegen_flags: <defaults>
</compile_context>

<pallas_src>
import numpy as np

import jax
import jax.numpy as jnp
from jax import lax
from jax.experimental import pallas as pl
from jax.experimental.pallas import tpu as pltpu


def _fuse_gate_weights(w, b):
    """[3, H, H] gate-major (r, z, n) -> [H, 3H]; [3, 1, H] bias -> [1, 3H]."""
    H = w.shape[-1]
    w_all = jnp.concatenate([w[0], w[1], w[2]], axis=1)
    b_all = b.reshape(1, 3 * H)
    return w_all, b_all


def recurrent_feature_forward(tokens_TB, lengths_B, emb,
                              wih_f, whh_f, bih_f, bhh_f,
                              wih_b, whh_b, bih_b, bhh_b, *, n_real):
    """Pallas forward: packed bidirectional GRU over a padded token batch -> mean feature [H]."""
    T, B = tokens_TB.shape
    V, H = emb.shape
    TB = T * B
    H3 = 3 * H
    inv_n = 1.0 / float(n_real)
    hp = lax.Precision.HIGHEST

    # Fold embedding + input projection + input bias into one table per direction (exact:
    # the one-hot rows sum to 1, so onehot @ (emb @ W_ih + b_ih) == emb[tok] @ W_ih + b_ih).
    wih_f_all, bih_f_all = _fuse_gate_weights(wih_f, bih_f)
    wih_b_all, bih_b_all = _fuse_gate_weights(wih_b, bih_b)
    ew_f = jnp.dot(emb, wih_f_all, precision=hp) + bih_f_all      # [V, 3H]
    ew_b = jnp.dot(emb, wih_b_all, precision=hp) + bih_b_all      # [V, 3H]
    whh_f_all, bhh_f_all = _fuse_gate_weights(whh_f, bhh_f)       # [H, 3H], [1, 3H]
    whh_b_all, bhh_b_all = _fuse_gate_weights(whh_b, bhh_b)

    tokens_flat = tokens_TB.reshape(TB, 1).astype(jnp.int32)      # row t*B + b == tokens[t, b]
    lengths_B1 = lengths_B.reshape(B, 1).astype(jnp.int32)

    def kernel(len_ref, tok_ref, ewf_ref, ewb_ref,
               whhf_ref, bhhf_ref, whhb_ref, bhhb_ref,
               out_ref, xf_scr, xb_scr):
        # ---- hoisted, loop-invariant work (done once) ----
        lengths = len_ref[...]                                    # [B, 1] int32
        tokens = tok_ref[...]                                     # [TB, 1] int32
        iota_v = lax.broadcasted_iota(jnp.int32, (TB, V), 1)      # [TB, V]
        onehot = (iota_v == tokens).astype(jnp.float32)           # [TB, V]
        # Input projections for ALL timesteps, one big-M MXU matmul per direction.
        xf_scr[...] = jnp.dot(onehot, ewf_ref[...],
                              preferred_element_type=jnp.float32)  # [TB, 3H]
        xb_scr[...] = jnp.dot(onehot, ewb_ref[...],
                              preferred_element_type=jnp.float32)  # [TB, 3H]

        whh_fw = whhf_ref[...]                                    # [H, 3H]
        bhh_fw = bhhf_ref[...]                                    # [1, 3H]
        whh_bw = whhb_ref[...]
        bhh_bw = bhhb_ref[...]

        def gru_step(gi, h, whh, bhh):
            # PyTorch GRUCell: r/z from gi+gh; n uses r * (hidden projection) only.
            gh = jnp.dot(h, whh, preferred_element_type=jnp.float32) + bhh   # [B, 3H]
            r = jax.nn.sigmoid(gi[:, 0:H] + gh[:, 0:H])
            z = jax.nn.sigmoid(gi[:, H:2 * H] + gh[:, H:2 * H])
            n = jnp.tanh(gi[:, 2 * H:3 * H] + r * gh[:, 2 * H:3 * H])
            return (1.0 - z) * n + z * h

        def body(t, carry):
            h_f, h_b = carry
            tb = (T - 1) - t
            gi_f = xf_scr[pl.ds(pl.multiple_of(t * B, B), B), :]   # [B, 3H]
            gi_b = xb_scr[pl.ds(pl.multiple_of(tb * B, B), B), :]  # [B, 3H]
            hf_new = gru_step(gi_f, h_f, whh_fw, bhh_fw)
            hb_new = gru_step(gi_b, h_b, whh_bw, bhh_bw)
            # pack_padded_sequence semantics: only update while inside the valid length.
            m_f = (lengths > t).astype(jnp.float32)                # [B, 1]
            m_b = (lengths > tb).astype(jnp.float32)
            h_f = h_f + m_f * (hf_new - h_f)
            h_b = h_b + m_b * (hb_new - h_b)
            return (h_f, h_b)

        h0 = jnp.zeros((B, H), jnp.float32)
        h_f, h_b = lax.fori_loop(0, T, body, (h0, h0), unroll=True)

        # hidden[0] + hidden[1], then mean over the real examples (padded rows stay 0).
        e_sum = h_f + h_b                                          # [B, H]
        out_ref[...] = jnp.sum(e_sum, axis=0, keepdims=True) * inv_n

    flops = 2 * (2 * TB * V * H3) + T * 2 * (2 * B * H * H3)
    transcendentals = T * 2 * B * H3
    bytes_accessed = (TB * 4 + B * 4 + 2 * V * H3 * 4
                      + 2 * (H * H3 + H3) * 4 + H * 4)

    out = pl.pallas_call(
        kernel,
        out_shape=jax.ShapeDtypeStruct((1, H), jnp.float32),
        in_specs=[pl.BlockSpec(memory_space=pltpu.MemorySpace.VMEM)] * 8,
        out_specs=pl.BlockSpec(memory_space=pltpu.MemorySpace.VMEM),
        scratch_shapes=[pltpu.VMEM((TB, H3), jnp.float32),
                        pltpu.VMEM((TB, H3), jnp.float32)],
        cost_estimate=pl.CostEstimate(
            flops=flops, transcendentals=transcendentals,
            bytes_accessed=bytes_accessed),
    )(lengths_B1, tokens_flat, ew_f, ew_b,
      whh_f_all, bhh_f_all, whh_b_all, bhh_b_all)
    return out[0]


def recurrent_feature_forward_ref(tokens_TB, lengths_B, emb,
                                  wih_f, whh_f, bih_f, bhh_f,
                                  wih_b, whh_b, bih_b, bhh_b, *, n_real):
    """Pure-JAX reference matching the PyTorch semantics (packed bidirectional GRU + mean)."""
    T, B = tokens_TB.shape
    x = emb[tokens_TB]                                             # [T, B, H]
    hp = lax.Precision.HIGHEST

    def cell(x_t, h, wih, whh, bih, bhh):
        gi_r = jnp.dot(x_t, wih[0], precision=hp) + bih[0]
        gi_z = jnp.dot(x_t, wih[1], precision=hp) + bih[1]
        gi_n = jnp.dot(x_t, wih[2], precision=hp) + bih[2]
        gh_r = jnp.dot(h, whh[0], precision=hp) + bhh[0]
        gh_z = jnp.dot(h, whh[1], precision=hp) + bhh[1]
        gh_n = jnp.dot(h, whh[2], precision=hp) + bhh[2]
        r = jax.nn.sigmoid(gi_r + gh_r)
        z = jax.nn.sigmoid(gi_z + gh_z)
        n = jnp.tanh(gi_n + r * gh_n)
        return (1.0 - z) * n + z * h

    h0 = jnp.zeros((B, emb.shape[1]), jnp.float32)

    def make_step(params):
        wih, whh, bih, bhh = params

        def step(h, inp):
            x_t, t = inp
            h_new = cell(x_t, h, wih, whh, bih, bhh)
            m = (lengths_B[:, None] > t).astype(jnp.float32)
            return h + m * (h_new - h), None
        return step

    h_f, _ = lax.scan(make_step((wih_f, whh_f, bih_f, bhh_f)), h0,
                      (x, jnp.arange(T)))
    h_b, _ = lax.scan(make_step((wih_b, whh_b, bih_b, bhh_b)), h0,
                      (x[::-1], jnp.arange(T)[::-1]))
    e = h_f + h_b
    return jnp.sum(e, axis=0) / n_real


if __name__ == "__main__":
    H = 32
    base_lexicon = ["a", "b", "c", "d", "e", "f"]
    special = ["STARTING", "ENDING", "STARTOFOUTPUT", "ENDOFINPUT"]
    lexicon = base_lexicon + special
    sym2idx = {s: i for i, s in enumerate(lexicon)}
    START, END = sym2idx["STARTING"], sym2idx["ENDING"]
    SOO, EOI = sym2idx["STARTOFOUTPUT"], sym2idx["ENDOFINPUT"]

    examples = [
        ((["a", "b", "c"],), ["c", "b", "a"]),
        ((["b", "b"],), ["b"]),
        ((["a", "c", "e", "f"],), ["f", "e"]),
        ((["d"],), ["d", "d", "d"]),
        ((["e", "f", "a", "b", "c"],), ["a"]),
    ]

    # Host-side examplesEncoding / packExamples (sort decreasing, tokenize, pad).
    examples = sorted(examples,
                      key=lambda xs_y: sum(len(z) + 1 for z in xs_y[0]) + len(xs_y[1]),
                      reverse=True)
    es, sizes = [], []
    for xs, y in examples:
        e = [START]
        for x in xs:
            e += [sym2idx[s] for s in x]
            e.append(EOI)
        e.append(SOO)
        e += [sym2idx[s] for s in y]
        e.append(END)
        es.append(e)
        sizes.append(len(e))
    T = max(sizes)
    es = [e + [END] * (T - len(e)) for e in es]

    n_real = len(es)
    B = 8          # pad batch to a sublane multiple; padded rows have length 0 -> hidden stays 0
    V = 16         # pad lexicon (10 symbols) to a multiple of 8
    tokens = np.full((B, T), END, dtype=np.int32)
    tokens[:n_real] = np.array(es, dtype=np.int32)
    lengths = np.zeros((B,), dtype=np.int32)
    lengths[:n_real] = np.array(sizes, dtype=np.int32)

    tokens_TB = jnp.asarray(tokens.T)                # [T, B]
    lengths_B = jnp.asarray(lengths)                 # [B]

    # Deterministic parameters: embedding + per-direction GRU weights/biases (gate-major r,z,n).
    key = jax.random.PRNGKey(0)
    ks = jax.random.split(key, 9)
    s = 1.0 / np.sqrt(H)
    emb = jax.random.normal(ks[0], (V, H), jnp.float32) * 0.5
    wih_f = jax.random.uniform(ks[1], (3, H, H), jnp.float32, -s, s)
    whh_f = jax.random.uniform(ks[2], (3, H, H), jnp.float32, -s, s)
    bih_f = jax.random.uniform(ks[3], (3, 1, H), jnp.float32, -s, s)
    bhh_f = jax.random.uniform(ks[4], (3, 1, H), jnp.float32, -s, s)
    wih_b = jax.random.uniform(ks[5], (3, H, H), jnp.float32, -s, s)
    whh_b = jax.random.uniform(ks[6], (3, H, H), jnp.float32, -s, s)
    bih_b = jax.random.uniform(ks[7], (3, 1, H), jnp.float32, -s, s)
    bhh_b = jax.random.uniform(ks[8], (3, 1, H), jnp.float32, -s, s)

    out = recurrent_feature_forward(tokens_TB, lengths_B, emb,
                                    wih_f, whh_f, bih_f, bhh_f,
                                    wih_b, whh_b, bih_b, bhh_b,
                                    n_real=n_real)
    jax.block_until_ready(out)

    ref = recurrent_feature_forward_ref(tokens_TB, lengths_B, emb,
                                        wih_f, whh_f, bih_f, bhh_f,
                                        wih_b, whh_b, bih_b, bhh_b,
                                        n_real=n_real)
    assert out.shape == (H,), out.shape
    # In-kernel dots run at default MXU precision (bf16 passes) vs. HIGHEST in the reference;
    # the small absolute tolerance accounts for that over the T-step recurrence.
    assert jnp.allclose(out, ref, atol=2e-2, rtol=0.0), (out, ref)
    print("KERNEL_OK")
</pallas_src>

<mosaic_0001>
module attributes {stable_mosaic.version = 11 : i64} {
  func.func @kernel(%arg0: memref<8x1xi32, #tpu.memory_space<vmem>>, %arg1: memref<80x1xi32, #tpu.memory_space<vmem>>, %arg2: memref<16x96xf32, #tpu.memory_space<vmem>>, %arg3: memref<16x96xf32, #tpu.memory_space<vmem>>, %arg4: memref<32x96xf32, #tpu.memory_space<vmem>>, %arg5: memref<1x96xf32, #tpu.memory_space<vmem>>, %arg6: memref<32x96xf32, #tpu.memory_space<vmem>>, %arg7: memref<1x96xf32, #tpu.memory_space<vmem>>, %arg8: memref<1x32xf32, #tpu.memory_space<vmem>>, %arg9: memref<80x96xf32, #tpu.memory_space<vmem>>, %arg10: memref<80x96xf32, #tpu.memory_space<vmem>>) attributes {dimension_semantics = [], scalar_prefetch = 0 : i64, scratch_operands = 2 : i64, tpu.core_type = #tpu.core_type<tc>} {
    %c0 = arith.constant 0 : index
    %c0_0 = arith.constant 0 : index
    %0 = vector.load %arg0[%c0, %c0_0] : memref<8x1xi32, #tpu.memory_space<vmem>>, vector<8x1xi32>
    %c0_1 = arith.constant 0 : index
    %c0_2 = arith.constant 0 : index
    %1 = vector.load %arg1[%c0_1, %c0_2] : memref<80x1xi32, #tpu.memory_space<vmem>>, vector<80x1xi32>
    %2 = tpu.iota {dimensions = array<i32: 1>} : vector<80x16xi32>
    %3 = vector.broadcast %1 : vector<80x1xi32> to vector<80x16xi32>
    %4 = arith.cmpi eq, %2, %3 : vector<80x16xi32>
    %5 = arith.extui %4 : vector<80x16xi1> to vector<80x16xi32>
    %6 = arith.sitofp %5 : vector<80x16xi32> to vector<80x16xf32>
    %c0_3 = arith.constant 0 : index
    %c0_4 = arith.constant 0 : index
    %7 = vector.load %arg2[%c0_3, %c0_4] : memref<16x96xf32, #tpu.memory_space<vmem>>, vector<16x96xf32>
    %cst = arith.constant dense<0.000000e+00> : vector<80x96xf32>
    %8 = tpu.matmul %6, %7, %cst {dimension_numbers = #tpu.dot_dimension_numbers<[1], [0], [0], [1], [0, 0, 1, 1], [], []>} : vector<80x16xf32>, vector<16x96xf32>, vector<80x96xf32> -> vector<80x96xf32>
    %c0_5 = arith.constant 0 : index
    %c0_6 = arith.constant 0 : index
    %9 = vector.load %arg9[%c0_5, %c0_6] : memref<80x96xf32, #tpu.memory_space<vmem>>, vector<80x96xf32>
    tpu.vector_store %arg9[%c0_5, %c0_6], %8 {strides = array<i32>} : memref<80x96xf32, #tpu.memory_space<vmem>>, vector<80x96xf32>,
    %c0_7 = arith.constant 0 : index
    %c0_8 = arith.constant 0 : index
    %10 = vector.load %arg3[%c0_7, %c0_8] : memref<16x96xf32, #tpu.memory_space<vmem>>, vector<16x96xf32>
    %cst_9 = arith.constant dense<0.000000e+00> : vector<80x96xf32>
    %11 = tpu.matmul %6, %10, %cst_9 {dimension_numbers = #tpu.dot_dimension_numbers<[1], [0], [0], [1], [0, 0, 1, 1], [], []>} : vector<80x16xf32>, vector<16x96xf32>, vector<80x96xf32> -> vector<80x96xf32>
    %c0_10 = arith.constant 0 : index
    %c0_11 = arith.constant 0 : index
    %12 = vector.load %arg10[%c0_10, %c0_11] : memref<80x96xf32, #tpu.memory_space<vmem>>, vector<80x96xf32>
    tpu.vector_store %arg10[%c0_10, %c0_11], %11 {strides = array<i32>} : memref<80x96xf32, #tpu.memory_space<vmem>>, vector<80x96xf32>,
    %c0_12 = arith.constant 0 : index
    %c0_13 = arith.constant 0 : index
    %13 = vector.load %arg4[%c0_12, %c0_13] : memref<32x96xf32, #tpu.memory_space<vmem>>, vector<32x96xf32>
    %c0_14 = arith.constant 0 : index
    %c0_15 = arith.constant 0 : index
    %14 = vector.load %arg5[%c0_14, %c0_15] : memref<1x96xf32, #tpu.memory_space<vmem>>, vector<1x96xf32>
    %c0_16 = arith.constant 0 : index
    %c0_17 = arith.constant 0 : index
    %15 = vector.load %arg6[%c0_16, %c0_17] : memref<32x96xf32, #tpu.memory_space<vmem>>, vector<32x96xf32>
    %c0_18 = arith.constant 0 : index
    %c0_19 = arith.constant 0 : index
    %16 = vector.load %arg7[%c0_18, %c0_19] : memref<1x96xf32, #tpu.memory_space<vmem>>, vector<1x96xf32>
    %cst_20 = arith.constant 0.000000e+00 : f32
    %17 = vector.broadcast %cst_20 : f32 to vector<8x32xf32>
    %c0_i32 = arith.constant 0 : i32
    %c9_i32 = arith.constant 9 : i32
    %18 = arith.subi %c9_i32, %c0_i32 : i32
    %c8_i32 = arith.constant 8 : i32
    %19 = arith.muli %c0_i32, %c8_i32 : i32
    %20 = tpu.assume_multiple %19, 8 : i32
    %21 = arith.index_cast %20 : i32 to index
    %c0_21 = arith.constant 0 : index
    %22 = vector.load %arg9[%21, %c0_21] : memref<80x96xf32, #tpu.memory_space<vmem>>, vector<8x96xf32>
    %c8_i32_22 = arith.constant 8 : i32
    %23 = arith.muli %18, %c8_i32_22 : i32
    %24 = tpu.assume_multiple %23, 8 : i32
    %25 = arith.index_cast %24 : i32 to index
    %c0_23 = arith.constant 0 : index
    %26 = vector.load %arg10[%25, %c0_23] : memref<80x96xf32, #tpu.memory_space<vmem>>, vector<8x96xf32>
    %cst_24 = arith.constant dense<0.000000e+00> : vector<8x96xf32>
    %27 = tpu.matmul %17, %13, %cst_24 {dimension_numbers = #tpu.dot_dimension_numbers<[1], [0], [0], [1], [0, 0, 1, 1], [], []>} : vector<8x32xf32>, vector<32x96xf32>, vector<8x96xf32> -> vector<8x96xf32>
    %28 = vector.broadcast %14 : vector<1x96xf32> to vector<8x96xf32>
    %29 = arith.addf %27, %28 : vector<8x96xf32>
    %30 = vector.extract_strided_slice %22 {offsets = [0, 0], sizes = [8, 32], strides = [1, 1]} : vector<8x96xf32> to vector<8x32xf32>
    %31 = vector.extract_strided_slice %29 {offsets = [0, 0], sizes = [8, 32], strides = [1, 1]} : vector<8x96xf32> to vector<8x32xf32>
    %32 = arith.addf %30, %31 : vector<8x32xf32>
    %33 = arith.negf %32 : vector<8x32xf32>
    %34 = math.exp %33 : vector<8x32xf32>
    %cst_25 = arith.constant 1.000000e+00 : f32
    %35 = vector.broadcast %cst_25 : f32 to vector<8x32xf32>
    %36 = arith.addf %35, %34 : vector<8x32xf32>
    %37 = arith.divf %35, %36 : vector<8x32xf32>
    %38 = vector.extract_strided_slice %22 {offsets = [0, 32], sizes = [8, 32], strides = [1, 1]} : vector<8x96xf32> to vector<8x32xf32>
    %39 = vector.extract_strided_slice %29 {offsets = [0, 32], sizes = [8, 32], strides = [1, 1]} : vector<8x96xf32> to vector<8x32xf32>
    %40 = arith.addf %38, %39 : vector<8x32xf32>
    %41 = arith.negf %40 : vector<8x32xf32>
    %42 = math.exp %41 : vector<8x32xf32>
    %cst_26 = arith.constant 1.000000e+00 : f32
    %43 = vector.broadcast %cst_26 : f32 to vector<8x32xf32>
    %44 = arith.addf %43, %42 : vector<8x32xf32>
    %45 = arith.divf %43, %44 : vector<8x32xf32>
    %46 = vector.extract_strided_slice %22 {offsets = [0, 64], sizes = [8, 32], strides = [1, 1]} : vector<8x96xf32> to vector<8x32xf32>
    %47 = vector.extract_strided_slice %29 {offsets = [0, 64], sizes = [8, 32], strides = [1, 1]} : vector<8x96xf32> to vector<8x32xf32>
    %48 = arith.mulf %37, %47 : vector<8x32xf32>
    %49 = arith.addf %46, %48 : vector<8x32xf32>
    %50 = math.tanh %49 : vector<8x32xf32>
    %cst_27 = arith.constant 1.000000e+00 : f32
    %51 = vector.broadcast %cst_27 : f32 to vector<8x32xf32>
    %52 = arith.subf %51, %45 : vector<8x32xf32>
    %53 = arith.mulf %52, %50 : vector<8x32xf32>
    %54 = arith.mulf %45, %17 : vector<8x32xf32>
    %55 = arith.addf %53, %54 : vector<8x32xf32>
    %cst_28 = arith.constant dense<0.000000e+00> : vector<8x96xf32>
    %56 = tpu.matmul %17, %15, %cst_28 {dimension_numbers = #tpu.dot_dimension_numbers<[1], [0], [0], [1], [0, 0, 1, 1], [], []>} : vector<8x32xf32>, vector<32x96xf32>, vector<8x96xf32> -> vector<8x96xf32>
    %57 = vector.broadcast %16 : vector<1x96xf32> to vector<8x96xf32>
    %58 = arith.addf %56, %57 : vector<8x96xf32>
    %59 = vector.extract_strided_slice %26 {offsets = [0, 0], sizes = [8, 32], strides = [1, 1]} : vector<8x96xf32> to vector<8x32xf32>
    %60 = vector.extract_strided_slice %58 {offsets = [0, 0], sizes = [8, 32], strides = [1, 1]} : vector<8x96xf32> to vector<8x32xf32>
    %61 = arith.addf %59, %60 : vector<8x32xf32>
    %62 = arith.negf %61 : vector<8x32xf32>
    %63 = math.exp %62 : vector<8x32xf32>
    %cst_29 = arith.constant 1.000000e+00 : f32
    %64 = vector.broadcast %cst_29 : f32 to vector<8x32xf32>
    %65 = arith.addf %64, %63 : vector<8x32xf32>
    %66 = arith.divf %64, %65 : vector<8x32xf32>
    %67 = vector.extract_strided_slice %26 {offsets = [0, 32], sizes = [8, 32], strides = [1, 1]} : vector<8x96xf32> to vector<8x32xf32>
    %68 = vector.extract_strided_slice %58 {offsets = [0, 32], sizes = [8, 32], strides = [1, 1]} : vector<8x96xf32> to vector<8x32xf32>
    %69 = arith.addf %67, %68 : vector<8x32xf32>
    %70 = arith.negf %69 : vector<8x32xf32>
    %71 = math.exp %70 : vector<8x32xf32>
    %cst_30 = arith.constant 1.000000e+00 : f32
    %72 = vector.broadcast %cst_30 : f32 to vector<8x32xf32>
    %73 = arith.addf %72, %71 : vector<8x32xf32>
    %74 = arith.divf %72, %73 : vector<8x32xf32>
    %75 = vector.extract_strided_slice %26 {offsets = [0, 64], sizes = [8, 32], strides = [1, 1]} : vector<8x96xf32> to vector<8x32xf32>
    %76 = vector.extract_strided_slice %58 {offsets = [0, 64], sizes = [8, 32], strides = [1, 1]} : vector<8x96xf32> to vector<8x32xf32>
    %77 = arith.mulf %66, %76 : vector<8x32xf32>
    %78 = arith.addf %75, %77 : vector<8x32xf32>
    %79 = math.tanh %78 : vector<8x32xf32>
    %cst_31 = arith.constant 1.000000e+00 : f32
    %80 = vector.broadcast %cst_31 : f32 to vector<8x32xf32>
    %81 = arith.subf %80, %74 : vector<8x32xf32>
    %82 = arith.mulf %81, %79 : vector<8x32xf32>
    %83 = arith.mulf %74, %17 : vector<8x32xf32>
    %84 = arith.addf %82, %83 : vector<8x32xf32>
    %85 = vector.broadcast %c0_i32 : i32 to vector<8x1xi32>
    %86 = arith.cmpi sgt, %0, %85 : vector<8x1xi32>
    %87 = arith.extui %86 : vector<8x1xi1> to vector<8x1xi32>
    %88 = arith.sitofp %87 : vector<8x1xi32> to vector<8x1xf32>
    %89 = vector.broadcast %18 : i32 to vector<8x1xi32>
    %90 = arith.cmpi sgt, %0, %89 : vector<8x1xi32>
    %91 = arith.extui %90 : vector<8x1xi1> to vector<8x1xi32>
    %92 = arith.sitofp %91 : vector<8x1xi32> to vector<8x1xf32>
    %93 = arith.subf %55, %17 : vector<8x32xf32>
    %94 = vector.broadcast %88 : vector<8x1xf32> to vector<8x32xf32>
    %95 = arith.mulf %94, %93 : vector<8x32xf32>
    %96 = arith.addf %17, %95 : vector<8x32xf32>
    %97 = arith.subf %84, %17 : vector<8x32xf32>
    %98 = vector.broadcast %92 : vector<8x1xf32> to vector<8x32xf32>
    %99 = arith.mulf %98, %97 : vector<8x32xf32>
    %100 = arith.addf %17, %99 : vector<8x32xf32>
    %c1_i32 = arith.constant 1 : i32
    %c9_i32_32 = arith.constant 9 : i32
    %101 = arith.subi %c9_i32_32, %c1_i32 : i32
    %c8_i32_33 = arith.constant 8 : i32
    %102 = arith.muli %c1_i32, %c8_i32_33 : i32
    %103 = tpu.assume_multiple %102, 8 : i32
    %104 = arith.index_cast %103 : i32 to index
    %c0_34 = arith.constant 0 : index
    %105 = vector.load %arg9[%104, %c0_34] : memref<80x96xf32, #tpu.memory_space<vmem>>, vector<8x96xf32>
    %c8_i32_35 = arith.constant 8 : i32
    %106 = arith.muli %101, %c8_i32_35 : i32
    %107 = tpu.assume_multiple %106, 8 : i32
    %108 = arith.index_cast %107 : i32 to index
    %c0_36 = arith.constant 0 : index
    %109 = vector.load %arg10[%108, %c0_36] : memref<80x96xf32, #tpu.memory_space<vmem>>, vector<8x96xf32>
    %cst_37 = arith.constant dense<0.000000e+00> : vector<8x96xf32>
    %110 = tpu.matmul %96, %13, %cst_37 {dimension_numbers = #tpu.dot_dimension_numbers<[1], [0], [0], [1], [0, 0, 1, 1], [], []>} : vector<8x32xf32>, vector<32x96xf32>, vector<8x96xf32> -> vector<8x96xf32>
    %111 = vector.broadcast %14 : vector<1x96xf32> to vector<8x96xf32>
    %112 = arith.addf %110, %111 : vector<8x96xf32>
    %113 = vector.extract_strided_slice %105 {offsets = [0, 0], sizes = [8, 32], strides = [1, 1]} : vector<8x96xf32> to vector<8x32xf32>
    %114 = vector.extract_strided_slice %112 {offsets = [0, 0], sizes = [8, 32], strides = [1, 1]} : vector<8x96xf32> to vector<8x32xf32>
    %115 = arith.addf %113, %114 : vector<8x32xf32>
    %116 = arith.negf %115 : vector<8x32xf32>
    %117 = math.exp %116 : vector<8x32xf32>
    %cst_38 = arith.constant 1.000000e+00 : f32
    %118 = vector.broadcast %cst_38 : f32 to vector<8x32xf32>
    %119 = arith.addf %118, %117 : vector<8x32xf32>
    %120 = arith.divf %118, %119 : vector<8x32xf32>
    %121 = vector.extract_strided_slice %105 {offsets = [0, 32], sizes = [8, 32], strides = [1, 1]} : vector<8x96xf32> to vector<8x32xf32>
    %122 = vector.extract_strided_slice %112 {offsets = [0, 32], sizes = [8, 32], strides = [1, 1]} : vector<8x96xf32> to vector<8x32xf32>
    %123 = arith.addf %121, %122 : vector<8x32xf32>
    %124 = arith.negf %123 : vector<8x32xf32>
    %125 = math.exp %124 : vector<8x32xf32>
    %cst_39 = arith.constant 1.000000e+00 : f32
    %126 = vector.broadcast %cst_39 : f32 to vector<8x32xf32>
    %127 = arith.addf %126, %125 : vector<8x32xf32>
    %128 = arith.divf %126, %127 : vector<8x32xf32>
    %129 = vector.extract_strided_slice %105 {offsets = [0, 64], sizes = [8, 32], strides = [1, 1]} : vector<8x96xf32> to vector<8x32xf32>
    %130 = vector.extract_strided_slice %112 {offsets = [0, 64], sizes = [8, 32], strides = [1, 1]} : vector<8x96xf32> to vector<8x32xf32>
    %131 = arith.mulf %120, %130 : vector<8x32xf32>
    %132 = arith.addf %129, %131 : vector<8x32xf32>
    %133 = math.tanh %132 : vector<8x32xf32>
    %cst_40 = arith.constant 1.000000e+00 : f32
    %134 = vector.broadcast %cst_40 : f32 to vector<8x32xf32>
    %135 = arith.subf %134, %128 : vector<8x32xf32>
    %136 = arith.mulf %135, %133 : vector<8x32xf32>
    %137 = arith.mulf %128, %96 : vector<8x32xf32>
    %138 = arith.addf %136, %137 : vector<8x32xf32>
    %cst_41 = arith.constant dense<0.000000e+00> : vector<8x96xf32>
    %139 = tpu.matmul %100, %15, %cst_41 {dimension_numbers = #tpu.dot_dimension_numbers<[1], [0], [0], [1], [0, 0, 1, 1], [], []>} : vector<8x32xf32>, vector<32x96xf32>, vector<8x96xf32> -> vector<8x96xf32>
    %140 = vector.broadcast %16 : vector<1x96xf32> to vector<8x96xf32>
    %141 = arith.addf %139, %140 : vector<8x96xf32>
    %142 = vector.extract_strided_slice %109 {offsets = [0, 0], sizes = [8, 32], strides = [1, 1]} : vector<8x96xf32> to vector<8x32xf32>
    %143 = vector.extract_strided_slice %141 {offsets = [0, 0], sizes = [8, 32], strides = [1, 1]} : vector<8x96xf32> to vector<8x32xf32>
    %144 = arith.addf %142, %143 : vector<8x32xf32>
    %145 = arith.negf %144 : vector<8x32xf32>
    %146 = math.exp %145 : vector<8x32xf32>
    %cst_42 = arith.constant 1.000000e+00 : f32
    %147 = vector.broadcast %cst_42 : f32 to vector<8x32xf32>
    %148 = arith.addf %147, %146 : vector<8x32xf32>
    %149 = arith.divf %147, %148 : vector<8x32xf32>
    %150 = vector.extract_strided_slice %109 {offsets = [0, 32], sizes = [8, 32], strides = [1, 1]} : vector<8x96xf32> to vector<8x32xf32>
    %151 = vector.extract_strided_slice %141 {offsets = [0, 32], sizes = [8, 32], strides = [1, 1]} : vector<8x96xf32> to vector<8x32xf32>
    %152 = arith.addf %150, %151 : vector<8x32xf32>
    %153 = arith.negf %152 : vector<8x32xf32>
    %154 = math.exp %153 : vector<8x32xf32>
    %cst_43 = arith.constant 1.000000e+00 : f32
    %155 = vector.broadcast %cst_43 : f32 to vector<8x32xf32>
    %156 = arith.addf %155, %154 : vector<8x32xf32>
    %157 = arith.divf %155, %156 : vector<8x32xf32>
    %158 = vector.extract_strided_slice %109 {offsets = [0, 64], sizes = [8, 32], strides = [1, 1]} : vector<8x96xf32> to vector<8x32xf32>
    %159 = vector.extract_strided_slice %141 {offsets = [0, 64], sizes = [8, 32], strides = [1, 1]} : vector<8x96xf32> to vector<8x32xf32>
    %160 = arith.mulf %149, %159 : vector<8x32xf32>
    %161 = arith.addf %158, %160 : vector<8x32xf32>
    %162 = math.tanh %161 : vector<8x32xf32>
    %cst_44 = arith.constant 1.000000e+00 : f32
    %163 = vector.broadcast %cst_44 : f32 to vector<8x32xf32>
    %164 = arith.subf %163, %157 : vector<8x32xf32>
    %165 = arith.mulf %164, %162 : vector<8x32xf32>
    %166 = arith.mulf %157, %100 : vector<8x32xf32>
    %167 = arith.addf %165, %166 : vector<8x32xf32>
    %168 = vector.broadcast %c1_i32 : i32 to vector<8x1xi32>
    %169 = arith.cmpi sgt, %0, %168 : vector<8x1xi32>
    %170 = arith.extui %169 : vector<8x1xi1> to vector<8x1xi32>
    %171 = arith.sitofp %170 : vector<8x1xi32> to vector<8x1xf32>
    %172 = vector.broadcast %101 : i32 to vector<8x1xi32>
    %173 = arith.cmpi sgt, %0, %172 : vector<8x1xi32>
    %174 = arith.extui %173 : vector<8x1xi1> to vector<8x1xi32>
    %175 = arith.sitofp %174 : vector<8x1xi32> to vector<8x1xf32>
    %176 = arith.subf %138, %96 : vector<8x32xf32>
    %177 = vector.broadcast %171 : vector<8x1xf32> to vector<8x32xf32>
    %178 = arith.mulf %177, %176 : vector<8x32xf32>
    %179 = arith.addf %96, %178 : vector<8x32xf32>
    %180 = arith.subf %167, %100 : vector<8x32xf32>
    %181 = vector.broadcast %175 : vector<8x1xf32> to vector<8x32xf32>
    %182 = arith.mulf %181, %180 : vector<8x32xf32>
    %183 = arith.addf %100, %182 : vector<8x32xf32>
    %c2_i32 = arith.constant 2 : i32
    %c9_i32_45 = arith.constant 9 : i32
    %184 = arith.subi %c9_i32_45, %c2_i32 : i32
    %c8_i32_46 = arith.constant 8 : i32
    %185 = arith.muli %c2_i32, %c8_i32_46 : i32
    %186 = tpu.assume_multiple %185, 8 : i32
    %187 = arith.index_cast %186 : i32 to index
    %c0_47 = arith.constant 0 : index
    %188 = vector.load %arg9[%187, %c0_47] : memref<80x96xf32, #tpu.memory_space<vmem>>, vector<8x96xf32>
    %c8_i32_48 = arith.constant 8 : i32
    %189 = arith.muli %184, %c8_i32_48 : i32
    %190 = tpu.assume_multiple %189, 8 : i32
    %191 = arith.index_cast %190 : i32 to index
    %c0_49 = arith.constant 0 : index
    %192 = vector.load %arg10[%191, %c0_49] : memref<80x96xf32, #tpu.memory_space<vmem>>, vector<8x96xf32>
    %cst_50 = arith.constant dense<0.000000e+00> : vector<8x96xf32>
    %193 = tpu.matmul %179, %13, %cst_50 {dimension_numbers = #tpu.dot_dimension_numbers<[1], [0], [0], [1], [0, 0, 1, 1], [], []>} : vector<8x32xf32>, vector<32x96xf32>, vector<8x96xf32> -> vector<8x96xf32>
    %194 = vector.broadcast %14 : vector<1x96xf32> to vector<8x96xf32>
    %195 = arith.addf %193, %194 : vector<8x96xf32>
    %196 = vector.extract_strided_slice %188 {offsets = [0, 0], sizes = [8, 32], strides = [1, 1]} : vector<8x96xf32> to vector<8x32xf32>
    %197 = vector.extract_strided_slice %195 {offsets = [0, 0], sizes = [8, 32], strides = [1, 1]} : vector<8x96xf32> to vector<8x32xf32>
    %198 = arith.addf %196, %197 : vector<8x32xf32>
    %199 = arith.negf %198 : vector<8x32xf32>
    %200 = math.exp %199 : vector<8x32xf32>
    %cst_51 = arith.constant 1.000000e+00 : f32
    %201 = vector.broadcast %cst_51 : f32 to vector<8x32xf32>
    %202 = arith.addf %201, %200 : vector<8x32xf32>
    %203 = arith.divf %201, %202 : vector<8x32xf32>
    %204 = vector.extract_strided_slice %188 {offsets = [0, 32], sizes = [8, 32], strides = [1, 1]} : vector<8x96xf32> to vector<8x32xf32>
    %205 = vector.extract_strided_slice %195 {offsets = [0, 32], sizes = [8, 32], strides = [1, 1]} : vector<8x96xf32> to vector<8x32xf32>
    %206 = arith.addf %204, %205 : vector<8x32xf32>
    %207 = arith.negf %206 : vector<8x32xf32>
    %208 = math.exp %207 : vector<8x32xf32>
    %cst_52 = arith.constant 1.000000e+00 : f32
    %209 = vector.broadcast %cst_52 : f32 to vector<8x32xf32>
    %210 = arith.addf %209, %208 : vector<8x32xf32>
    %211 = arith.divf %209, %210 : vector<8x32xf32>
    %212 = vector.extract_strided_slice %188 {offsets = [0, 64], sizes = [8, 32], strides = [1, 1]} : vector<8x96xf32> to vector<8x32xf32>
    %213 = vector.extract_strided_slice %195 {offsets = [0, 64], sizes = [8, 32], strides = [1, 1]} : vector<8x96xf32> to vector<8x32xf32>
    %214 = arith.mulf %203, %213 : vector<8x32xf32>
    %215 = arith.addf %212, %214 : vector<8x32xf32>
    %216 = math.tanh %215 : vector<8x32xf32>
    %cst_53 = arith.constant 1.000000e+00 : f32
    %217 = vector.broadcast %cst_53 : f32 to vector<8x32xf32>
    %218 = arith.subf %217, %211 : vector<8x32xf32>
    %219 = arith.mulf %218, %216 : vector<8x32xf32>
    %220 = arith.mulf %211, %179 : vector<8x32xf32>
    %221 = arith.addf %219, %220 : vector<8x32xf32>
    %cst_54 = arith.constant dense<0.000000e+00> : vector<8x96xf32>
    %222 = tpu.matmul %183, %15, %cst_54 {dimension_numbers = #tpu.dot_dimension_numbers<[1], [0], [0], [1], [0, 0, 1, 1], [], []>} : vector<8x32xf32>, vector<32x96xf32>, vector<8x96xf32> -> vector<8x96xf32>
    %223 = vector.broadcast %16 : vector<1x96xf32> to vector<8x96xf32>
    %224 = arith.addf %222, %223 : vector<8x96xf32>
    %225 = vector.extract_strided_slice %192 {offsets = [0, 0], sizes = [8, 32], strides = [1, 1]} : vector<8x96xf32> to vector<8x32xf32>
    %226 = vector.extract_strided_slice %224 {offsets = [0, 0], sizes = [8, 32], strides = [1, 1]} : vector<8x96xf32> to vector<8x32xf32>
    %227 = arith.addf %225, %226 : vector<8x32xf32>
    %228 = arith.negf %227 : vector<8x32xf32>
    %229 = math.exp %228 : vector<8x32xf32>
    %cst_55 = arith.constant 1.000000e+00 : f32
    %230 = vector.broadcast %cst_55 : f32 to vector<8x32xf32>
    %231 = arith.addf %230, %229 : vector<8x32xf32>
    %232 = arith.divf %230, %231 : vector<8x32xf32>
    %233 = vector.extract_strided_slice %192 {offsets = [0, 32], sizes = [8, 32], strides = [1, 1]} : vector<8x96xf32> to vector<8x32xf32>
    %234 = vector.extract_strided_slice %224 {offsets = [0, 32], sizes = [8, 32], strides = [1, 1]} : vector<8x96xf32> to vector<8x32xf32>
    %235 = arith.addf %233, %234 : vector<8x32xf32>
    %236 = arith.negf %235 : vector<8x32xf32>
    %237 = math.exp %236 : vector<8x32xf32>
    %cst_56 = arith.constant 1.000000e+00 : f32
    %238 = vector.broadcast %cst_56 : f32 to vector<8x32xf32>
    %239 = arith.addf %238, %237 : vector<8x32xf32>
    %240 = arith.divf %238, %239 : vector<8x32xf32>
    %241 = vector.extract_strided_slice %192 {offsets = [0, 64], sizes = [8, 32], strides = [1, 1]} : vector<8x96xf32> to vector<8x32xf32>
    %242 = vector.extract_strided_slice %224 {offsets = [0, 64], sizes = [8, 32], strides = [1, 1]} : vector<8x96xf32> to vector<8x32xf32>
    %243 = arith.mulf %232, %242 : vector<8x32xf32>
    %244 = arith.addf %241, %243 : vector<8x32xf32>
    %245 = math.tanh %244 : vector<8x32xf32>
    %cst_57 = arith.constant 1.000000e+00 : f32
    %246 = vector.broadcast %cst_57 : f32 to vector<8x32xf32>
    %247 = arith.subf %246, %240 : vector<8x32xf32>
    %248 = arith.mulf %247, %245 : vector<8x32xf32>
    %249 = arith.mulf %240, %183 : vector<8x32xf32>
    %250 = arith.addf %248, %249 : vector<8x32xf32>
    %251 = vector.broadcast %c2_i32 : i32 to vector<8x1xi32>
    %252 = arith.cmpi sgt, %0, %251 : vector<8x1xi32>
    %253 = arith.extui %252 : vector<8x1xi1> to vector<8x1xi32>
    %254 = arith.sitofp %253 : vector<8x1xi32> to vector<8x1xf32>
    %255 = vector.broadcast %184 : i32 to vector<8x1xi32>
    %256 = arith.cmpi sgt, %0, %255 : vector<8x1xi32>
    %257 = arith.extui %256 : vector<8x1xi1> to vector<8x1xi32>
    %258 = arith.sitofp %257 : vector<8x1xi32> to vector<8x1xf32>
    %259 = arith.subf %221, %179 : vector<8x32xf32>
    %260 = vector.broadcast %254 : vector<8x1xf32> to vector<8x32xf32>
    %261 = arith.mulf %260, %259 : vector<8x32xf32>
    %262 = arith.addf %179, %261 : vector<8x32xf32>
    %263 = arith.subf %250, %183 : vector<8x32xf32>
    %264 = vector.broadcast %258 : vector<8x1xf32> to vector<8x32xf32>
    %265 = arith.mulf %264, %263 : vector<8x32xf32>
    %266 = arith.addf %183, %265 : vector<8x32xf32>
    %c3_i32 = arith.constant 3 : i32
    %c9_i32_58 = arith.constant 9 : i32
    %267 = arith.subi %c9_i32_58, %c3_i32 : i32
    %c8_i32_59 = arith.constant 8 : i32
    %268 = arith.muli %c3_i32, %c8_i32_59 : i32
    %269 = tpu.assume_multiple %268, 8 : i32
    %270 = arith.index_cast %269 : i32 to index
    %c0_60 = arith.constant 0 : index
    %271 = vector.load %arg9[%270, %c0_60] : memref<80x96xf32, #tpu.memory_space<vmem>>, vector<8x96xf32>
    %c8_i32_61 = arith.constant 8 : i32
    %272 = arith.muli %267, %c8_i32_61 : i32
    %273 = tpu.assume_multiple %272, 8 : i32
    %274 = arith.index_cast %273 : i32 to index
    %c0_62 = arith.constant 0 : index
    %275 = vector.load %arg10[%274, %c0_62] : memref<80x96xf32, #tpu.memory_space<vmem>>, vector<8x96xf32>
    %cst_63 = arith.constant dense<0.000000e+00> : vector<8x96xf32>
    %276 = tpu.matmul %262, %13, %cst_63 {dimension_numbers = #tpu.dot_dimension_numbers<[1], [0], [0], [1], [0, 0, 1, 1], [], []>} : vector<8x32xf32>, vector<32x96xf32>, vector<8x96xf32> -> vector<8x96xf32>
    %277 = vector.broadcast %14 : vector<1x96xf32> to vector<8x96xf32>
    %278 = arith.addf %276, %277 : vector<8x96xf32>
    %279 = vector.extract_strided_slice %271 {offsets = [0, 0], sizes = [8, 32], strides = [1, 1]} : vector<8x96xf32> to vector<8x32xf32>
    %280 = vector.extract_strided_slice %278 {offsets = [0, 0], sizes = [8, 32], strides = [1, 1]} : vector<8x96xf32> to vector<8x32xf32>
    %281 = arith.addf %279, %280 : vector<8x32xf32>
    %282 = arith.negf %281 : vector<8x32xf32>
    %283 = math.exp %282 : vector<8x32xf32>
    %cst_64 = arith.constant 1.000000e+00 : f32
    %284 = vector.broadcast %cst_64 : f32 to vector<8x32xf32>
    %285 = arith.addf %284, %283 : vector<8x32xf32>
    %286 = arith.divf %284, %285 : vector<8x32xf32>
    %287 = vector.extract_strided_slice %271 {offsets = [0, 32], sizes = [8, 32], strides = [1, 1]} : vector<8x96xf32> to vector<8x32xf32>
    %288 = vector.extract_strided_slice %278 {offsets = [0, 32], sizes = [8, 32], strides = [1, 1]} : vector<8x96xf32> to vector<8x32xf32>
    %289 = arith.addf %287, %288 : vector<8x32xf32>
    %290 = arith.negf %289 : vector<8x32xf32>
    %291 = math.exp %290 : vector<8x32xf32>
    %cst_65 = arith.constant 1.000000e+00 : f32
    %292 = vector.broadcast %cst_65 : f32 to vector<8x32xf32>
    %293 = arith.addf %292, %291 : vector<8x32xf32>
    %294 = arith.divf %292, %293 : vector<8x32xf32>
    %295 = vector.extract_strided_slice %271 {offsets = [0, 64], sizes = [8, 32], strides = [1, 1]} : vector<8x96xf32> to vector<8x32xf32>
    %296 = vector.extract_strided_slice %278 {offsets = [0, 64], sizes = [8, 32], strides = [1, 1]} : vector<8x96xf32> to vector<8x32xf32>
    %297 = arith.mulf %286, %296 : vector<8x32xf32>
    %298 = arith.addf %295, %297 : vector<8x32xf32>
    %299 = math.tanh %298 : vector<8x32xf32>
    %cst_66 = arith.constant 1.000000e+00 : f32
    %300 = vector.broadcast %cst_66 : f32 to vector<8x32xf32>
    %301 = arith.subf %300, %294 : vector<8x32xf32>
    %302 = arith.mulf %301, %299 : vector<8x32xf32>
    %303 = arith.mulf %294, %262 : vector<8x32xf32>
    %304 = arith.addf %302, %303 : vector<8x32xf32>
    %cst_67 = arith.constant dense<0.000000e+00> : vector<8x96xf32>
    %305 = tpu.matmul %266, %15, %cst_67 {dimension_numbers = #tpu.dot_dimension_numbers<[1], [0], [0], [1], [0, 0, 1, 1], [], []>} : vector<8x32xf32>, vector<32x96xf32>, vector<8x96xf32> -> vector<8x96xf32>
    %306 = vector.broadcast %16 : vector<1x96xf32> to vector<8x96xf32>
    %307 = arith.addf %305, %306 : vector<8x96xf32>
    %308 = vector.extract_strided_slice %275 {offsets = [0, 0], sizes = [8, 32], strides = [1, 1]} : vector<8x96xf32> to vector<8x32xf32>
    %309 = vector.extract_strided_slice %307 {offsets = [0, 0], sizes = [8, 32], strides = [1, 1]} : vector<8x96xf32> to vector<8x32xf32>
    %310 = arith.addf %308, %309 : vector<8x32xf32>
    %311 = arith.negf %310 : vector<8x32xf32>
    %312 = math.exp %311 : vector<8x32xf32>
    %cst_68 = arith.constant 1.000000e+00 : f32
    %313 = vector.broadcast %cst_68 : f32 to vector<8x32xf32>
    %314 = arith.addf %313, %312 : vector<8x32xf32>
    %315 = arith.divf %313, %314 : vector<8x32xf32>
    %316 = vector.extract_strided_slice %275 {offsets = [0, 32], sizes = [8, 32], strides = [1, 1]} : vector<8x96xf32> to vector<8x32xf32>
    %317 = vector.extract_strided_slice %307 {offsets = [0, 32], sizes = [8, 32], strides = [1, 1]} : vector<8x96xf32> to vector<8x32xf32>
    %318 = arith.addf %316, %317 : vector<8x32xf32>
    %319 = arith.negf %318 : vector<8x32xf32>
    %320 = math.exp %319 : vector<8x32xf32>
    %cst_69 = arith.constant 1.000000e+00 : f32
    %321 = vector.broadcast %cst_69 : f32 to vector<8x32xf32>
    %322 = arith.addf %321, %320 : vector<8x32xf32>
    %323 = arith.divf %321, %322 : vector<8x32xf32>
    %324 = vector.extract_strided_slice %275 {offsets = [0, 64], sizes = [8, 32], strides = [1, 1]} : vector<8x96xf32> to vector<8x32xf32>
    %325 = vector.extract_strided_slice %307 {offsets = [0, 64], sizes = [8, 32], strides = [1, 1]} : vector<8x96xf32> to vector<8x32xf32>
    %326 = arith.mulf %315, %325 : vector<8x32xf32>
    %327 = arith.addf %324, %326 : vector<8x32xf32>
    %328 = math.tanh %327 : vector<8x32xf32>
    %cst_70 = arith.constant 1.000000e+00 : f32
    %329 = vector.broadcast %cst_70 : f32 to vector<8x32xf32>
    %330 = arith.subf %329, %323 : vector<8x32xf32>
    %331 = arith.mulf %330, %328 : vector<8x32xf32>
    %332 = arith.mulf %323, %266 : vector<8x32xf32>
    %333 = arith.addf %331, %332 : vector<8x32xf32>
    %334 = vector.broadcast %c3_i32 : i32 to vector<8x1xi32>
    %335 = arith.cmpi sgt, %0, %334 : vector<8x1xi32>
    %336 = arith.extui %335 : vector<8x1xi1> to vector<8x1xi32>
    %337 = arith.sitofp %336 : vector<8x1xi32> to vector<8x1xf32>
    %338 = vector.broadcast %267 : i32 to vector<8x1xi32>
    %339 = arith.cmpi sgt, %0, %338 : vector<8x1xi32>
    %340 = arith.extui %339 : vector<8x1xi1> to vector<8x1xi32>
    %341 = arith.sitofp %340 : vector<8x1xi32> to vector<8x1xf32>
    %342 = arith.subf %304, %262 : vector<8x32xf32>
    %343 = vector.broadcast %337 : vector<8x1xf32> to vector<8x32xf32>
    %344 = arith.mulf %343, %342 : vector<8x32xf32>
    %345 = arith.addf %262, %344 : vector<8x32xf32>
    %346 = arith.subf %333, %266 : vector<8x32xf32>
    %347 = vector.broadcast %341 : vector<8x1xf32> to vector<8x32xf32>
    %348 = arith.mulf %347, %346 : vector<8x32xf32>
    %349 = arith.addf %266, %348 : vector<8x32xf32>
    %c4_i32 = arith.constant 4 : i32
    %c9_i32_71 = arith.constant 9 : i32
    %350 = arith.subi %c9_i32_71, %c4_i32 : i32
    %c8_i32_72 = arith.constant 8 : i32
    %351 = arith.muli %c4_i32, %c8_i32_72 : i32
    %352 = tpu.assume_multiple %351, 8 : i32
    %353 = arith.index_cast %352 : i32 to index
    %c0_73 = arith.constant 0 : index
    %354 = vector.load %arg9[%353, %c0_73] : memref<80x96xf32, #tpu.memory_space<vmem>>, vector<8x96xf32>
    %c8_i32_74 = arith.constant 8 : i32
    %355 = arith.muli %350, %c8_i32_74 : i32
    %356 = tpu.assume_multiple %355, 8 : i32
    %357 = arith.index_cast %356 : i32 to index
    %c0_75 = arith.constant 0 : index
    %358 = vector.load %arg10[%357, %c0_75] : memref<80x96xf32, #tpu.memory_space<vmem>>, vector<8x96xf32>
    %cst_76 = arith.constant dense<0.000000e+00> : vector<8x96xf32>
    %359 = tpu.matmul %345, %13, %cst_76 {dimension_numbers = #tpu.dot_dimension_numbers<[1], [0], [0], [1], [0, 0, 1, 1], [], []>} : vector<8x32xf32>, vector<32x96xf32>, vector<8x96xf32> -> vector<8x96xf32>
    %360 = vector.broadcast %14 : vector<1x96xf32> to vector<8x96xf32>
    %361 = arith.addf %359, %360 : vector<8x96xf32>
    %362 = vector.extract_strided_slice %354 {offsets = [0, 0], sizes = [8, 32], strides = [1, 1]} : vector<8x96xf32> to vector<8x32xf32>
    %363 = vector.extract_strided_slice %361 {offsets = [0, 0], sizes = [8, 32], strides = [1, 1]} : vector<8x96xf32> to vector<8x32xf32>
    %364 = arith.addf %362, %363 : vector<8x32xf32>
    %365 = arith.negf %364 : vector<8x32xf32>
    %366 = math.exp %365 : vector<8x32xf32>
    %cst_77 = arith.constant 1.000000e+00 : f32
    %367 = vector.broadcast %cst_77 : f32 to vector<8x32xf32>
    %368 = arith.addf %367, %366 : vector<8x32xf32>
    %369 = arith.divf %367, %368 : vector<8x32xf32>
    %370 = vector.extract_strided_slice %354 {offsets = [0, 32], sizes = [8, 32], strides = [1, 1]} : vector<8x96xf32> to vector<8x32xf32>
    %371 = vector.extract_strided_slice %361 {offsets = [0, 32], sizes = [8, 32], strides = [1, 1]} : vector<8x96xf32> to vector<8x32xf32>
    %372 = arith.addf %370, %371 : vector<8x32xf32>
    %373 = arith.negf %372 : vector<8x32xf32>
    %374 = math.exp %373 : vector<8x32xf32>
    %cst_78 = arith.constant 1.000000e+00 : f32
    %375 = vector.broadcast %cst_78 : f32 to vector<8x32xf32>
    %376 = arith.addf %375, %374 : vector<8x32xf32>
    %377 = arith.divf %375, %376 : vector<8x32xf32>
    %378 = vector.extract_strided_slice %354 {offsets = [0, 64], sizes = [8, 32], strides = [1, 1]} : vector<8x96xf32> to vector<8x32xf32>
    %379 = vector.extract_strided_slice %361 {offsets = [0, 64], sizes = [8, 32], strides = [1, 1]} : vector<8x96xf32> to vector<8x32xf32>
    %380 = arith.mulf %369, %379 : vector<8x32xf32>
    %381 = arith.addf %378, %380 : vector<8x32xf32>
    %382 = math.tanh %381 : vector<8x32xf32>
    %cst_79 = arith.constant 1.000000e+00 : f32
    %383 = vector.broadcast %cst_79 : f32 to vector<8x32xf32>
    %384 = arith.subf %383, %377 : vector<8x32xf32>
    %385 = arith.mulf %384, %382 : vector<8x32xf32>
    %386 = arith.mulf %377, %345 : vector<8x32xf32>
    %387 = arith.addf %385, %386 : vector<8x32xf32>
    %cst_80 = arith.constant dense<0.000000e+00> : vector<8x96xf32>
    %388 = tpu.matmul %349, %15, %cst_80 {dimension_numbers = #tpu.dot_dimension_numbers<[1], [0], [0], [1], [0, 0, 1, 1], [], []>} : vector<8x32xf32>, vector<32x96xf32>, vector<8x96xf32> -> vector<8x96xf32>
    %389 = vector.broadcast %16 : vector<1x96xf32> to vector<8x96xf32>
    %390 = arith.addf %388, %389 : vector<8x96xf32>
    %391 = vector.extract_strided_slice %358 {offsets = [0, 0], sizes = [8, 32], strides = [1, 1]} : vector<8x96xf32> to vector<8x32xf32>
    %392 = vector.extract_strided_slice %390 {offsets = [0, 0], sizes = [8, 32], strides = [1, 1]} : vector<8x96xf32> to vector<8x32xf32>
    %393 = arith.addf %391, %392 : vector<8x32xf32>
    %394 = arith.negf %393 : vector<8x32xf32>
    %395 = math.exp %394 : vector<8x32xf32>
    %cst_81 = arith.constant 1.000000e+00 : f32
    %396 = vector.broadcast %cst_81 : f32 to vector<8x32xf32>
    %397 = arith.addf %396, %395 : vector<8x32xf32>
    %398 = arith.divf %396, %397 : vector<8x32xf32>
    %399 = vector.extract_strided_slice %358 {offsets = [0, 32], sizes = [8, 32], strides = [1, 1]} : vector<8x96xf32> to vector<8x32xf32>
    %400 = vector.extract_strided_slice %390 {offsets = [0, 32], sizes = [8, 32], strides = [1, 1]} : vector<8x96xf32> to vector<8x32xf32>
    %401 = arith.addf %399, %400 : vector<8x32xf32>
    %402 = arith.negf %401 : vector<8x32xf32>
    %403 = math.exp %402 : vector<8x32xf32>
    %cst_82 = arith.constant 1.000000e+00 : f32
    %404 = vector.broadcast %cst_82 : f32 to vector<8x32xf32>
    %405 = arith.addf %404, %403 : vector<8x32xf32>
    %406 = arith.divf %404, %405 : vector<8x32xf32>
    %407 = vector.extract_strided_slice %358 {offsets = [0, 64], sizes = [8, 32], strides = [1, 1]} : vector<8x96xf32> to vector<8x32xf32>
    %408 = vector.extract_strided_slice %390 {offsets = [0, 64], sizes = [8, 32], strides = [1, 1]} : vector<8x96xf32> to vector<8x32xf32>
    %409 = arith.mulf %398, %408 : vector<8x32xf32>
    %410 = arith.addf %407, %409 : vector<8x32xf32>
    %411 = math.tanh %410 : vector<8x32xf32>
    %cst_83 = arith.constant 1.000000e+00 : f32
    %412 = vector.broadcast %cst_83 : f32 to vector<8x32xf32>
    %413 = arith.subf %412, %406 : vector<8x32xf32>
    %414 = arith.mulf %413, %411 : vector<8x32xf32>
    %415 = arith.mulf %406, %349 : vector<8x32xf32>
    %416 = arith.addf %414, %415 : vector<8x32xf32>
    %417 = vector.broadcast %c4_i32 : i32 to vector<8x1xi32>
    %418 = arith.cmpi sgt, %0, %417 : vector<8x1xi32>
    %419 = arith.extui %418 : vector<8x1xi1> to vector<8x1xi32>
    %420 = arith.sitofp %419 : vector<8x1xi32> to vector<8x1xf32>
    %421 = vector.broadcast %350 : i32 to vector<8x1xi32>
    %422 = arith.cmpi sgt, %0, %421 : vector<8x1xi32>
    %423 = arith.extui %422 : vector<8x1xi1> to vector<8x1xi32>
    %424 = arith.sitofp %423 : vector<8x1xi32> to vector<8x1xf32>
    %425 = arith.subf %387, %345 : vector<8x32xf32>
    %426 = vector.broadcast %420 : vector<8x1xf32> to vector<8x32xf32>
    %427 = arith.mulf %426, %425 : vector<8x32xf32>
    %428 = arith.addf %345, %427 : vector<8x32xf32>
    %429 = arith.subf %416, %349 : vector<8x32xf32>
    %430 = vector.broadcast %424 : vector<8x1xf32> to vector<8x32xf32>
    %431 = arith.mulf %430, %429 : vector<8x32xf32>
    %432 = arith.addf %349, %431 : vector<8x32xf32>
    %c5_i32 = arith.constant 5 : i32
    %c9_i32_84 = arith.constant 9 : i32
    %433 = arith.subi %c9_i32_84, %c5_i32 : i32
    %c8_i32_85 = arith.constant 8 : i32
    %434 = arith.muli %c5_i32, %c8_i32_85 : i32
    %435 = tpu.assume_multiple %434, 8 : i32
    %436 = arith.index_cast %435 : i32 to index
    %c0_86 = arith.constant 0 : index
    %437 = vector.load %arg9[%436, %c0_86] : memref<80x96xf32, #tpu.memory_space<vmem>>, vector<8x96xf32>
    %c8_i32_87 = arith.constant 8 : i32
    %438 = arith.muli %433, %c8_i32_87 : i32
    %439 = tpu.assume_multiple %438, 8 : i32
    %440 = arith.index_cast %439 : i32 to index
    %c0_88 = arith.constant 0 : index
    %441 = vector.load %arg10[%440, %c0_88] : memref<80x96xf32, #tpu.memory_space<vmem>>, vector<8x96xf32>
    %cst_89 = arith.constant dense<0.000000e+00> : vector<8x96xf32>
    %442 = tpu.matmul %428, %13, %cst_89 {dimension_numbers = #tpu.dot_dimension_numbers<[1], [0], [0], [1], [0, 0, 1, 1], [], []>} : vector<8x32xf32>, vector<32x96xf32>, vector<8x96xf32> -> vector<8x96xf32>
    %443 = vector.broadcast %14 : vector<1x96xf32> to vector<8x96xf32>
    %444 = arith.addf %442, %443 : vector<8x96xf32>
    %445 = vector.extract_strided_slice %437 {offsets = [0, 0], sizes = [8, 32], strides = [1, 1]} : vector<8x96xf32> to vector<8x32xf32>
    %446 = vector.extract_strided_slice %444 {offsets = [0, 0], sizes = [8, 32], strides = [1, 1]} : vector<8x96xf32> to vector<8x32xf32>
    %447 = arith.addf %445, %446 : vector<8x32xf32>
    %448 = arith.negf %447 : vector<8x32xf32>
    %449 = math.exp %448 : vector<8x32xf32>
    %cst_90 = arith.constant 1.000000e+00 : f32
    %450 = vector.broadcast %cst_90 : f32 to vector<8x32xf32>
    %451 = arith.addf %450, %449 : vector<8x32xf32>
    %452 = arith.divf %450, %451 : vector<8x32xf32>
    %453 = vector.extract_strided_slice %437 {offsets = [0, 32], sizes = [8, 32], strides = [1, 1]} : vector<8x96xf32> to vector<8x32xf32>
    %454 = vector.extract_strided_slice %444 {offsets = [0, 32], sizes = [8, 32], strides = [1, 1]} : vector<8x96xf32> to vector<8x32xf32>
    %455 = arith.addf %453, %454 : vector<8x32xf32>
    %456 = arith.negf %455 : vector<8x32xf32>
    %457 = math.exp %456 : vector<8x32xf32>
    %cst_91 = arith.constant 1.000000e+00 : f32
    %458 = vector.broadcast %cst_91 : f32 to vector<8x32xf32>
    %459 = arith.addf %458, %457 : vector<8x32xf32>
    %460 = arith.divf %458, %459 : vector<8x32xf32>
    %461 = vector.extract_strided_slice %437 {offsets = [0, 64], sizes = [8, 32], strides = [1, 1]} : vector<8x96xf32> to vector<8x32xf32>
    %462 = vector.extract_strided_slice %444 {offsets = [0, 64], sizes = [8, 32], strides = [1, 1]} : vector<8x96xf32> to vector<8x32xf32>
    %463 = arith.mulf %452, %462 : vector<8x32xf32>
    %464 = arith.addf %461, %463 : vector<8x32xf32>
    %465 = math.tanh %464 : vector<8x32xf32>
    %cst_92 = arith.constant 1.000000e+00 : f32
    %466 = vector.broadcast %cst_92 : f32 to vector<8x32xf32>
    %467 = arith.subf %466, %460 : vector<8x32xf32>
    %468 = arith.mulf %467, %465 : vector<8x32xf32>
    %469 = arith.mulf %460, %428 : vector<8x32xf32>
    %470 = arith.addf %468, %469 : vector<8x32xf32>
    %cst_93 = arith.constant dense<0.000000e+00> : vector<8x96xf32>
    %471 = tpu.matmul %432, %15, %cst_93 {dimension_numbers = #tpu.dot_dimension_numbers<[1], [0], [0], [1], [0, 0, 1, 1], [], []>} : vector<8x32xf32>, vector<32x96xf32>, vector<8x96xf32> -> vector<8x96xf32>
    %472 = vector.broadcast %16 : vector<1x96xf32> to vector<8x96xf32>
    %473 = arith.addf %471, %472 : vector<8x96xf32>
    %474 = vector.extract_strided_slice %441 {offsets = [0, 0], sizes = [8, 32], strides = [1, 1]} : vector<8x96xf32> to vector<8x32xf32>
    %475 = vector.extract_strided_slice %473 {offsets = [0, 0], sizes = [8, 32], strides = [1, 1]} : vector<8x96xf32> to vector<8x32xf32>
    %476 = arith.addf %474, %475 : vector<8x32xf32>
    %477 = arith.negf %476 : vector<8x32xf32>
    %478 = math.exp %477 : vector<8x32xf32>
    %cst_94 = arith.constant 1.000000e+00 : f32
    %479 = vector.broadcast %cst_94 : f32 to vector<8x32xf32>
    %480 = arith.addf %479, %478 : vector<8x32xf32>
    %481 = arith.divf %479, %480 : vector<8x32xf32>
    %482 = vector.extract_strided_slice %441 {offsets = [0, 32], sizes = [8, 32], strides = [1, 1]} : vector<8x96xf32> to vector<8x32xf32>
    %483 = vector.extract_strided_slice %473 {offsets = [0, 32], sizes = [8, 32], strides = [1, 1]} : vector<8x96xf32> to vector<8x32xf32>
    %484 = arith.addf %482, %483 : vector<8x32xf32>
    %485 = arith.negf %484 : vector<8x32xf32>
    %486 = math.exp %485 : vector<8x32xf32>
    %cst_95 = arith.constant 1.000000e+00 : f32
    %487 = vector.broadcast %cst_95 : f32 to vector<8x32xf32>
    %488 = arith.addf %487, %486 : vector<8x32xf32>
    %489 = arith.divf %487, %488 : vector<8x32xf32>
    %490 = vector.extract_strided_slice %441 {offsets = [0, 64], sizes = [8, 32], strides = [1, 1]} : vector<8x96xf32> to vector<8x32xf32>
    %491 = vector.extract_strided_slice %473 {offsets = [0, 64], sizes = [8, 32], strides = [1, 1]} : vector<8x96xf32> to vector<8x32xf32>
    %492 = arith.mulf %481, %491 : vector<8x32xf32>
    %493 = arith.addf %490, %492 : vector<8x32xf32>
    %494 = math.tanh %493 : vector<8x32xf32>
    %cst_96 = arith.constant 1.000000e+00 : f32
    %495 = vector.broadcast %cst_96 : f32 to vector<8x32xf32>
    %496 = arith.subf %495, %489 : vector<8x32xf32>
    %497 = arith.mulf %496, %494 : vector<8x32xf32>
    %498 = arith.mulf %489, %432 : vector<8x32xf32>
    %499 = arith.addf %497, %498 : vector<8x32xf32>
    %500 = vector.broadcast %c5_i32 : i32 to vector<8x1xi32>
    %501 = arith.cmpi sgt, %0, %500 : vector<8x1xi32>
    %502 = arith.extui %501 : vector<8x1xi1> to vector<8x1xi32>
    %503 = arith.sitofp %502 : vector<8x1xi32> to vector<8x1xf32>
    %504 = vector.broadcast %433 : i32 to vector<8x1xi32>
    %505 = arith.cmpi sgt, %0, %504 : vector<8x1xi32>
    %506 = arith.extui %505 : vector<8x1xi1> to vector<8x1xi32>
    %507 = arith.sitofp %506 : vector<8x1xi32> to vector<8x1xf32>
    %508 = arith.subf %470, %428 : vector<8x32xf32>
    %509 = vector.broadcast %503 : vector<8x1xf32> to vector<8x32xf32>
    %510 = arith.mulf %509, %508 : vector<8x32xf32>
    %511 = arith.addf %428, %510 : vector<8x32xf32>
    %512 = arith.subf %499, %432 : vector<8x32xf32>
    %513 = vector.broadcast %507 : vector<8x1xf32> to vector<8x32xf32>
    %514 = arith.mulf %513, %512 : vector<8x32xf32>
    %515 = arith.addf %432, %514 : vector<8x32xf32>
    %c6_i32 = arith.constant 6 : i32
    %c9_i32_97 = arith.constant 9 : i32
    %516 = arith.subi %c9_i32_97, %c6_i32 : i32
    %c8_i32_98 = arith.constant 8 : i32
    %517 = arith.muli %c6_i32, %c8_i32_98 : i32
    %518 = tpu.assume_multiple %517, 8 : i32
    %519 = arith.index_cast %518 : i32 to index
    %c0_99 = arith.constant 0 : index
    %520 = vector.load %arg9[%519, %c0_99] : memref<80x96xf32, #tpu.memory_space<vmem>>, vector<8x96xf32>
    %c8_i32_100 = arith.constant 8 : i32
    %521 = arith.muli %516, %c8_i32_100 : i32
    %522 = tpu.assume_multiple %521, 8 : i32
    %523 = arith.index_cast %522 : i32 to index
    %c0_101 = arith.constant 0 : index
    %524 = vector.load %arg10[%523, %c0_101] : memref<80x96xf32, #tpu.memory_space<vmem>>, vector<8x96xf32>
    %cst_102 = arith.constant dense<0.000000e+00> : vector<8x96xf32>
    %525 = tpu.matmul %511, %13, %cst_102 {dimension_numbers = #tpu.dot_dimension_numbers<[1], [0], [0], [1], [0, 0, 1, 1], [], []>} : vector<8x32xf32>, vector<32x96xf32>, vector<8x96xf32> -> vector<8x96xf32>
    %526 = vector.broadcast %14 : vector<1x96xf32> to vector<8x96xf32>
    %527 = arith.addf %525, %526 : vector<8x96xf32>
    %528 = vector.extract_strided_slice %520 {offsets = [0, 0], sizes = [8, 32], strides = [1, 1]} : vector<8x96xf32> to vector<8x32xf32>
    %529 = vector.extract_strided_slice %527 {offsets = [0, 0], sizes = [8, 32], strides = [1, 1]} : vector<8x96xf32> to vector<8x32xf32>
    %530 = arith.addf %528, %529 : vector<8x32xf32>
    %531 = arith.negf %530 : vector<8x32xf32>
    %532 = math.exp %531 : vector<8x32xf32>
    %cst_103 = arith.constant 1.000000e+00 : f32
    %533 = vector.broadcast %cst_103 : f32 to vector<8x32xf32>
    %534 = arith.addf %533, %532 : vector<8x32xf32>
    %535 = arith.divf %533, %534 : vector<8x32xf32>
    %536 = vector.extract_strided_slice %520 {offsets = [0, 32], sizes = [8, 32], strides = [1, 1]} : vector<8x96xf32> to vector<8x32xf32>
    %537 = vector.extract_strided_slice %527 {offsets = [0, 32], sizes = [8, 32], strides = [1, 1]} : vector<8x96xf32> to vector<8x32xf32>
    %538 = arith.addf %536, %537 : vector<8x32xf32>
    %539 = arith.negf %538 : vector<8x32xf32>
    %540 = math.exp %539 : vector<8x32xf32>
    %cst_104 = arith.constant 1.000000e+00 : f32
    %541 = vector.broadcast %cst_104 : f32 to vector<8x32xf32>
    %542 = arith.addf %541, %540 : vector<8x32xf32>
    %543 = arith.divf %541, %542 : vector<8x32xf32>
    %544 = vector.extract_strided_slice %520 {offsets = [0, 64], sizes = [8, 32], strides = [1, 1]} : vector<8x96xf32> to vector<8x32xf32>
    %545 = vector.extract_strided_slice %527 {offsets = [0, 64], sizes = [8, 32], strides = [1, 1]} : vector<8x96xf32> to vector<8x32xf32>
    %546 = arith.mulf %535, %545 : vector<8x32xf32>
    %547 = arith.addf %544, %546 : vector<8x32xf32>
    %548 = math.tanh %547 : vector<8x32xf32>
    %cst_105 = arith.constant 1.000000e+00 : f32
    %549 = vector.broadcast %cst_105 : f32 to vector<8x32xf32>
    %550 = arith.subf %549, %543 : vector<8x32xf32>
    %551 = arith.mulf %550, %548 : vector<8x32xf32>
    %552 = arith.mulf %543, %511 : vector<8x32xf32>
    %553 = arith.addf %551, %552 : vector<8x32xf32>
    %cst_106 = arith.constant dense<0.000000e+00> : vector<8x96xf32>
    %554 = tpu.matmul %515, %15, %cst_106 {dimension_numbers = #tpu.dot_dimension_numbers<[1], [0], [0], [1], [0, 0, 1, 1], [], []>} : vector<8x32xf32>, vector<32x96xf32>, vector<8x96xf32> -> vector<8x96xf32>
    %555 = vector.broadcast %16 : vector<1x96xf32> to vector<8x96xf32>
    %556 = arith.addf %554, %555 : vector<8x96xf32>
    %557 = vector.extract_strided_slice %524 {offsets = [0, 0], sizes = [8, 32], strides = [1, 1]} : vector<8x96xf32> to vector<8x32xf32>
    %558 = vector.extract_strided_slice %556 {offsets = [0, 0], sizes = [8, 32], strides = [1, 1]} : vector<8x96xf32> to vector<8x32xf32>
    %559 = arith.addf %557, %558 : vector<8x32xf32>
    %560 = arith.negf %559 : vector<8x32xf32>
    %561 = math.exp %560 : vector<8x32xf32>
    %cst_107 = arith.constant 1.000000e+00 : f32
    %562 = vector.broadcast %cst_107 : f32 to vector<8x32xf32>
    %563 = arith.addf %562, %561 : vector<8x32xf32>
    %564 = arith.divf %562, %563 : vector<8x32xf32>
    %565 = vector.extract_strided_slice %524 {offsets = [0, 32], sizes = [8, 32], strides = [1, 1]} : vector<8x96xf32> to vector<8x32xf32>
    %566 = vector.extract_strided_slice %556 {offsets = [0, 32], sizes = [8, 32], strides = [1, 1]} : vector<8x96xf32> to vector<8x32xf32>
    %567 = arith.addf %565, %566 : vector<8x32xf32>
    %568 = arith.negf %567 : vector<8x32xf32>
    %569 = math.exp %568 : vector<8x32xf32>
    %cst_108 = arith.constant 1.000000e+00 : f32
    %570 = vector.broadcast %cst_108 : f32 to vector<8x32xf32>
    %571 = arith.addf %570, %569 : vector<8x32xf32>
    %572 = arith.divf %570, %571 : vector<8x32xf32>
    %573 = vector.extract_strided_slice %524 {offsets = [0, 64], sizes = [8, 32], strides = [1, 1]} : vector<8x96xf32> to vector<8x32xf32>
    %574 = vector.extract_strided_slice %556 {offsets = [0, 64], sizes = [8, 32], strides = [1, 1]} : vector<8x96xf32> to vector<8x32xf32>
    %575 = arith.mulf %564, %574 : vector<8x32xf32>
    %576 = arith.addf %573, %575 : vector<8x32xf32>
    %577 = math.tanh %576 : vector<8x32xf32>
    %cst_109 = arith.constant 1.000000e+00 : f32
    %578 = vector.broadcast %cst_109 : f32 to vector<8x32xf32>
    %579 = arith.subf %578, %572 : vector<8x32xf32>
    %580 = arith.mulf %579, %577 : vector<8x32xf32>
    %581 = arith.mulf %572, %515 : vector<8x32xf32>
    %582 = arith.addf %580, %581 : vector<8x32xf32>
    %583 = vector.broadcast %c6_i32 : i32 to vector<8x1xi32>
    %584 = arith.cmpi sgt, %0, %583 : vector<8x1xi32>
    %585 = arith.extui %584 : vector<8x1xi1> to vector<8x1xi32>
    %586 = arith.sitofp %585 : vector<8x1xi32> to vector<8x1xf32>
    %587 = vector.broadcast %516 : i32 to vector<8x1xi32>
    %588 = arith.cmpi sgt, %0, %587 : vector<8x1xi32>
    %589 = arith.extui %588 : vector<8x1xi1> to vector<8x1xi32>
    %590 = arith.sitofp %589 : vector<8x1xi32> to vector<8x1xf32>
    %591 = arith.subf %553, %511 : vector<8x32xf32>
    %592 = vector.broadcast %586 : vector<8x1xf32> to vector<8x32xf32>
    %593 = arith.mulf %592, %591 : vector<8x32xf32>
    %594 = arith.addf %511, %593 : vector<8x32xf32>
    %595 = arith.subf %582, %515 : vector<8x32xf32>
    %596 = vector.broadcast %590 : vector<8x1xf32> to vector<8x32xf32>
    %597 = arith.mulf %596, %595 : vector<8x32xf32>
    %598 = arith.addf %515, %597 : vector<8x32xf32>
    %c7_i32 = arith.constant 7 : i32
    %c9_i32_110 = arith.constant 9 : i32
    %599 = arith.subi %c9_i32_110, %c7_i32 : i32
    %c8_i32_111 = arith.constant 8 : i32
    %600 = arith.muli %c7_i32, %c8_i32_111 : i32
    %601 = tpu.assume_multiple %600, 8 : i32
    %602 = arith.index_cast %601 : i32 to index
    %c0_112 = arith.constant 0 : index
    %603 = vector.load %arg9[%602, %c0_112] : memref<80x96xf32, #tpu.memory_space<vmem>>, vector<8x96xf32>
    %c8_i32_113 = arith.constant 8 : i32
    %604 = arith.muli %599, %c8_i32_113 : i32
    %605 = tpu.assume_multiple %604, 8 : i32
    %606 = arith.index_cast %605 : i32 to index
    %c0_114 = arith.constant 0 : index
    %607 = vector.load %arg10[%606, %c0_114] : memref<80x96xf32, #tpu.memory_space<vmem>>, vector<8x96xf32>
    %cst_115 = arith.constant dense<0.000000e+00> : vector<8x96xf32>
    %608 = tpu.matmul %594, %13, %cst_115 {dimension_numbers = #tpu.dot_dimension_numbers<[1], [0], [0], [1], [0, 0, 1, 1], [], []>} : vector<8x32xf32>, vector<32x96xf32>, vector<8x96xf32> -> vector<8x96xf32>
    %609 = vector.broadcast %14 : vector<1x96xf32> to vector<8x96xf32>
    %610 = arith.addf %608, %609 : vector<8x96xf32>
    %611 = vector.extract_strided_slice %603 {offsets = [0, 0], sizes = [8, 32], strides = [1, 1]} : vector<8x96xf32> to vector<8x32xf32>
    %612 = vector.extract_strided_slice %610 {offsets = [0, 0], sizes = [8, 32], strides = [1, 1]} : vector<8x96xf32> to vector<8x32xf32>
    %613 = arith.addf %611, %612 : vector<8x32xf32>
    %614 = arith.negf %613 : vector<8x32xf32>
    %615 = math.exp %614 : vector<8x32xf32>
    %cst_116 = arith.constant 1.000000e+00 : f32
    %616 = vector.broadcast %cst_116 : f32 to vector<8x32xf32>
    %617 = arith.addf %616, %615 : vector<8x32xf32>
    %618 = arith.divf %616, %617 : vector<8x32xf32>
    %619 = vector.extract_strided_slice %603 {offsets = [0, 32], sizes = [8, 32], strides = [1, 1]} : vector<8x96xf32> to vector<8x32xf32>
    %620 = vector.extract_strided_slice %610 {offsets = [0, 32], sizes = [8, 32], strides = [1, 1]} : vector<8x96xf32> to vector<8x32xf32>
    %621 = arith.addf %619, %620 : vector<8x32xf32>
    %622 = arith.negf %621 : vector<8x32xf32>
    %623 = math.exp %622 : vector<8x32xf32>
    %cst_117 = arith.constant 1.000000e+00 : f32
    %624 = vector.broadcast %cst_117 : f32 to vector<8x32xf32>
    %625 = arith.addf %624, %623 : vector<8x32xf32>
    %626 = arith.divf %624, %625 : vector<8x32xf32>
    %627 = vector.extract_strided_slice %603 {offsets = [0, 64], sizes = [8, 32], strides = [1, 1]} : vector<8x96xf32> to vector<8x32xf32>
    %628 = vector.extract_strided_slice %610 {offsets = [0, 64], sizes = [8, 32], strides = [1, 1]} : vector<8x96xf32> to vector<8x32xf32>
    %629 = arith.mulf %618, %628 : vector<8x32xf32>
    %630 = arith.addf %627, %629 : vector<8x32xf32>
    %631 = math.tanh %630 : vector<8x32xf32>
    %cst_118 = arith.constant 1.000000e+00 : f32
    %632 = vector.broadcast %cst_118 : f32 to vector<8x32xf32>
    %633 = arith.subf %632, %626 : vector<8x32xf32>
    %634 = arith.mulf %633, %631 : vector<8x32xf32>
    %635 = arith.mulf %626, %594 : vector<8x32xf32>
    %636 = arith.addf %634, %635 : vector<8x32xf32>
    %cst_119 = arith.constant dense<0.000000e+00> : vector<8x96xf32>
    %637 = tpu.matmul %598, %15, %cst_119 {dimension_numbers = #tpu.dot_dimension_numbers<[1], [0], [0], [1], [0, 0, 1, 1], [], []>} : vector<8x32xf32>, vector<32x96xf32>, vector<8x96xf32> -> vector<8x96xf32>
    %638 = vector.broadcast %16 : vector<1x96xf32> to vector<8x96xf32>
    %639 = arith.addf %637, %638 : vector<8x96xf32>
    %640 = vector.extract_strided_slice %607 {offsets = [0, 0], sizes = [8, 32], strides = [1, 1]} : vector<8x96xf32> to vector<8x32xf32>
    %641 = vector.extract_strided_slice %639 {offsets = [0, 0], sizes = [8, 32], strides = [1, 1]} : vector<8x96xf32> to vector<8x32xf32>
    %642 = arith.addf %640, %641 : vector<8x32xf32>
    %643 = arith.negf %642 : vector<8x32xf32>
    %644 = math.exp %643 : vector<8x32xf32>
    %cst_120 = arith.constant 1.000000e+00 : f32
    %645 = vector.broadcast %cst_120 : f32 to vector<8x32xf32>
    %646 = arith.addf %645, %644 : vector<8x32xf32>
    %647 = arith.divf %645, %646 : vector<8x32xf32>
    %648 = vector.extract_strided_slice %607 {offsets = [0, 32], sizes = [8, 32], strides = [1, 1]} : vector<8x96xf32> to vector<8x32xf32>
    %649 = vector.extract_strided_slice %639 {offsets = [0, 32], sizes = [8, 32], strides = [1, 1]} : vector<8x96xf32> to vector<8x32xf32>
    %650 = arith.addf %648, %649 : vector<8x32xf32>
    %651 = arith.negf %650 : vector<8x32xf32>
    %652 = math.exp %651 : vector<8x32xf32>
    %cst_121 = arith.constant 1.000000e+00 : f32
    %653 = vector.broadcast %cst_121 : f32 to vector<8x32xf32>
    %654 = arith.addf %653, %652 : vector<8x32xf32>
    %655 = arith.divf %653, %654 : vector<8x32xf32>
    %656 = vector.extract_strided_slice %607 {offsets = [0, 64], sizes = [8, 32], strides = [1, 1]} : vector<8x96xf32> to vector<8x32xf32>
    %657 = vector.extract_strided_slice %639 {offsets = [0, 64], sizes = [8, 32], strides = [1, 1]} : vector<8x96xf32> to vector<8x32xf32>
    %658 = arith.mulf %647, %657 : vector<8x32xf32>
    %659 = arith.addf %656, %658 : vector<8x32xf32>
    %660 = math.tanh %659 : vector<8x32xf32>
    %cst_122 = arith.constant 1.000000e+00 : f32
    %661 = vector.broadcast %cst_122 : f32 to vector<8x32xf32>
    %662 = arith.subf %661, %655 : vector<8x32xf32>
    %663 = arith.mulf %662, %660 : vector<8x32xf32>
    %664 = arith.mulf %655, %598 : vector<8x32xf32>
    %665 = arith.addf %663, %664 : vector<8x32xf32>
    %666 = vector.broadcast %c7_i32 : i32 to vector<8x1xi32>
    %667 = arith.cmpi sgt, %0, %666 : vector<8x1xi32>
    %668 = arith.extui %667 : vector<8x1xi1> to vector<8x1xi32>
    %669 = arith.sitofp %668 : vector<8x1xi32> to vector<8x1xf32>
    %670 = vector.broadcast %599 : i32 to vector<8x1xi32>
    %671 = arith.cmpi sgt, %0, %670 : vector<8x1xi32>
    %672 = arith.extui %671 : vector<8x1xi1> to vector<8x1xi32>
    %673 = arith.sitofp %672 : vector<8x1xi32> to vector<8x1xf32>
    %674 = arith.subf %636, %594 : vector<8x32xf32>
    %675 = vector.broadcast %669 : vector<8x1xf32> to vector<8x32xf32>
    %676 = arith.mulf %675, %674 : vector<8x32xf32>
    %677 = arith.addf %594, %676 : vector<8x32xf32>
    %678 = arith.subf %665, %598 : vector<8x32xf32>
    %679 = vector.broadcast %673 : vector<8x1xf32> to vector<8x32xf32>
    %680 = arith.mulf %679, %678 : vector<8x32xf32>
    %681 = arith.addf %598, %680 : vector<8x32xf32>
    %c8_i32_123 = arith.constant 8 : i32
    %c9_i32_124 = arith.constant 9 : i32
    %682 = arith.subi %c9_i32_124, %c8_i32_123 : i32
    %c8_i32_125 = arith.constant 8 : i32
    %683 = arith.muli %c8_i32_123, %c8_i32_125 : i32
    %684 = tpu.assume_multiple %683, 8 : i32
    %685 = arith.index_cast %684 : i32 to index
    %c0_126 = arith.constant 0 : index
    %686 = vector.load %arg9[%685, %c0_126] : memref<80x96xf32, #tpu.memory_space<vmem>>, vector<8x96xf32>
    %c8_i32_127 = arith.constant 8 : i32
    %687 = arith.muli %682, %c8_i32_127 : i32
    %688 = tpu.assume_multiple %687, 8 : i32
    %689 = arith.index_cast %688 : i32 to index
    %c0_128 = arith.constant 0 : index
    %690 = vector.load %arg10[%689, %c0_128] : memref<80x96xf32, #tpu.memory_space<vmem>>, vector<8x96xf32>
    %cst_129 = arith.constant dense<0.000000e+00> : vector<8x96xf32>
    %691 = tpu.matmul %677, %13, %cst_129 {dimension_numbers = #tpu.dot_dimension_numbers<[1], [0], [0], [1], [0, 0, 1, 1], [], []>} : vector<8x32xf32>, vector<32x96xf32>, vector<8x96xf32> -> vector<8x96xf32>
    %692 = vector.broadcast %14 : vector<1x96xf32> to vector<8x96xf32>
    %693 = arith.addf %691, %692 : vector<8x96xf32>
    %694 = vector.extract_strided_slice %686 {offsets = [0, 0], sizes = [8, 32], strides = [1, 1]} : vector<8x96xf32> to vector<8x32xf32>
    %695 = vector.extract_strided_slice %693 {offsets = [0, 0], sizes = [8, 32], strides = [1, 1]} : vector<8x96xf32> to vector<8x32xf32>
    %696 = arith.addf %694, %695 : vector<8x32xf32>
    %697 = arith.negf %696 : vector<8x32xf32>
    %698 = math.exp %697 : vector<8x32xf32>
    %cst_130 = arith.constant 1.000000e+00 : f32
    %699 = vector.broadcast %cst_130 : f32 to vector<8x32xf32>
    %700 = arith.addf %699, %698 : vector<8x32xf32>
    %701 = arith.divf %699, %700 : vector<8x32xf32>
    %702 = vector.extract_strided_slice %686 {offsets = [0, 32], sizes = [8, 32], strides = [1, 1]} : vector<8x96xf32> to vector<8x32xf32>
    %703 = vector.extract_strided_slice %693 {offsets = [0, 32], sizes = [8, 32], strides = [1, 1]} : vector<8x96xf32> to vector<8x32xf32>
    %704 = arith.addf %702, %703 : vector<8x32xf32>
    %705 = arith.negf %704 : vector<8x32xf32>
    %706 = math.exp %705 : vector<8x32xf32>
    %cst_131 = arith.constant 1.000000e+00 : f32
    %707 = vector.broadcast %cst_131 : f32 to vector<8x32xf32>
    %708 = arith.addf %707, %706 : vector<8x32xf32>
    %709 = arith.divf %707, %708 : vector<8x32xf32>
    %710 = vector.extract_strided_slice %686 {offsets = [0, 64], sizes = [8, 32], strides = [1, 1]} : vector<8x96xf32> to vector<8x32xf32>
    %711 = vector.extract_strided_slice %693 {offsets = [0, 64], sizes = [8, 32], strides = [1, 1]} : vector<8x96xf32> to vector<8x32xf32>
    %712 = arith.mulf %701, %711 : vector<8x32xf32>
    %713 = arith.addf %710, %712 : vector<8x32xf32>
    %714 = math.tanh %713 : vector<8x32xf32>
    %cst_132 = arith.constant 1.000000e+00 : f32
    %715 = vector.broadcast %cst_132 : f32 to vector<8x32xf32>
    %716 = arith.subf %715, %709 : vector<8x32xf32>
    %717 = arith.mulf %716, %714 : vector<8x32xf32>
    %718 = arith.mulf %709, %677 : vector<8x32xf32>
    %719 = arith.addf %717, %718 : vector<8x32xf32>
    %cst_133 = arith.constant dense<0.000000e+00> : vector<8x96xf32>
    %720 = tpu.matmul %681, %15, %cst_133 {dimension_numbers = #tpu.dot_dimension_numbers<[1], [0], [0], [1], [0, 0, 1, 1], [], []>} : vector<8x32xf32>, vector<32x96xf32>, vector<8x96xf32> -> vector<8x96xf32>
    %721 = vector.broadcast %16 : vector<1x96xf32> to vector<8x96xf32>
    %722 = arith.addf %720, %721 : vector<8x96xf32>
    %723 = vector.extract_strided_slice %690 {offsets = [0, 0], sizes = [8, 32], strides = [1, 1]} : vector<8x96xf32> to vector<8x32xf32>
    %724 = vector.extract_strided_slice %722 {offsets = [0, 0], sizes = [8, 32], strides = [1, 1]} : vector<8x96xf32> to vector<8x32xf32>
    %725 = arith.addf %723, %724 : vector<8x32xf32>
    %726 = arith.negf %725 : vector<8x32xf32>
    %727 = math.exp %726 : vector<8x32xf32>
    %cst_134 = arith.constant 1.000000e+00 : f32
    %728 = vector.broadcast %cst_134 : f32 to vector<8x32xf32>
    %729 = arith.addf %728, %727 : vector<8x32xf32>
    %730 = arith.divf %728, %729 : vector<8x32xf32>
    %731 = vector.extract_strided_slice %690 {offsets = [0, 32], sizes = [8, 32], strides = [1, 1]} : vector<8x96xf32> to vector<8x32xf32>
    %732 = vector.extract_strided_slice %722 {offsets = [0, 32], sizes = [8, 32], strides = [1, 1]} : vector<8x96xf32> to vector<8x32xf32>
    %733 = arith.addf %731, %732 : vector<8x32xf32>
    %734 = arith.negf %733 : vector<8x32xf32>
    %735 = math.exp %734 : vector<8x32xf32>
    %cst_135 = arith.constant 1.000000e+00 : f32
    %736 = vector.broadcast %cst_135 : f32 to vector<8x32xf32>
    %737 = arith.addf %736, %735 : vector<8x32xf32>
    %738 = arith.divf %736, %737 : vector<8x32xf32>
    %739 = vector.extract_strided_slice %690 {offsets = [0, 64], sizes = [8, 32], strides = [1, 1]} : vector<8x96xf32> to vector<8x32xf32>
    %740 = vector.extract_strided_slice %722 {offsets = [0, 64], sizes = [8, 32], strides = [1, 1]} : vector<8x96xf32> to vector<8x32xf32>
    %741 = arith.mulf %730, %740 : vector<8x32xf32>
    %742 = arith.addf %739, %741 : vector<8x32xf32>
    %743 = math.tanh %742 : vector<8x32xf32>
    %cst_136 = arith.constant 1.000000e+00 : f32
    %744 = vector.broadcast %cst_136 : f32 to vector<8x32xf32>
    %745 = arith.subf %744, %738 : vector<8x32xf32>
    %746 = arith.mulf %745, %743 : vector<8x32xf32>
    %747 = arith.mulf %738, %681 : vector<8x32xf32>
    %748 = arith.addf %746, %747 : vector<8x32xf32>
    %749 = vector.broadcast %c8_i32_123 : i32 to vector<8x1xi32>
    %750 = arith.cmpi sgt, %0, %749 : vector<8x1xi32>
    %751 = arith.extui %750 : vector<8x1xi1> to vector<8x1xi32>
    %752 = arith.sitofp %751 : vector<8x1xi32> to vector<8x1xf32>
    %753 = vector.broadcast %682 : i32 to vector<8x1xi32>
    %754 = arith.cmpi sgt, %0, %753 : vector<8x1xi32>
    %755 = arith.extui %754 : vector<8x1xi1> to vector<8x1xi32>
    %756 = arith.sitofp %755 : vector<8x1xi32> to vector<8x1xf32>
    %757 = arith.subf %719, %677 : vector<8x32xf32>
    %758 = vector.broadcast %752 : vector<8x1xf32> to vector<8x32xf32>
    %759 = arith.mulf %758, %757 : vector<8x32xf32>
    %760 = arith.addf %677, %759 : vector<8x32xf32>
    %761 = arith.subf %748, %681 : vector<8x32xf32>
    %762 = vector.broadcast %756 : vector<8x1xf32> to vector<8x32xf32>
    %763 = arith.mulf %762, %761 : vector<8x32xf32>
    %764 = arith.addf %681, %763 : vector<8x32xf32>
    %c9_i32_137 = arith.constant 9 : i32
    %c9_i32_138 = arith.constant 9 : i32
    %765 = arith.subi %c9_i32_138, %c9_i32_137 : i32
    %c8_i32_139 = arith.constant 8 : i32
    %766 = arith.muli %c9_i32_137, %c8_i32_139 : i32
    %767 = tpu.assume_multiple %766, 8 : i32
    %768 = arith.index_cast %767 : i32 to index
    %c0_140 = arith.constant 0 : index
    %769 = vector.load %arg9[%768, %c0_140] : memref<80x96xf32, #tpu.memory_space<vmem>>, vector<8x96xf32>
    %c8_i32_141 = arith.constant 8 : i32
    %770 = arith.muli %765, %c8_i32_141 : i32
    %771 = tpu.assume_multiple %770, 8 : i32
    %772 = arith.index_cast %771 : i32 to index
    %c0_142 = arith.constant 0 : index
    %773 = vector.load %arg10[%772, %c0_142] : memref<80x96xf32, #tpu.memory_space<vmem>>, vector<8x96xf32>
    %cst_143 = arith.constant dense<0.000000e+00> : vector<8x96xf32>
    %774 = tpu.matmul %760, %13, %cst_143 {dimension_numbers = #tpu.dot_dimension_numbers<[1], [0], [0], [1], [0, 0, 1, 1], [], []>} : vector<8x32xf32>, vector<32x96xf32>, vector<8x96xf32> -> vector<8x96xf32>
    %775 = vector.broadcast %14 : vector<1x96xf32> to vector<8x96xf32>
    %776 = arith.addf %774, %775 : vector<8x96xf32>
    %777 = vector.extract_strided_slice %769 {offsets = [0, 0], sizes = [8, 32], strides = [1, 1]} : vector<8x96xf32> to vector<8x32xf32>
    %778 = vector.extract_strided_slice %776 {offsets = [0, 0], sizes = [8, 32], strides = [1, 1]} : vector<8x96xf32> to vector<8x32xf32>
    %779 = arith.addf %777, %778 : vector<8x32xf32>
    %780 = arith.negf %779 : vector<8x32xf32>
    %781 = math.exp %780 : vector<8x32xf32>
    %cst_144 = arith.constant 1.000000e+00 : f32
    %782 = vector.broadcast %cst_144 : f32 to vector<8x32xf32>
    %783 = arith.addf %782, %781 : vector<8x32xf32>
    %784 = arith.divf %782, %783 : vector<8x32xf32>
    %785 = vector.extract_strided_slice %769 {offsets = [0, 32], sizes = [8, 32], strides = [1, 1]} : vector<8x96xf32> to vector<8x32xf32>
    %786 = vector.extract_strided_slice %776 {offsets = [0, 32], sizes = [8, 32], strides = [1, 1]} : vector<8x96xf32> to vector<8x32xf32>
    %787 = arith.addf %785, %786 : vector<8x32xf32>
    %788 = arith.negf %787 : vector<8x32xf32>
    %789 = math.exp %788 : vector<8x32xf32>
    %cst_145 = arith.constant 1.000000e+00 : f32
    %790 = vector.broadcast %cst_145 : f32 to vector<8x32xf32>
    %791 = arith.addf %790, %789 : vector<8x32xf32>
    %792 = arith.divf %790, %791 : vector<8x32xf32>
    %793 = vector.extract_strided_slice %769 {offsets = [0, 64], sizes = [8, 32], strides = [1, 1]} : vector<8x96xf32> to vector<8x32xf32>
    %794 = vector.extract_strided_slice %776 {offsets = [0, 64], sizes = [8, 32], strides = [1, 1]} : vector<8x96xf32> to vector<8x32xf32>
    %795 = arith.mulf %784, %794 : vector<8x32xf32>
    %796 = arith.addf %793, %795 : vector<8x32xf32>
    %797 = math.tanh %796 : vector<8x32xf32>
    %cst_146 = arith.constant 1.000000e+00 : f32
    %798 = vector.broadcast %cst_146 : f32 to vector<8x32xf32>
    %799 = arith.subf %798, %792 : vector<8x32xf32>
    %800 = arith.mulf %799, %797 : vector<8x32xf32>
    %801 = arith.mulf %792, %760 : vector<8x32xf32>
    %802 = arith.addf %800, %801 : vector<8x32xf32>
    %cst_147 = arith.constant dense<0.000000e+00> : vector<8x96xf32>
    %803 = tpu.matmul %764, %15, %cst_147 {dimension_numbers = #tpu.dot_dimension_numbers<[1], [0], [0], [1], [0, 0, 1, 1], [], []>} : vector<8x32xf32>, vector<32x96xf32>, vector<8x96xf32> -> vector<8x96xf32>
    %804 = vector.broadcast %16 : vector<1x96xf32> to vector<8x96xf32>
    %805 = arith.addf %803, %804 : vector<8x96xf32>
    %806 = vector.extract_strided_slice %773 {offsets = [0, 0], sizes = [8, 32], strides = [1, 1]} : vector<8x96xf32> to vector<8x32xf32>
    %807 = vector.extract_strided_slice %805 {offsets = [0, 0], sizes = [8, 32], strides = [1, 1]} : vector<8x96xf32> to vector<8x32xf32>
    %808 = arith.addf %806, %807 : vector<8x32xf32>
    %809 = arith.negf %808 : vector<8x32xf32>
    %810 = math.exp %809 : vector<8x32xf32>
    %cst_148 = arith.constant 1.000000e+00 : f32
    %811 = vector.broadcast %cst_148 : f32 to vector<8x32xf32>
    %812 = arith.addf %811, %810 : vector<8x32xf32>
    %813 = arith.divf %811, %812 : vector<8x32xf32>
    %814 = vector.extract_strided_slice %773 {offsets = [0, 32], sizes = [8, 32], strides = [1, 1]} : vector<8x96xf32> to vector<8x32xf32>
    %815 = vector.extract_strided_slice %805 {offsets = [0, 32], sizes = [8, 32], strides = [1, 1]} : vector<8x96xf32> to vector<8x32xf32>
    %816 = arith.addf %814, %815 : vector<8x32xf32>
    %817 = arith.negf %816 : vector<8x32xf32>
    %818 = math.exp %817 : vector<8x32xf32>
    %cst_149 = arith.constant 1.000000e+00 : f32
    %819 = vector.broadcast %cst_149 : f32 to vector<8x32xf32>
    %820 = arith.addf %819, %818 : vector<8x32xf32>
    %821 = arith.divf %819, %820 : vector<8x32xf32>
    %822 = vector.extract_strided_slice %773 {offsets = [0, 64], sizes = [8, 32], strides = [1, 1]} : vector<8x96xf32> to vector<8x32xf32>
    %823 = vector.extract_strided_slice %805 {offsets = [0, 64], sizes = [8, 32], strides = [1, 1]} : vector<8x96xf32> to vector<8x32xf32>
    %824 = arith.mulf %813, %823 : vector<8x32xf32>
    %825 = arith.addf %822, %824 : vector<8x32xf32>
    %826 = math.tanh %825 : vector<8x32xf32>
    %cst_150 = arith.constant 1.000000e+00 : f32
    %827 = vector.broadcast %cst_150 : f32 to vector<8x32xf32>
    %828 = arith.subf %827, %821 : vector<8x32xf32>
    %829 = arith.mulf %828, %826 : vector<8x32xf32>
    %830 = arith.mulf %821, %764 : vector<8x32xf32>
    %831 = arith.addf %829, %830 : vector<8x32xf32>
    %832 = vector.broadcast %c9_i32_137 : i32 to vector<8x1xi32>
    %833 = arith.cmpi sgt, %0, %832 : vector<8x1xi32>
    %834 = arith.extui %833 : vector<8x1xi1> to vector<8x1xi32>
    %835 = arith.sitofp %834 : vector<8x1xi32> to vector<8x1xf32>
    %836 = vector.broadcast %765 : i32 to vector<8x1xi32>
    %837 = arith.cmpi sgt, %0, %836 : vector<8x1xi32>
    %838 = arith.extui %837 : vector<8x1xi1> to vector<8x1xi32>
    %839 = arith.sitofp %838 : vector<8x1xi32> to vector<8x1xf32>
    %840 = arith.subf %802, %760 : vector<8x32xf32>
    %841 = vector.broadcast %835 : vector<8x1xf32> to vector<8x32xf32>
    %842 = arith.mulf %841, %840 : vector<8x32xf32>
    %843 = arith.addf %760, %842 : vector<8x32xf32>
    %844 = arith.subf %831, %764 : vector<8x32xf32>
    %845 = vector.broadcast %839 : vector<8x1xf32> to vector<8x32xf32>
    %846 = arith.mulf %845, %844 : vector<8x32xf32>
    %847 = arith.addf %764, %846 : vector<8x32xf32>
    %c10_i32 = arith.constant 10 : i32
    %848 = arith.addf %843, %847 : vector<8x32xf32>
    %cst_151 = arith.constant dense<0.000000e+00> : vector<32xf32>
    %849 = vector.multi_reduction <add>, %848, %cst_151 [0] : vector<8x32xf32> to vector<32xf32>
    %850 = vector.shape_cast %849 : vector<32xf32> to vector<1x32xf32>
    %cst_152 = arith.constant 2.000000e-01 : f32
    %851 = vector.broadcast %cst_152 : f32 to vector<1x32xf32>
    %852 = arith.mulf %850, %851 : vector<1x32xf32>
    %c0_153 = arith.constant 0 : index
    %c0_154 = arith.constant 0 : index
    %853 = vector.load %arg8[%c0_153, %c0_154] : memref<1x32xf32, #tpu.memory_space<vmem>>, vector<1x32xf32>
    tpu.vector_store %arg8[%c0_153, %c0_154], %852 {strides = array<i32>} : memref<1x32xf32, #tpu.memory_space<vmem>>, vector<1x32xf32>,
    return
  }
}

</mosaic_0001>

<llo_original>
// kernel: tpu_custom_call.1
$region0: #{tpu_custom_call.1}
  #allocation0 [shape = 'u32[]', space=smem, size = 0x4, offset = 0x4, fixed_abs, tag = 'smem constant byte address 0x4 - core index']
  #allocation1 [shape = 'u32[144,128]{1,0:T(1,128)}', space=vmem, size = 0x12000, scoped, tag = 'internal scratch']
  #allocation2 [shape = 'f32[80,96]{1,0:T(8,128)}', space=vmem, size = 0xa000, scoped, tag = 'scratch operand']
  #allocation3 [shape = 'f32[80,96]{1,0:T(8,128)}', space=vmem, size = 0xa000, scoped, tag = 'scratch operand']
  %s0 = inlined_call_operand.vmem [shape: s32[8,1], index: 0, kind: input, shape index: {}]
  %s1 = inlined_call_operand.vmem [shape: s32[80,1], index: 1, kind: input, shape index: {}]
  %s2 = inlined_call_operand.vmem [shape: f32[16,96], index: 2, kind: input, shape index: {}]
  %s3 = inlined_call_operand.vmem [shape: f32[16,96], index: 3, kind: input, shape index: {}]
  %s4 = inlined_call_operand.vmem [shape: f32[32,96], index: 4, kind: input, shape index: {}]
  %s5 = inlined_call_operand.vmem [shape: f32[1,96], index: 5, kind: input, shape index: {}]
  %s6 = inlined_call_operand.vmem [shape: f32[32,96], index: 6, kind: input, shape index: {}]
  %s7 = inlined_call_operand.vmem [shape: f32[1,96], index: 7, kind: input, shape index: {}]
  %s8 = inlined_call_operand.hbm [shape: f32[1,32], index: 8, kind: output, shape index: {}]
  %s9 = sld [smem:[#allocation0]]
  $region42: #{tpu_custom_call.1} parent=0
    _
  %s11 = ssub.s32 1, %s9
  %s12 = scalar_select 0, %s11, %s9
  $region1: #{tpu_custom_call.1} parent=0
    #allocation4 [shape = 'u8[512]{0}', space=vmem, size = 0x400, scoped, tag = 'output window, operand 0, single buffered']
    #allocation5 [shape = 's32[1]{0}', space=sflag, size = 0x4, scoped, tag = 'scoped memory for tpu_custom_call.1']
    %13 = vsyncpa [#allocation5], 0
    // Predicated region
    $region2: #{tpu_custom_call.1} parent=1 // pred_check
      _
    $region3: #{tpu_custom_call.1} parent=1 // pred_check_branch
      %15 = sbr.rel (0) target = $region5
    $region4: #{tpu_custom_call.1} parent=1 // pred_region
      _
    $region5: #{tpu_custom_call.1} parent=1 // pred_fallthru
      _
    // Predicated region
    $region6: #{tpu_custom_call.1} parent=1 // pred_check
      _
    $region7: #{tpu_custom_call.1} parent=1 // pred_check_branch
      %17 = sbr.rel (0) target = $region9
    $region8: #{tpu_custom_call.1} parent=1 // pred_region
      _
    $region9: #{tpu_custom_call.1} parent=1 // pred_fallthru
      _
    // Predicated region
    $region10: #{tpu_custom_call.1} parent=1 // pred_check
      _
    $region11: #{tpu_custom_call.1} parent=1 // pred_check_branch
      %19 = sbr.rel (0) target = $region13
    $region12: #{tpu_custom_call.1} parent=1 // pred_region
      _
    $region13: #{tpu_custom_call.1} parent=1 // pred_fallthru
      _
    // Predicated region
    $region14: #{tpu_custom_call.1} parent=1 // pred_check
      _
    $region15: #{tpu_custom_call.1} parent=1 // pred_check_branch
      %21 = sbr.rel (0) target = $region17
    $region16: #{tpu_custom_call.1} parent=1 // pred_region
      _
    $region17: #{tpu_custom_call.1} parent=1 // pred_fallthru
      _
    // Predicated region
    $region18: #{tpu_custom_call.1} parent=1 // pred_check
      _
    $region19: #{tpu_custom_call.1} parent=1 // pred_check_branch
      %23 = sbr.rel (0) target = $region21
    $region20: #{tpu_custom_call.1} parent=1 // pred_region
      _
    $region21: #{tpu_custom_call.1} parent=1 // pred_fallthru
      _
    // Predicated region
    $region22: #{tpu_custom_call.1} parent=1 // pred_check
      _
    $region23: #{tpu_custom_call.1} parent=1 // pred_check_branch
      %25 = sbr.rel (0) target = $region25
    $region24: #{tpu_custom_call.1} parent=1 // pred_region
      _
    $region25: #{tpu_custom_call.1} parent=1 // pred_fallthru
      _
    // Predicated region
    $region26: #{tpu_custom_call.1} parent=1 // pred_check
      _
    $region27: #{tpu_custom_call.1} parent=1 // pred_check_branch
      %27 = sbr.rel (0) target = $region29
    $region28: #{tpu_custom_call.1} parent=1 // pred_region
      _
    $region29: #{tpu_custom_call.1} parent=1 // pred_fallthru
      _
    // Predicated region
    $region30: #{tpu_custom_call.1} parent=1 // pred_check
      _
    $region31: #{tpu_custom_call.1} parent=1 // pred_check_branch
      %29 = sbr.rel (0) target = $region33
    $region32: #{tpu_custom_call.1} parent=1 // pred_region
      _
    $region33: #{tpu_custom_call.1} parent=1 // pred_fallthru
      _
    %v30 = vld [vmem:[%s0] sm:$0xff]
    %v31 = vld [vmem:[%s1] sm:$0xff]
    %v32 = vld [vmem:[%s1 + $0x8] sm:$0xff]
    %v33 = vld [vmem:[%s1 + $0x10] sm:$0xff]
    %v34 = vld [vmem:[%s1 + $0x18] sm:$0xff]
    %v35 = vld [vmem:[%s1 + $0x20] sm:$0xff]
    %v36 = vld [vmem:[%s1 + $0x28] sm:$0xff]
    %v37 = vld [vmem:[%s1 + $0x30] sm:$0xff]
    %v38 = vld [vmem:[%s1 + $0x38] sm:$0xff]
    %v39 = vld [vmem:[%s1 + $0x40] sm:$0xff]
    %v40 = vld [vmem:[%s1 + $0x48] sm:$0xff]
    %v41 = vlaneseq
    %v42 = vand.u32 %v41, 127
    %43 = vset.pattern.permute.xlu0 0
    %44 = vperm.xlu0 %43, %v31
    %v45 = vpop.permute.xlu0 %44
    %46 = vset.pattern.permute.xlu0 0
    %47 = vperm.xlu0 %46, %v32
    %v48 = vpop.permute.xlu0 %47
    %49 = vset.pattern.permute.xlu0 0
    %50 = vperm.xlu0 %49, %v33
    %v51 = vpop.permute.xlu0 %50
    %52 = vset.pattern.permute.xlu0 0
    %53 = vperm.xlu0 %52, %v34
    %v54 = vpop.permute.xlu0 %53
    %55 = vset.pattern.permute.xlu0 0
    %56 = vperm.xlu0 %55, %v35
    %v57 = vpop.permute.xlu0 %56
    %58 = vset.pattern.permute.xlu0 0
    %59 = vperm.xlu0 %58, %v36
    %v60 = vpop.permute.xlu0 %59
    %61 = vset.pattern.permute.xlu0 0
    %62 = vperm.xlu0 %61, %v37
    %v63 = vpop.permute.xlu0 %62
    %64 = vset.pattern.permute.xlu0 0
    %65 = vperm.xlu0 %64, %v38
    %v66 = vpop.permute.xlu0 %65
    %67 = vset.pattern.permute.xlu0 0
    %68 = vperm.xlu0 %67, %v39
    %v69 = vpop.permute.xlu0 %68
    %70 = vset.pattern.permute.xlu0 0
    %71 = vperm.xlu0 %70, %v40
    %v72 = vpop.permute.xlu0 %71
    %vm73 = vcmp.eq.s32.totalorder %v42, %v45
    %vm74 = vcmp.eq.s32.totalorder %v42, %v48
    %vm75 = vcmp.eq.s32.totalorder %v42, %v51
    %vm76 = vcmp.eq.s32.totalorder %v42, %v54
    %vm77 = vcmp.eq.s32.totalorder %v42, %v57
    %vm78 = vcmp.eq.s32.totalorder %v42, %v60
    %vm79 = vcmp.eq.s32.totalorder %v42, %v63
    %vm80 = vcmp.eq.s32.totalorder %v42, %v66
    %vm81 = vcmp.eq.s32.totalorder %v42, %v69
    %vm82 = vcmp.eq.s32.totalorder %v42, %v72
    %v83 = vsel %vm73, 1, 0
    %v84 = vsel %vm74, 1, 0
    %v85 = vsel %vm75, 1, 0
    %v86 = vsel %vm76, 1, 0
    %v87 = vsel %vm77, 1, 0
    %v88 = vsel %vm78, 1, 0
    %v89 = vsel %vm79, 1, 0
    %v90 = vsel %vm80, 1, 0
    %v91 = vsel %vm81, 1, 0
    %v92 = vsel %vm82, 1, 0
    %v93 = vcvt.s32.f32 %v83
    %v94 = vcvt.s32.f32 %v84
    %v95 = vcvt.s32.f32 %v85
    %v96 = vcvt.s32.f32 %v86
    %v97 = vcvt.s32.f32 %v87
    %v98 = vcvt.s32.f32 %v88
    %v99 = vcvt.s32.f32 %v89
    %v100 = vcvt.s32.f32 %v90
    %v101 = vcvt.s32.f32 %v91
    %v102 = vcvt.s32.f32 %v92
    %v103 = vld [vmem:[%s2] sm:$0xff]
    %v104 = vld [vmem:[%s2 + $0x8] sm:$0xff]
    %vm105 = vcmask 130048
    %v107 = vsel %vm105, %v93, 0
    %v110 = vsel %vm105, %v94, 0
    %v113 = vsel %vm105, %v95, 0
    %v116 = vsel %vm105, %v96, 0
    %v119 = vsel %vm105, %v97, 0
    %v122 = vsel %vm105, %v98, 0
    %v125 = vsel %vm105, %v99, 0
    %v128 = vsel %vm105, %v100, 0
    %v131 = vsel %vm105, %v101, 0
    %v134 = vsel %vm105, %v102, 0
    %136 = vmatprep.subr.mxu0 0.0
    %137 = vmatpush1.msra.mxu0 %v103
    %138 = vmatprep.subr.mxu0 0.0
    %139 = vmatpush1.msra.mxu0 %v104
    %140 = vmatprep.subr.mxu0 0.0
    %141 = vmatpush1.msra.mxu0 0.0
    %142 = vmatprep.subr.mxu0 0.0
    %143 = vmatpush1.msra.mxu0 0.0
    %144 = vmatprep.subr.mxu0 0.0
    %145 = vmatpush1.msra.mxu0 0.0
    %146 = vmatprep.subr.mxu0 0.0
    %147 = vmatpush1.msra.mxu0 0.0
    %148 = vmatprep.subr.mxu0 0.0
    %149 = vmatpush1.msra.mxu0 0.0
    %150 = vmatprep.subr.mxu0 0.0
    %151 = vmatpush1.msra.mxu0 0.0
    %152 = vmatprep.subr.mxu0 0.0
    %153 = vmatpush1.msra.mxu0 0.0
    %154 = vmatprep.subr.mxu0 0.0
    %155 = vmatpush1.msra.mxu0 0.0
    %156 = vmatprep.subr.mxu0 0.0
    %157 = vmatpush1.msra.mxu0 0.0
    %158 = vmatprep.subr.mxu0 0.0
    %159 = vmatpush1.msra.mxu0 0.0
    %160 = vmatprep.subr.mxu0 0.0
    %161 = vmatpush1.msra.mxu0 0.0
    %162 = vmatprep.subr.mxu0 0.0
    %163 = vmatpush1.msra.mxu0 0.0
    %164 = vmatprep.subr.mxu0 0.0
    %165 = vmatpush1.msra.mxu0 0.0
    %166 = vmatprep.subr.mxu0 0.0
    %167 = vmatpush1.msra.mxu0 0.0
    %168 = vmatprep.subr.mxu0 0.0
    %169 = vmatpush1.msra.mxu0 0.0
    %170 = vmatprep.subr.mxu0 0.0
    %171 = vmatpush1.msra.mxu0 0.0
    %172 = vmatprep.subr.mxu0 0.0
    %173 = vmatpush1.msra.mxu0 0.0
    %174 = vmatprep.subr.mxu0 0.0
    %175 = vmatpush1.msra.mxu0 0.0
    %176 = vmatprep.subr.mxu0 0.0
    %177 = vmatpush1.msra.mxu0 0.0
    %178 = vmatprep.subr.mxu0 0.0
    %179 = vmatpush1.msra.mxu0 0.0
    %180 = vmatprep.subr.mxu0 0.0
    %181 = vmatpush1.msra.mxu0 0.0
    %182 = vmatprep.subr.mxu0 0.0
    %183 = vmatpush1.msra.mxu0 0.0
    %184 = vmatprep.subr.mxu0 0.0
    %185 = vmatpush1.msra.mxu0 0.0
    %186 = vmatprep.subr.mxu0 0.0
    %187 = vmatpush1.msra.mxu0 0.0
    %188 = vmatprep.subr.mxu0 0.0
    %189 = vmatpush1.msra.mxu0 0.0
    %190 = vmatprep.subr.mxu0 0.0
    %191 = vmatpush1.msra.mxu0 0.0
    %192 = vmatprep.subr.mxu0 0.0
    %193 = vmatpush1.msra.mxu0 0.0
    %194 = vmatprep.subr.mxu0 0.0
    %195 = vmatpush1.msra.mxu0 0.0
    %196 = vmatprep.subr.mxu0 0.0
    %197 = vmatpush1.msra.mxu0 0.0
    %198 = vmatprep.subr.mxu0 0.0
    %199 = vmatpush1.msra.mxu0 0.0
    %200 = vmatprep.mubr.f32.mxu0 0.0
    %201 = vmatmul.mubr.f32.gmra.mrb[0].mxu0 %v107
    %v202 = vpop.f32.mrb[0].mxu0
    %v203 = vadd.f32 0.0, %v202
    %v204 = vpop.f32.mrb[0].mxu0
    %205 = vmatprep.mubr.f32.mxu0 0.0
    %206 = vmatmul.mubr.f32.gmra.mrb[0].mxu0 %v110
    %v207 = vpop.f32.mrb[0].mxu0
    %v208 = vadd.f32 0.0, %v207
    %v209 = vpop.f32.mrb[0].mxu0
    %210 = vmatprep.mubr.f32.mxu0 0.0
    %211 = vmatmul.mubr.f32.gmra.mrb[0].mxu0 %v113
    %v212 = vpop.f32.mrb[0].mxu0
    %v213 = vadd.f32 0.0, %v212
    %v214 = vpop.f32.mrb[0].mxu0
    %215 = vmatprep.mubr.f32.mxu0 0.0
    %216 = vmatmul.mubr.f32.gmra.mrb[0].mxu0 %v116
    %v217 = vpop.f32.mrb[0].mxu0
    %v218 = vadd.f32 0.0, %v217
    %v219 = vpop.f32.mrb[0].mxu0
    %220 = vmatprep.mubr.f32.mxu0 0.0
    %221 = vmatmul.mubr.f32.gmra.mrb[0].mxu0 %v119
    %v222 = vpop.f32.mrb[0].mxu0
    %v223 = vadd.f32 0.0, %v222
    %v224 = vpop.f32.mrb[0].mxu0
    %225 = vmatprep.mubr.f32.mxu0 0.0
    %226 = vmatmul.mubr.f32.gmra.mrb[0].mxu0 %v122
    %v227 = vpop.f32.mrb[0].mxu0
    %v228 = vadd.f32 0.0, %v227
    %v229 = vpop.f32.mrb[0].mxu0
    %230 = vmatprep.mubr.f32.mxu0 0.0
    %231 = vmatmul.mubr.f32.gmra.mrb[0].mxu0 %v125
    %v232 = vpop.f32.mrb[0].mxu0
    %v233 = vadd.f32 0.0, %v232
    %v234 = vpop.f32.mrb[0].mxu0
    %235 = vmatprep.mubr.f32.mxu0 0.0
    %236 = vmatmul.mubr.f32.gmra.mrb[0].mxu0 %v128
    %v237 = vpop.f32.mrb[0].mxu0
    %v238 = vadd.f32 0.0, %v237
    %v239 = vpop.f32.mrb[0].mxu0
    %240 = vmatprep.mubr.f32.mxu0 0.0
    %241 = vmatmul.mubr.f32.gmra.mrb[0].mxu0 %v131
    %v242 = vpop.f32.mrb[0].mxu0
    %v243 = vadd.f32 0.0, %v242
    %v244 = vpop.f32.mrb[0].mxu0
    %245 = vmatprep.mubr.f32.mxu0 0.0
    %246 = vmatmul.mubr.f32.gmra.mrb[0].mxu0 %v134
    %v247 = vpop.f32.mrb[0].mxu0
    %v248 = vadd.f32 0.0, %v247
    %v249 = vpop.f32.mrb[0].mxu0
    %250 = vdwg.mxu0
    %vm251 = vcmask 785408
    %252 = vst.msk [vmem:[#allocation2] sm:$0xff] %vm251, %v203
    %253 = vst.msk [vmem:[#allocation2 + $0x8] sm:$0xff] %vm251, %v208
    %254 = vst.msk [vmem:[#allocation2 + $0x10] sm:$0xff] %vm251, %v213
    %255 = vst.msk [vmem:[#allocation2 + $0x18] sm:$0xff] %vm251, %v218
    %256 = vst.msk [vmem:[#allocation2 + $0x20] sm:$0xff] %vm251, %v223
    %257 = vst.msk [vmem:[#allocation2 + $0x28] sm:$0xff] %vm251, %v228
    %258 = vst.msk [vmem:[#allocation2 + $0x30] sm:$0xff] %vm251, %v233
    %259 = vst.msk [vmem:[#allocation2 + $0x38] sm:$0xff] %vm251, %v238
    %260 = vst.msk [vmem:[#allocation2 + $0x40] sm:$0xff] %vm251, %v243
    %261 = vst.msk [vmem:[#allocation2 + $0x48] sm:$0xff] %vm251, %v248
    %v262 = vld [vmem:[%s3] sm:$0xff]
    %v263 = vld [vmem:[%s3 + $0x8] sm:$0xff]
    %264 = vmatprep.subr.mxu0 0.0
    %265 = vmatpush1.msra.mxu0 %v262
    %266 = vmatprep.subr.mxu0 0.0
    %267 = vmatpush1.msra.mxu0 %v263
    %268 = vmatprep.subr.mxu0 0.0
    %269 = vmatpush1.msra.mxu0 0.0
    %270 = vmatprep.subr.mxu0 0.0
    %271 = vmatpush1.msra.mxu0 0.0
    %272 = vmatprep.subr.mxu0 0.0
    %273 = vmatpush1.msra.mxu0 0.0
    %274 = vmatprep.subr.mxu0 0.0
    %275 = vmatpush1.msra.mxu0 0.0
    %276 = vmatprep.subr.mxu0 0.0
    %277 = vmatpush1.msra.mxu0 0.0
    %278 = vmatprep.subr.mxu0 0.0
    %279 = vmatpush1.msra.mxu0 0.0
    %280 = vmatprep.subr.mxu0 0.0
    %281 = vmatpush1.msra.mxu0 0.0
    %282 = vmatprep.subr.mxu0 0.0
    %283 = vmatpush1.msra.mxu0 0.0
    %284 = vmatprep.subr.mxu0 0.0
    %285 = vmatpush1.msra.mxu0 0.0
    %286 = vmatprep.subr.mxu0 0.0
    %287 = vmatpush1.msra.mxu0 0.0
    %288 = vmatprep.subr.mxu0 0.0
    %289 = vmatpush1.msra.mxu0 0.0
    %290 = vmatprep.subr.mxu0 0.0
    %291 = vmatpush1.msra.mxu0 0.0
    %292 = vmatprep.subr.mxu0 0.0
    %293 = vmatpush1.msra.mxu0 0.0
    %294 = vmatprep.subr.mxu0 0.0
    %295 = vmatpush1.msra.mxu0 0.0
    %296 = vmatprep.subr.mxu0 0.0
    %297 = vmatpush1.msra.mxu0 0.0
    %298 = vmatprep.subr.mxu0 0.0
    %299 = vmatpush1.msra.mxu0 0.0
    %300 = vmatprep.subr.mxu0 0.0
    %301 = vmatpush1.msra.mxu0 0.0
    %302 = vmatprep.subr.mxu0 0.0
    %303 = vmatpush1.msra.mxu0 0.0
    %304 = vmatprep.subr.mxu0 0.0
    %305 = vmatpush1.msra.mxu0 0.0
    %306 = vmatprep.subr.mxu0 0.0
    %307 = vmatpush1.msra.mxu0 0.0
    %308 = vmatprep.subr.mxu0 0.0
    %309 = vmatpush1.msra.mxu0 0.0
    %310 = vmatprep.subr.mxu0 0.0
    %311 = vmatpush1.msra.mxu0 0.0
    %312 = vmatprep.subr.mxu0 0.0
    %313 = vmatpush1.msra.mxu0 0.0
    %314 = vmatprep.subr.mxu0 0.0
    %315 = vmatpush1.msra.mxu0 0.0
    %316 = vmatprep.subr.mxu0 0.0
    %317 = vmatpush1.msra.mxu0 0.0
    %318 = vmatprep.subr.mxu0 0.0
    %319 = vmatpush1.msra.mxu0 0.0
    %320 = vmatprep.subr.mxu0 0.0
    %321 = vmatpush1.msra.mxu0 0.0
    %322 = vmatprep.subr.mxu0 0.0
    %323 = vmatpush1.msra.mxu0 0.0
    %324 = vmatprep.subr.mxu0 0.0
    %325 = vmatpush1.msra.mxu0 0.0
    %326 = vmatprep.subr.mxu0 0.0
    %327 = vmatpush1.msra.mxu0 0.0
    %328 = vmatprep.mubr.f32.mxu0 0.0
    %329 = vmatmul.mubr.f32.gmra.mrb[0].mxu0 %v107
    %v330 = vpop.f32.mrb[0].mxu0
    %v331 = vadd.f32 0.0, %v330
    %v332 = vpop.f32.mrb[0].mxu0
    %333 = vmatprep.mubr.f32.mxu0 0.0
    %334 = vmatmul.mubr.f32.gmra.mrb[0].mxu0 %v110
    %v335 = vpop.f32.mrb[0].mxu0
    %v336 = vadd.f32 0.0, %v335
    %v337 = vpop.f32.mrb[0].mxu0
    %338 = vmatprep.mubr.f32.mxu0 0.0
    %339 = vmatmul.mubr.f32.gmra.mrb[0].mxu0 %v113
    %v340 = vpop.f32.mrb[0].mxu0
    %v341 = vadd.f32 0.0, %v340
    %v342 = vpop.f32.mrb[0].mxu0
    %343 = vmatprep.mubr.f32.mxu0 0.0
    %344 = vmatmul.mubr.f32.gmra.mrb[0].mxu0 %v116
    %v345 = vpop.f32.mrb[0].mxu0
    %v346 = vadd.f32 0.0, %v345
    %v347 = vpop.f32.mrb[0].mxu0
    %348 = vmatprep.mubr.f32.mxu0 0.0
    %349 = vmatmul.mubr.f32.gmra.mrb[0].mxu0 %v119
    %v350 = vpop.f32.mrb[0].mxu0
    %v351 = vadd.f32 0.0, %v350
    %v352 = vpop.f32.mrb[0].mxu0
    %353 = vmatprep.mubr.f32.mxu0 0.0
    %354 = vmatmul.mubr.f32.gmra.mrb[0].mxu0 %v122
    %v355 = vpop.f32.mrb[0].mxu0
    %v356 = vadd.f32 0.0, %v355
    %v357 = vpop.f32.mrb[0].mxu0
    %358 = vmatprep.mubr.f32.mxu0 0.0
    %359 = vmatmul.mubr.f32.gmra.mrb[0].mxu0 %v125
    %v360 = vpop.f32.mrb[0].mxu0
    %v361 = vadd.f32 0.0, %v360
    %v362 = vpop.f32.mrb[0].mxu0
    %363 = vmatprep.mubr.f32.mxu0 0.0
    %364 = vmatmul.mubr.f32.gmra.mrb[0].mxu0 %v128
    %v365 = vpop.f32.mrb[0].mxu0
    %v366 = vadd.f32 0.0, %v365
    %v367 = vpop.f32.mrb[0].mxu0
    %368 = vmatprep.mubr.f32.mxu0 0.0
    %369 = vmatmul.mubr.f32.gmra.mrb[0].mxu0 %v131
    %v370 = vpop.f32.mrb[0].mxu0
    %v371 = vadd.f32 0.0, %v370
    %v372 = vpop.f32.mrb[0].mxu0
    %373 = vmatprep.mubr.f32.mxu0 0.0
    %374 = vmatmul.mubr.f32.gmra.mrb[0].mxu0 %v134
    %v375 = vpop.f32.mrb[0].mxu0
    %v376 = vadd.f32 0.0, %v375
    %v377 = vpop.f32.mrb[0].mxu0
    %378 = vdwg.mxu0
    %379 = vst.msk [vmem:[#allocation3] sm:$0xff] %vm251, %v331
    %380 = vst.msk [vmem:[#allocation3 + $0x8] sm:$0xff] %vm251, %v336
    %381 = vst.msk [vmem:[#allocation3 + $0x10] sm:$0xff] %vm251, %v341
    %382 = vst.msk [vmem:[#allocation3 + $0x18] sm:$0xff] %vm251, %v346
    %383 = vst.msk [vmem:[#allocation3 + $0x20] sm:$0xff] %vm251, %v351
    %384 = vst.msk [vmem:[#allocation3 + $0x28] sm:$0xff] %vm251, %v356
    %385 = vst.msk [vmem:[#allocation3 + $0x30] sm:$0xff] %vm251, %v361
    %386 = vst.msk [vmem:[#allocation3 + $0x38] sm:$0xff] %vm251, %v366
    %387 = vst.msk [vmem:[#allocation3 + $0x40] sm:$0xff] %vm251, %v371
    %388 = vst.msk [vmem:[#allocation3 + $0x48] sm:$0xff] %vm251, %v376
    %v389 = vld [vmem:[%s4] sm:$0xff]
    %v390 = vld [vmem:[%s4 + $0x8] sm:$0xff]
    %v391 = vld [vmem:[%s4 + $0x10] sm:$0xff]
    %v392 = vld [vmem:[%s4 + $0x18] sm:$0xff]
    %v393 = vld [vmem:[%s5] sm:$0x1]
    %v394 = vld [vmem:[%s6] sm:$0xff]
    %v395 = vld [vmem:[%s6 + $0x8] sm:$0xff]
    %v396 = vld [vmem:[%s6 + $0x10] sm:$0xff]
    %v397 = vld [vmem:[%s6 + $0x18] sm:$0xff]
    %v398 = vld [vmem:[%s7] sm:$0x1]
    %v399 = vld [vmem:[#allocation2] sm:$0xff]
    %s400 = scalar_lea.vmem [#allocation3], 72
    %v401 = vld [vmem:[%s400] sm:$0xff]
    %v403 = vlaneseq
    %v404 = vshrl.u32 %v403, 7
    %v405 = vsub.s32 0, %v404
    %v406 = vrot.slane %v393, %v405
    %vm408 = vcmask 261120
    %v410 = vsel %vm408, 0.0, 0
    %412 = vmatprep.subr.mxu0 0.0
    %413 = vmatpush1.msra.mxu0 %v389
    %414 = vmatprep.subr.mxu0 0.0
    %415 = vmatpush1.msra.mxu0 %v390
    %416 = vmatprep.subr.mxu0 0.0
    %417 = vmatpush1.msra.mxu0 %v391
    %418 = vmatprep.subr.mxu0 0.0
    %419 = vmatpush1.msra.mxu0 %v392
    %420 = vmatprep.subr.mxu0 0.0
    %421 = vmatpush1.msra.mxu0 0.0
    %422 = vmatprep.subr.mxu0 0.0
    %423 = vmatpush1.msra.mxu0 0.0
    %424 = vmatprep.subr.mxu0 0.0
    %425 = vmatpush1.msra.mxu0 0.0
    %426 = vmatprep.subr.mxu0 0.0
    %427 = vmatpush1.msra.mxu0 0.0
    %428 = vmatprep.subr.mxu0 0.0
    %429 = vmatpush1.msra.mxu0 0.0
    %430 = vmatprep.subr.mxu0 0.0
    %431 = vmatpush1.msra.mxu0 0.0
    %432 = vmatprep.subr.mxu0 0.0
    %433 = vmatpush1.msra.mxu0 0.0
    %434 = vmatprep.subr.mxu0 0.0
    %435 = vmatpush1.msra.mxu0 0.0
    %436 = vmatprep.subr.mxu0 0.0
    %437 = vmatpush1.msra.mxu0 0.0
    %438 = vmatprep.subr.mxu0 0.0
    %439 = vmatpush1.msra.mxu0 0.0
    %440 = vmatprep.subr.mxu0 0.0
    %441 = vmatpush1.msra.mxu0 0.0
    %442 = vmatprep.subr.mxu0 0.0
    %443 = vmatpush1.msra.mxu0 0.0
    %444 = vmatprep.subr.mxu0 0.0
    %445 = vmatpush1.msra.mxu0 0.0
    %446 = vmatprep.subr.mxu0 0.0
    %447 = vmatpush1.msra.mxu0 0.0
    %448 = vmatprep.subr.mxu0 0.0
    %449 = vmatpush1.msra.mxu0 0.0
    %450 = vmatprep.subr.mxu0 0.0
    %451 = vmatpush1.msra.mxu0 0.0
    %452 = vmatprep.subr.mxu0 0.0
    %453 = vmatpush1.msra.mxu0 0.0
    %454 = vmatprep.subr.mxu0 0.0
    %455 = vmatpush1.msra.mxu0 0.0
    %456 = vmatprep.subr.mxu0 0.0
    %457 = vmatpush1.msra.mxu0 0.0
    %458 = vmatprep.subr.mxu0 0.0
    %459 = vmatpush1.msra.mxu0 0.0
    %460 = vmatprep.subr.mxu0 0.0
    %461 = vmatpush1.msra.mxu0 0.0
    %462 = vmatprep.subr.mxu0 0.0
    %463 = vmatpush1.msra.mxu0 0.0
    %464 = vmatprep.subr.mxu0 0.0
    %465 = vmatpush1.msra.mxu0 0.0
    %466 = vmatprep.subr.mxu0 0.0
    %467 = vmatpush1.msra.mxu0 0.0
    %468 = vmatprep.subr.mxu0 0.0
    %469 = vmatpush1.msra.mxu0 0.0
    %470 = vmatprep.subr.mxu0 0.0
    %471 = vmatpush1.msra.mxu0 0.0
    %472 = vmatprep.subr.mxu0 0.0
    %473 = vmatpush1.msra.mxu0 0.0
    %474 = vmatprep.subr.mxu0 0.0
    %475 = vmatpush1.msra.mxu0 0.0
    %476 = vmatprep.mubr.f32.mxu0 0.0
    %477 = vmatmul.mubr.f32.gmra.mrb[0].mxu0 %v410
    %v478 = vpop.f32.mrb[0].mxu0
    %v479 = vadd.f32 %v406, %v478
    %v480 = vpop.f32.mrb[0].mxu0
    %481 = vdwg.mxu0
    %v482 = vadd.f32 %v399, %v479
    %v483 = vxor.u32 %v482, 2147483648
    %v484 = vmul.f32 %v483, 1.442695
    %v485 = vpow.pop %v484
    %v486 = vadd.f32 %v485, 1.0
    %v487 = vrcp.pop %v486
    %v488 = vmul.f32 1.0, %v487
    %490 = vrot.lane.b32.xlu0 %v479, 64
    %v491 = vpop.permute.xlu0 %490
    %v493 = vmul.f32 %v488, %v491
    %495 = vrot.lane.b32.xlu0 %v493, 64
    %v496 = vpop.permute.xlu0 %495
    %v498 = vadd.f32 %v399, %v496
    %v499 = vtanh.pop %v498
    %v500 = vsub.f32 1.0, %v488
    %502 = vrot.lane.b32.xlu0 %v499, 96
    %v503 = vpop.permute.xlu0 %502
    %v505 = vmul.f32 %v500, %v503
    %v506 = vmul.f32 %v488, 0.0
    %v507 = vadd.f32 %v505, %v506
    %v509 = vlaneseq
    %v510 = vshrl.u32 %v509, 7
    %v511 = vsub.s32 0, %v510
    %v512 = vrot.slane %v398, %v511
    %514 = vmatprep.subr.mxu0 0.0
    %515 = vmatpush1.msra.mxu0 %v394
    %516 = vmatprep.subr.mxu0 0.0
    %517 = vmatpush1.msra.mxu0 %v395
    %518 = vmatprep.subr.mxu0 0.0
    %519 = vmatpush1.msra.mxu0 %v396
    %520 = vmatprep.subr.mxu0 0.0
    %521 = vmatpush1.msra.mxu0 %v397
    %522 = vmatprep.subr.mxu0 0.0
    %523 = vmatpush1.msra.mxu0 0.0
    %524 = vmatprep.subr.mxu0 0.0
    %525 = vmatpush1.msra.mxu0 0.0
    %526 = vmatprep.subr.mxu0 0.0
    %527 = vmatpush1.msra.mxu0 0.0
    %528 = vmatprep.subr.mxu0 0.0
    %529 = vmatpush1.msra.mxu0 0.0
    %530 = vmatprep.subr.mxu0 0.0
    %531 = vmatpush1.msra.mxu0 0.0
    %532 = vmatprep.subr.mxu0 0.0
    %533 = vmatpush1.msra.mxu0 0.0
    %534 = vmatprep.subr.mxu0 0.0
    %535 = vmatpush1.msra.mxu0 0.0
    %536 = vmatprep.subr.mxu0 0.0
    %537 = vmatpush1.msra.mxu0 0.0
    %538 = vmatprep.subr.mxu0 0.0
    %539 = vmatpush1.msra.mxu0 0.0
    %540 = vmatprep.subr.mxu0 0.0
    %541 = vmatpush1.msra.mxu0 0.0
    %542 = vmatprep.subr.mxu0 0.0
    %543 = vmatpush1.msra.mxu0 0.0
    %544 = vmatprep.subr.mxu0 0.0
    %545 = vmatpush1.msra.mxu0 0.0
    %546 = vmatprep.subr.mxu0 0.0
    %547 = vmatpush1.msra.mxu0 0.0
    %548 = vmatprep.subr.mxu0 0.0
    %549 = vmatpush1.msra.mxu0 0.0
    %550 = vmatprep.subr.mxu0 0.0
    %551 = vmatpush1.msra.mxu0 0.0
    %552 = vmatprep.subr.mxu0 0.0
    %553 = vmatpush1.msra.mxu0 0.0
    %554 = vmatprep.subr.mxu0 0.0
    %555 = vmatpush1.msra.mxu0 0.0
    %556 = vmatprep.subr.mxu0 0.0
    %557 = vmatpush1.msra.mxu0 0.0
    %558 = vmatprep.subr.mxu0 0.0
    %559 = vmatpush1.msra.mxu0 0.0
    %560 = vmatprep.subr.mxu0 0.0
    %561 = vmatpush1.msra.mxu0 0.0
    %562 = vmatprep.subr.mxu0 0.0
    %563 = vmatpush1.msra.mxu0 0.0
    %564 = vmatprep.subr.mxu0 0.0
    %565 = vmatpush1.msra.mxu0 0.0
    %566 = vmatprep.subr.mxu0 0.0
    %567 = vmatpush1.msra.mxu0 0.0
    %568 = vmatprep.subr.mxu0 0.0
    %569 = vmatpush1.msra.mxu0 0.0
    %570 = vmatprep.subr.mxu0 0.0
    %571 = vmatpush1.msra.mxu0 0.0
    %572 = vmatprep.subr.mxu0 0.0
    %573 = vmatpush1.msra.mxu0 0.0
    %574 = vmatprep.subr.mxu0 0.0
    %575 = vmatpush1.msra.mxu0 0.0
    %576 = vmatprep.subr.mxu0 0.0
    %577 = vmatpush1.msra.mxu0 0.0
    %578 = vmatprep.mubr.f32.mxu0 0.0
    %579 = vmatmul.mubr.f32.gmra.mrb[0].mxu0 %v410
    %v580 = vpop.f32.mrb[0].mxu0
    %v581 = vadd.f32 %v512, %v580
    %v582 = vpop.f32.mrb[0].mxu0
    %583 = vdwg.mxu0
    %v584 = vadd.f32 %v401, %v581
    %v585 = vxor.u32 %v584, 2147483648
    %v586 = vmul.f32 %v585, 1.442695
    %v587 = vpow.pop %v586
    %v588 = vadd.f32 %v587, 1.0
    %v589 = vrcp.pop %v588
    %v590 = vmul.f32 1.0, %v589
    %592 = vrot.lane.b32.xlu0 %v581, 64
    %v593 = vpop.permute.xlu0 %592
    %v595 = vmul.f32 %v590, %v593
    %597 = vrot.lane.b32.xlu0 %v595, 64
    %v598 = vpop.permute.xlu0 %597
    %v600 = vadd.f32 %v401, %v598
    %v601 = vtanh.pop %v600
    %v602 = vsub.f32 1.0, %v590
    %604 = vrot.lane.b32.xlu0 %v601, 96
    %v605 = vpop.permute.xlu0 %604
    %v607 = vmul.f32 %v602, %v605
    %v608 = vmul.f32 %v590, 0.0
    %v609 = vadd.f32 %v607, %v608
    %vm610 = vcmp.gt.s32.totalorder %v30, 0
    %v611 = vsel %vm610, 1, 0
    %v612 = vcvt.s32.f32 %v611
    %vm613 = vcmp.gt.s32.totalorder %v30, 9
    %v614 = vsel %vm613, 1, 0
    %v615 = vcvt.s32.f32 %v614
    %617 = vset.pattern.permute.xlu0 0
    %618 = vperm.xlu0 %617, %v612
    %v619 = vpop.permute.xlu0 %618
    %v621 = vmul.f32 %v619, %v507
    %v622 = vadd.f32 %v621, 0.0
    %624 = vset.pattern.permute.xlu0 0
    %625 = vperm.xlu0 %624, %v615
    %v626 = vpop.permute.xlu0 %625
    %v628 = vmul.f32 %v626, %v609
    %v629 = vadd.f32 %v628, 0.0
    %s630 = scalar_lea.vmem [#allocation2], 8
    %v631 = vld [vmem:[%s630] sm:$0xff]
    %s632 = scalar_lea.vmem [#allocation3], 64
    %v633 = vld [vmem:[%s632] sm:$0xff]
    %635 = vrot.lane.b32.xlu0 %v622, 96
    %v636 = vpop.permute.xlu0 %635
    %v637 = vsel %vm408, %v636, 0
    %639 = vmatprep.subr.mxu0 0.0
    %640 = vmatpush1.msra.mxu0 %v389
    %641 = vmatprep.subr.mxu0 0.0
    %642 = vmatpush1.msra.mxu0 %v390
    %643 = vmatprep.subr.mxu0 0.0
    %644 = vmatpush1.msra.mxu0 %v391
    %645 = vmatprep.subr.mxu0 0.0
    %646 = vmatpush1.msra.mxu0 %v392
    %647 = vmatprep.subr.mxu0 0.0
    %648 = vmatpush1.msra.mxu0 0.0
    %649 = vmatprep.subr.mxu0 0.0
    %650 = vmatpush1.msra.mxu0 0.0
    %651 = vmatprep.subr.mxu0 0.0
    %652 = vmatpush1.msra.mxu0 0.0
    %653 = vmatprep.subr.mxu0 0.0
    %654 = vmatpush1.msra.mxu0 0.0
    %655 = vmatprep.subr.mxu0 0.0
    %656 = vmatpush1.msra.mxu0 0.0
    %657 = vmatprep.subr.mxu0 0.0
    %658 = vmatpush1.msra.mxu0 0.0
    %659 = vmatprep.subr.mxu0 0.0
    %660 = vmatpush1.msra.mxu0 0.0
    %661 = vmatprep.subr.mxu0 0.0
    %662 = vmatpush1.msra.mxu0 0.0
    %663 = vmatprep.subr.mxu0 0.0
    %664 = vmatpush1.msra.mxu0 0.0
    %665 = vmatprep.subr.mxu0 0.0
    %666 = vmatpush1.msra.mxu0 0.0
    %667 = vmatprep.subr.mxu0 0.0
    %668 = vmatpush1.msra.mxu0 0.0
    %669 = vmatprep.subr.mxu0 0.0
    %670 = vmatpush1.msra.mxu0 0.0
    %671 = vmatprep.subr.mxu0 0.0
    %672 = vmatpush1.msra.mxu0 0.0
    %673 = vmatprep.subr.mxu0 0.0
    %674 = vmatpush1.msra.mxu0 0.0
    %675 = vmatprep.subr.mxu0 0.0
    %676 = vmatpush1.msra.mxu0 0.0
    %677 = vmatprep.subr.mxu0 0.0
    %678 = vmatpush1.msra.mxu0 0.0
    %679 = vmatprep.subr.mxu0 0.0
    %680 = vmatpush1.msra.mxu0 0.0
    %681 = vmatprep.subr.mxu0 0.0
    %682 = vmatpush1.msra.mxu0 0.0
    %683 = vmatprep.subr.mxu0 0.0
    %684 = vmatpush1.msra.mxu0 0.0
    %685 = vmatprep.subr.mxu0 0.0
    %686 = vmatpush1.msra.mxu0 0.0
    %687 = vmatprep.subr.mxu0 0.0
    %688 = vmatpush1.msra.mxu0 0.0
    %689 = vmatprep.subr.mxu0 0.0
    %690 = vmatpush1.msra.mxu0 0.0
    %691 = vmatprep.subr.mxu0 0.0
    %692 = vmatpush1.msra.mxu0 0.0
    %693 = vmatprep.subr.mxu0 0.0
    %694 = vmatpush1.msra.mxu0 0.0
    %695 = vmatprep.subr.mxu0 0.0
    %696 = vmatpush1.msra.mxu0 0.0
    %697 = vmatprep.subr.mxu0 0.0
    %698 = vmatpush1.msra.mxu0 0.0
    %699 = vmatprep.subr.mxu0 0.0
    %700 = vmatpush1.msra.mxu0 0.0
    %701 = vmatprep.subr.mxu0 0.0
    %702 = vmatpush1.msra.mxu0 0.0
    %703 = vmatprep.mubr.f32.mxu0 0.0
    %704 = vmatmul.mubr.f32.gmra.mrb[0].mxu0 %v637
    %v705 = vpop.f32.mrb[0].mxu0
    %v706 = vadd.f32 %v406, %v705
    %v707 = vpop.f32.mrb[0].mxu0
    %708 = vdwg.mxu0
    %v709 = vadd.f32 %v631, %v706
    %v710 = vxor.u32 %v709, 2147483648
    %v711 = vmul.f32 %v710, 1.442695
    %v712 = vpow.pop %v711
    %v713 = vadd.f32 %v712, 1.0
    %v714 = vrcp.pop %v713
    %v715 = vmul.f32 1.0, %v714
    %717 = vrot.lane.b32.xlu0 %v706, 64
    %v718 = vpop.permute.xlu0 %717
    %v720 = vmul.f32 %v715, %v718
    %722 = vrot.lane.b32.xlu0 %v720, 64
    %v723 = vpop.permute.xlu0 %722
    %v725 = vadd.f32 %v631, %v723
    %v726 = vtanh.pop %v725
    %v727 = vsub.f32 1.0, %v715
    %729 = vrot.lane.b32.xlu0 %v726, 96
    %v730 = vpop.permute.xlu0 %729
    %v732 = vmul.f32 %v727, %v730
    %v733 = vmul.f32 %v715, %v622
    %v734 = vadd.f32 %v732, %v733
    %736 = vrot.lane.b32.xlu0 %v629, 96
    %v737 = vpop.permute.xlu0 %736
    %v738 = vsel %vm408, %v737, 0
    %740 = vmatprep.subr.mxu0 0.0
    %741 = vmatpush1.msra.mxu0 %v394
    %742 = vmatprep.subr.mxu0 0.0
    %743 = vmatpush1.msra.mxu0 %v395
    %744 = vmatprep.subr.mxu0 0.0
    %745 = vmatpush1.msra.mxu0 %v396
    %746 = vmatprep.subr.mxu0 0.0
    %747 = vmatpush1.msra.mxu0 %v397
    %748 = vmatprep.subr.mxu0 0.0
    %749 = vmatpush1.msra.mxu0 0.0
    %750 = vmatprep.subr.mxu0 0.0
    %751 = vmatpush1.msra.mxu0 0.0
    %752 = vmatprep.subr.mxu0 0.0
    %753 = vmatpush1.msra.mxu0 0.0
    %754 = vmatprep.subr.mxu0 0.0
    %755 = vmatpush1.msra.mxu0 0.0
    %756 = vmatprep.subr.mxu0 0.0
    %757 = vmatpush1.msra.mxu0 0.0
    %758 = vmatprep.subr.mxu0 0.0
    %759 = vmatpush1.msra.mxu0 0.0
    %760 = vmatprep.subr.mxu0 0.0
    %761 = vmatpush1.msra.mxu0 0.0
    %762 = vmatprep.subr.mxu0 0.0
    %763 = vmatpush1.msra.mxu0 0.0
    %764 = vmatprep.subr.mxu0 0.0
    %765 = vmatpush1.msra.mxu0 0.0
    %766 = vmatprep.subr.mxu0 0.0
    %767 = vmatpush1.msra.mxu0 0.0
    %768 = vmatprep.subr.mxu0 0.0
    %769 = vmatpush1.msra.mxu0 0.0
    %770 = vmatprep.subr.mxu0 0.0
    %771 = vmatpush1.msra.mxu0 0.0
    %772 = vmatprep.subr.mxu0 0.0
    %773 = vmatpush1.msra.mxu0 0.0
    %774 = vmatprep.subr.mxu0 0.0
    %775 = vmatpush1.msra.mxu0 0.0
    %776 = vmatprep.subr.mxu0 0.0
    %777 = vmatpush1.msra.mxu0 0.0
    %778 = vmatprep.subr.mxu0 0.0
    %779 = vmatpush1.msra.mxu0 0.0
    %780 = vmatprep.subr.mxu0 0.0
    %781 = vmatpush1.msra.mxu0 0.0
    %782 = vmatprep.subr.mxu0 0.0
    %783 = vmatpush1.msra.mxu0 0.0
    %784 = vmatprep.subr.mxu0 0.0
    %785 = vmatpush1.msra.mxu0 0.0
    %786 = vmatprep.subr.mxu0 0.0
    %787 = vmatpush1.msra.mxu0 0.0
    %788 = vmatprep.subr.mxu0 0.0
    %789 = vmatpush1.msra.mxu0 0.0
    %790 = vmatprep.subr.mxu0 0.0
    %791 = vmatpush1.msra.mxu0 0.0
    %792 = vmatprep.subr.mxu0 0.0
    %793 = vmatpush1.msra.mxu0 0.0
    %794 = vmatprep.subr.mxu0 0.0
    %795 = vmatpush1.msra.mxu0 0.0
    %796 = vmatprep.subr.mxu0 0.0
    %797 = vmatpush1.msra.mxu0 0.0
    %798 = vmatprep.subr.mxu0 0.0
    %799 = vmatpush1.msra.mxu0 0.0
    %800 = vmatprep.subr.mxu0 0.0
    %801 = vmatpush1.msra.mxu0 0.0
    %802 = vmatprep.subr.mxu0 0.0
    %803 = vmatpush1.msra.mxu0 0.0
    %804 = vmatprep.mubr.f32.mxu0 0.0
    %805 = vmatmul.mubr.f32.gmra.mrb[0].mxu0 %v738
    %v806 = vpop.f32.mrb[0].mxu0
    %v807 = vadd.f32 %v512, %v806
    %v808 = vpop.f32.mrb[0].mxu0
    %809 = vdwg.mxu0
    %v810 = vadd.f32 %v633, %v807
    %v811 = vxor.u32 %v810, 2147483648
    %v812 = vmul.f32 %v811, 1.442695
    %v813 = vpow.pop %v812
    %v814 = vadd.f32 %v813, 1.0
    %v815 = vrcp.pop %v814
    %v816 = vmul.f32 1.0, %v815
    %818 = vrot.lane.b32.xlu0 %v807, 64
    %v819 = vpop.permute.xlu0 %818
    %v821 = vmul.f32 %v816, %v819
    %823 = vrot.lane.b32.xlu0 %v821, 64
    %v824 = vpop.permute.xlu0 %823
    %v826 = vadd.f32 %v633, %v824
    %v827 = vtanh.pop %v826
    %v828 = vsub.f32 1.0, %v816
    %830 = vrot.lane.b32.xlu0 %v827, 96
    %v831 = vpop.permute.xlu0 %830
    %v833 = vmul.f32 %v828, %v831
    %v834 = vmul.f32 %v816, %v629
    %v835 = vadd.f32 %v833, %v834
    %vm836 = vcmp.gt.s32.totalorder %v30, 1
    %v837 = vsel %vm836, 1, 0
    %v838 = vcvt.s32.f32 %v837
    %vm839 = vcmp.gt.s32.totalorder %v30, 8
    %v840 = vsel %vm839, 1, 0
    %v841 = vcvt.s32.f32 %v840
    %v842 = vsub.f32 %v734, %v622
    %844 = vset.pattern.permute.xlu0 0
    %845 = vperm.xlu0 %844, %v838
    %v846 = vpop.permute.xlu0 %845
    %v848 = vmul.f32 %v846, %v842
    %v849 = vadd.f32 %v622, %v848
    %v850 = vsub.f32 %v835, %v629
    %852 = vset.pattern.permute.xlu0 0
    %853 = vperm.xlu0 %852, %v841
    %v854 = vpop.permute.xlu0 %853
    %v856 = vmul.f32 %v854, %v850
    %v857 = vadd.f32 %v629, %v856
    %s858 = scalar_lea.vmem [#allocation2], 16
    %v859 = vld [vmem:[%s858] sm:$0xff]
    %s860 = scalar_lea.vmem [#allocation3], 56
    %v861 = vld [vmem:[%s860] sm:$0xff]
    %863 = vrot.lane.b32.xlu0 %v849, 96
    %v864 = vpop.permute.xlu0 %863
    %v865 = vsel %vm408, %v864, 0
    %867 = vmatprep.subr.mxu0 0.0
    %868 = vmatpush1.msra.mxu0 %v389
    %869 = vmatprep.subr.mxu0 0.0
    %870 = vmatpush1.msra.mxu0 %v390
    %871 = vmatprep.subr.mxu0 0.0
    %872 = vmatpush1.msra.mxu0 %v391
    %873 = vmatprep.subr.mxu0 0.0
    %874 = vmatpush1.msra.mxu0 %v392
    %875 = vmatprep.subr.mxu0 0.0
    %876 = vmatpush1.msra.mxu0 0.0
    %877 = vmatprep.subr.mxu0 0.0
    %878 = vmatpush1.msra.mxu0 0.0
    %879 = vmatprep.subr.mxu0 0.0
    %880 = vmatpush1.msra.mxu0 0.0
    %881 = vmatprep.subr.mxu0 0.0
    %882 = vmatpush1.msra.mxu0 0.0
    %883 = vmatprep.subr.mxu0 0.0
    %884 = vmatpush1.msra.mxu0 0.0
    %885 = vmatprep.subr.mxu0 0.0
    %886 = vmatpush1.msra.mxu0 0.0
    %887 = vmatprep.subr.mxu0 0.0
    %888 = vmatpush1.msra.mxu0 0.0
    %889 = vmatprep.subr.mxu0 0.0
    %890 = vmatpush1.msra.mxu0 0.0
    %891 = vmatprep.subr.mxu0 0.0
    %892 = vmatpush1.msra.mxu0 0.0
    %893 = vmatprep.subr.mxu0 0.0
    %894 = vmatpush1.msra.mxu0 0.0
    %895 = vmatprep.subr.mxu0 0.0
    %896 = vmatpush1.msra.mxu0 0.0
    %897 = vmatprep.subr.mxu0 0.0
    %898 = vmatpush1.msra.mxu0 0.0
    %899 = vmatprep.subr.mxu0 0.0
    %900 = vmatpush1.msra.mxu0 0.0
    %901 = vmatprep.subr.mxu0 0.0
    %902 = vmatpush1.msra.mxu0 0.0
    %903 = vmatprep.subr.mxu0 0.0
    %904 = vmatpush1.msra.mxu0 0.0
    %905 = vmatprep.subr.mxu0 0.0
    %906 = vmatpush1.msra.mxu0 0.0
    %907 = vmatprep.subr.mxu0 0.0
    %908 = vmatpush1.msra.mxu0 0.0
    %909 = vmatprep.subr.mxu0 0.0
    %910 = vmatpush1.msra.mxu0 0.0
    %911 = vmatprep.subr.mxu0 0.0
    %912 = vmatpush1.msra.mxu0 0.0
    %913 = vmatprep.subr.mxu0 0.0
    %914 = vmatpush1.msra.mxu0 0.0
    %915 = vmatprep.subr.mxu0 0.0
    %916 = vmatpush1.msra.mxu0 0.0
    %917 = vmatprep.subr.mxu0 0.0
    %918 = vmatpush1.msra.mxu0 0.0
    %919 = vmatprep.subr.mxu0 0.0
    %920 = vmatpush1.msra.mxu0 0.0
    %921 = vmatprep.subr.mxu0 0.0
    %922 = vmatpush1.msra.mxu0 0.0
    %923 = vmatprep.subr.mxu0 0.0
    %924 = vmatpush1.msra.mxu0 0.0
    %925 = vmatprep.subr.mxu0 0.0
    %926 = vmatpush1.msra.mxu0 0.0
    %927 = vmatprep.subr.mxu0 0.0
    %928 = vmatpush1.msra.mxu0 0.0
    %929 = vmatprep.subr.mxu0 0.0
    %930 = vmatpush1.msra.mxu0 0.0
    %931 = vmatprep.mubr.f32.mxu0 0.0
    %932 = vmatmul.mubr.f32.gmra.mrb[0].mxu0 %v865
    %v933 = vpop.f32.mrb[0].mxu0
    %v934 = vadd.f32 %v406, %v933
    %v935 = vpop.f32.mrb[0].mxu0
    %936 = vdwg.mxu0
    %v937 = vadd.f32 %v859, %v934
    %v938 = vxor.u32 %v937, 2147483648
    %v939 = vmul.f32 %v938, 1.442695
    %v940 = vpow.pop %v939
    %v941 = vadd.f32 %v940, 1.0
    %v942 = vrcp.pop %v941
    %v943 = vmul.f32 1.0, %v942
    %945 = vrot.lane.b32.xlu0 %v934, 64
    %v946 = vpop.permute.xlu0 %945
    %v948 = vmul.f32 %v943, %v946
    %950 = vrot.lane.b32.xlu0 %v948, 64
    %v951 = vpop.permute.xlu0 %950
    %v953 = vadd.f32 %v859, %v951
    %v954 = vtanh.pop %v953
    %v955 = vsub.f32 1.0, %v943
    %957 = vrot.lane.b32.xlu0 %v954, 96
    %v958 = vpop.permute.xlu0 %957
    %v960 = vmul.f32 %v955, %v958
    %v961 = vmul.f32 %v943, %v849
    %v962 = vadd.f32 %v960, %v961
    %964 = vrot.lane.b32.xlu0 %v857, 96
    %v965 = vpop.permute.xlu0 %964
    %v966 = vsel %vm408, %v965, 0
    %968 = vmatprep.subr.mxu0 0.0
    %969 = vmatpush1.msra.mxu0 %v394
    %970 = vmatprep.subr.mxu0 0.0
    %971 = vmatpush1.msra.mxu0 %v395
    %972 = vmatprep.subr.mxu0 0.0
    %973 = vmatpush1.msra.mxu0 %v396
    %974 = vmatprep.subr.mxu0 0.0
    %975 = vmatpush1.msra.mxu0 %v397
    %976 = vmatprep.subr.mxu0 0.0
    %977 = vmatpush1.msra.mxu0 0.0
    %978 = vmatprep.subr.mxu0 0.0
    %979 = vmatpush1.msra.mxu0 0.0
    %980 = vmatprep.subr.mxu0 0.0
    %981 = vmatpush1.msra.mxu0 0.0
    %982 = vmatprep.subr.mxu0 0.0
    %983 = vmatpush1.msra.mxu0 0.0
    %984 = vmatprep.subr.mxu0 0.0
    %985 = vmatpush1.msra.mxu0 0.0
    %986 = vmatprep.subr.mxu0 0.0
    %987 = vmatpush1.msra.mxu0 0.0
    %988 = vmatprep.subr.mxu0 0.0
    %989 = vmatpush1.msra.mxu0 0.0
    %990 = vmatprep.subr.mxu0 0.0
    %991 = vmatpush1.msra.mxu0 0.0
    %992 = vmatprep.subr.mxu0 0.0
    %993 = vmatpush1.msra.mxu0 0.0
    %994 = vmatprep.subr.mxu0 0.0
    %995 = vmatpush1.msra.mxu0 0.0
    %996 = vmatprep.subr.mxu0 0.0
    %997 = vmatpush1.msra.mxu0 0.0
    %998 = vmatprep.subr.mxu0 0.0
    %999 = vmatpush1.msra.mxu0 0.0
    %1000 = vmatprep.subr.mxu0 0.0
    %1001 = vmatpush1.msra.mxu0 0.0
    %1002 = vmatprep.subr.mxu0 0.0
    %1003 = vmatpush1.msra.mxu0 0.0
    %1004 = vmatprep.subr.mxu0 0.0
    %1005 = vmatpush1.msra.mxu0 0.0
    %1006 = vmatprep.subr.mxu0 0.0
    %1007 = vmatpush1.msra.mxu0 0.0
    %1008 = vmatprep.subr.mxu0 0.0
    %1009 = vmatpush1.msra.mxu0 0.0
    %1010 = vmatprep.subr.mxu0 0.0
    %1011 = vmatpush1.msra.mxu0 0.0
    %1012 = vmatprep.subr.mxu0 0.0
    %1013 = vmatpush1.msra.mxu0 0.0
    %1014 = vmatprep.subr.mxu0 0.0
    %1015 = vmatpush1.msra.mxu0 0.0
    %1016 = vmatprep.subr.mxu0 0.0
    %1017 = vmatpush1.msra.mxu0 0.0
    %1018 = vmatprep.subr.mxu0 0.0
    %1019 = vmatpush1.msra.mxu0 0.0
    %1020 = vmatprep.subr.mxu0 0.0
    %1021 = vmatpush1.msra.mxu0 0.0
    %1022 = vmatprep.subr.mxu0 0.0
    %1023 = vmatpush1.msra.mxu0 0.0
    %1024 = vmatprep.subr.mxu0 0.0
    %1025 = vmatpush1.msra.mxu0 0.0
    %1026 = vmatprep.subr.mxu0 0.0
    %1027 = vmatpush1.msra.mxu0 0.0
    %1028 = vmatprep.subr.mxu0 0.0
    %1029 = vmatpush1.msra.mxu0 0.0
    %1030 = vmatprep.subr.mxu0 0.0
    %1031 = vmatpush1.msra.mxu0 0.0
    %1032 = vmatprep.mubr.f32.mxu0 0.0
    %1033 = vmatmul.mubr.f32.gmra.mrb[0].mxu0 %v966
    %v1034 = vpop.f32.mrb[0].mxu0
    %v1035 = vadd.f32 %v512, %v1034
    %v1036 = vpop.f32.mrb[0].mxu0
    %1037 = vdwg.mxu0
    %v1038 = vadd.f32 %v861, %v1035
    %v1039 = vxor.u32 %v1038, 2147483648
    %v1040 = vmul.f32 %v1039, 1.442695
    %v1041 = vpow.pop %v1040
    %v1042 = vadd.f32 %v1041, 1.0
    %v1043 = vrcp.pop %v1042
    %v1044 = vmul.f32 1.0, %v1043
    %1046 = vrot.lane.b32.xlu0 %v1035, 64
    %v1047 = vpop.permute.xlu0 %1046
    %v1049 = vmul.f32 %v1044, %v1047
    %1051 = vrot.lane.b32.xlu0 %v1049, 64
    %v1052 = vpop.permute.xlu0 %1051
    %v1054 = vadd.f32 %v861, %v1052
    %v1055 = vtanh.pop %v1054
    %v1056 = vsub.f32 1.0, %v1044
    %1058 = vrot.lane.b32.xlu0 %v1055, 96
    %v1059 = vpop.permute.xlu0 %1058
    %v1061 = vmul.f32 %v1056, %v1059
    %v1062 = vmul.f32 %v1044, %v857
    %v1063 = vadd.f32 %v1061, %v1062
    %vm1064 = vcmp.gt.s32.totalorder %v30, 2
    %v1065 = vsel %vm1064, 1, 0
    %v1066 = vcvt.s32.f32 %v1065
    %vm1067 = vcmp.gt.s32.totalorder %v30, 7
    %v1068 = vsel %vm1067, 1, 0
    %v1069 = vcvt.s32.f32 %v1068
    %v1070 = vsub.f32 %v962, %v849
    %1072 = vset.pattern.permute.xlu0 0
    %1073 = vperm.xlu0 %1072, %v1066
    %v1074 = vpop.permute.xlu0 %1073
    %v1076 = vmul.f32 %v1074, %v1070
    %v1077 = vadd.f32 %v849, %v1076
    %v1078 = vsub.f32 %v1063, %v857
    %1080 = vset.pattern.permute.xlu0 0
    %1081 = vperm.xlu0 %1080, %v1069
    %v1082 = vpop.permute.xlu0 %1081
    %v1084 = vmul.f32 %v1082, %v1078
    %v1085 = vadd.f32 %v857, %v1084
    %s1086 = scalar_lea.vmem [#allocation2], 24
    %v1087 = vld [vmem:[%s1086] sm:$0xff]
    %s1088 = scalar_lea.vmem [#allocation3], 48
    %v1089 = vld [vmem:[%s1088] sm:$0xff]
    %1091 = vrot.lane.b32.xlu0 %v1077, 96
    %v1092 = vpop.permute.xlu0 %1091
    %v1093 = vsel %vm408, %v1092, 0
    %1095 = vmatprep.subr.mxu0 0.0
    %1096 = vmatpush1.msra.mxu0 %v389
    %1097 = vmatprep.subr.mxu0 0.0
    %1098 = vmatpush1.msra.mxu0 %v390
    %1099 = vmatprep.subr.mxu0 0.0
    %1100 = vmatpush1.msra.mxu0 %v391
    %1101 = vmatprep.subr.mxu0 0.0
    %1102 = vmatpush1.msra.mxu0 %v392
    %1103 = vmatprep.subr.mxu0 0.0
    %1104 = vmatpush1.msra.mxu0 0.0
    %1105 = vmatprep.subr.mxu0 0.0
    %1106 = vmatpush1.msra.mxu0 0.0
    %1107 = vmatprep.subr.mxu0 0.0
    %1108 = vmatpush1.msra.mxu0 0.0
    %1109 = vmatprep.subr.mxu0 0.0
    %1110 = vmatpush1.msra.mxu0 0.0
    %1111 = vmatprep.subr.mxu0 0.0
    %1112 = vmatpush1.msra.mxu0 0.0
    %1113 = vmatprep.subr.mxu0 0.0
    %1114 = vmatpush1.msra.mxu0 0.0
    %1115 = vmatprep.subr.mxu0 0.0
    %1116 = vmatpush1.msra.mxu0 0.0
    %1117 = vmatprep.subr.mxu0 0.0
    %1118 = vmatpush1.msra.mxu0 0.0
    %1119 = vmatprep.subr.mxu0 0.0
    %1120 = vmatpush1.msra.mxu0 0.0
    %1121 = vmatprep.subr.mxu0 0.0
    %1122 = vmatpush1.msra.mxu0 0.0
    %1123 = vmatprep.subr.mxu0 0.0
    %1124 = vmatpush1.msra.mxu0 0.0
    %1125 = vmatprep.subr.mxu0 0.0
    %1126 = vmatpush1.msra.mxu0 0.0
    %1127 = vmatprep.subr.mxu0 0.0
    %1128 = vmatpush1.msra.mxu0 0.0
    %1129 = vmatprep.subr.mxu0 0.0
    %1130 = vmatpush1.msra.mxu0 0.0
    %1131 = vmatprep.subr.mxu0 0.0
    %1132 = vmatpush1.msra.mxu0 0.0
    %1133 = vmatprep.subr.mxu0 0.0
    %1134 = vmatpush1.msra.mxu0 0.0
    %1135 = vmatprep.subr.mxu0 0.0
    %1136 = vmatpush1.msra.mxu0 0.0
    %1137 = vmatprep.subr.mxu0 0.0
    %1138 = vmatpush1.msra.mxu0 0.0
    %1139 = vmatprep.subr.mxu0 0.0
    %1140 = vmatpush1.msra.mxu0 0.0
    %1141 = vmatprep.subr.mxu0 0.0
    %1142 = vmatpush1.msra.mxu0 0.0
    %1143 = vmatprep.subr.mxu0 0.0
    %1144 = vmatpush1.msra.mxu0 0.0
    %1145 = vmatprep.subr.mxu0 0.0
    %1146 = vmatpush1.msra.mxu0 0.0
    %1147 = vmatprep.subr.mxu0 0.0
    %1148 = vmatpush1.msra.mxu0 0.0
    %1149 = vmatprep.subr.mxu0 0.0
    %1150 = vmatpush1.msra.mxu0 0.0
    %1151 = vmatprep.subr.mxu0 0.0
    %1152 = vmatpush1.msra.mxu0 0.0
    %1153 = vmatprep.subr.mxu0 0.0
    %1154 = vmatpush1.msra.mxu0 0.0
    %1155 = vmatprep.subr.mxu0 0.0
    %1156 = vmatpush1.msra.mxu0 0.0
    %1157 = vmatprep.subr.mxu0 0.0
    %1158 = vmatpush1.msra.mxu0 0.0
    %1159 = vmatprep.mubr.f32.mxu0 0.0
    %1160 = vmatmul.mubr.f32.gmra.mrb[0].mxu0 %v1093
    %v1161 = vpop.f32.mrb[0].mxu0
    %v1162 = vadd.f32 %v406, %v1161
    %v1163 = vpop.f32.mrb[0].mxu0
    %1164 = vdwg.mxu0
    %v1165 = vadd.f32 %v1087, %v1162
    %v1166 = vxor.u32 %v1165, 2147483648
    %v1167 = vmul.f32 %v1166, 1.442695
    %v1168 = vpow.pop %v1167
    %v1169 = vadd.f32 %v1168, 1.0
    %v1170 = vrcp.pop %v1169
    %v1171 = vmul.f32 1.0, %v1170
    %1173 = vrot.lane.b32.xlu0 %v1162, 64
    %v1174 = vpop.permute.xlu0 %1173
    %v1176 = vmul.f32 %v1171, %v1174
    %1178 = vrot.lane.b32.xlu0 %v1176, 64
    %v1179 = vpop.permute.xlu0 %1178
    %v1181 = vadd.f32 %v1087, %v1179
    %v1182 = vtanh.pop %v1181
    %v1183 = vsub.f32 1.0, %v1171
    %1185 = vrot.lane.b32.xlu0 %v1182, 96
    %v1186 = vpop.permute.xlu0 %1185
    %v1188 = vmul.f32 %v1183, %v1186
    %v1189 = vmul.f32 %v1171, %v1077
    %v1190 = vadd.f32 %v1188, %v1189
    %1192 = vrot.lane.b32.xlu0 %v1085, 96
    %v1193 = vpop.permute.xlu0 %1192
    %v1194 = vsel %vm408, %v1193, 0
    %1196 = vmatprep.subr.mxu0 0.0
    %1197 = vmatpush1.msra.mxu0 %v394
    %1198 = vmatprep.subr.mxu0 0.0
    %1199 = vmatpush1.msra.mxu0 %v395
    %1200 = vmatprep.subr.mxu0 0.0
    %1201 = vmatpush1.msra.mxu0 %v396
    %1202 = vmatprep.subr.mxu0 0.0
    %1203 = vmatpush1.msra.mxu0 %v397
    %1204 = vmatprep.subr.mxu0 0.0
    %1205 = vmatpush1.msra.mxu0 0.0
    %1206 = vmatprep.subr.mxu0 0.0
    %1207 = vmatpush1.msra.mxu0 0.0
    %1208 = vmatprep.subr.mxu0 0.0
    %1209 = vmatpush1.msra.mxu0 0.0
    %1210 = vmatprep.subr.mxu0 0.0
    %1211 = vmatpush1.msra.mxu0 0.0
    %1212 = vmatprep.subr.mxu0 0.0
    %1213 = vmatpush1.msra.mxu0 0.0
    %1214 = vmatprep.subr.mxu0 0.0
    %1215 = vmatpush1.msra.mxu0 0.0
    %1216 = vmatprep.subr.mxu0 0.0
    %1217 = vmatpush1.msra.mxu0 0.0
    %1218 = vmatprep.subr.mxu0 0.0
    %1219 = vmatpush1.msra.mxu0 0.0
    %1220 = vmatprep.subr.mxu0 0.0
    %1221 = vmatpush1.msra.mxu0 0.0
    %1222 = vmatprep.subr.mxu0 0.0
    %1223 = vmatpush1.msra.mxu0 0.0
    %1224 = vmatprep.subr.mxu0 0.0
    %1225 = vmatpush1.msra.mxu0 0.0
    %1226 = vmatprep.subr.mxu0 0.0
    %1227 = vmatpush1.msra.mxu0 0.0
    %1228 = vmatprep.subr.mxu0 0.0
    %1229 = vmatpush1.msra.mxu0 0.0
    %1230 = vmatprep.subr.mxu0 0.0
    %1231 = vmatpush1.msra.mxu0 0.0
    %1232 = vmatprep.subr.mxu0 0.0
    %1233 = vmatpush1.msra.mxu0 0.0
    %1234 = vmatprep.subr.mxu0 0.0
    %1235 = vmatpush1.msra.mxu0 0.0
    %1236 = vmatprep.subr.mxu0 0.0
    %1237 = vmatpush1.msra.mxu0 0.0
    %1238 = vmatprep.subr.mxu0 0.0
    %1239 = vmatpush1.msra.mxu0 0.0
    %1240 = vmatprep.subr.mxu0 0.0
    %1241 = vmatpush1.msra.mxu0 0.0
    %1242 = vmatprep.subr.mxu0 0.0
    %1243 = vmatpush1.msra.mxu0 0.0
    %1244 = vmatprep.subr.mxu0 0.0
    %1245 = vmatpush1.msra.mxu0 0.0
    %1246 = vmatprep.subr.mxu0 0.0
    %1247 = vmatpush1.msra.mxu0 0.0
    %1248 = vmatprep.subr.mxu0 0.0
    %1249 = vmatpush1.msra.mxu0 0.0
    %1250 = vmatprep.subr.mxu0 0.0
    %1251 = vmatpush1.msra.mxu0 0.0
    %1252 = vmatprep.subr.mxu0 0.0
    %1253 = vmatpush1.msra.mxu0 0.0
    %1254 = vmatprep.subr.mxu0 0.0
    %1255 = vmatpush1.msra.mxu0 0.0
    %1256 = vmatprep.subr.mxu0 0.0
    %1257 = vmatpush1.msra.mxu0 0.0
    %1258 = vmatprep.subr.mxu0 0.0
    %1259 = vmatpush1.msra.mxu0 0.0
    %1260 = vmatprep.mubr.f32.mxu0 0.0
    %1261 = vmatmul.mubr.f32.gmra.mrb[0].mxu0 %v1194
    %v1262 = vpop.f32.mrb[0].mxu0
    %v1263 = vadd.f32 %v512, %v1262
    %v1264 = vpop.f32.mrb[0].mxu0
    %1265 = vdwg.mxu0
    %v1266 = vadd.f32 %v1089, %v1263
    %v1267 = vxor.u32 %v1266, 2147483648
    %v1268 = vmul.f32 %v1267, 1.442695
    %v1269 = vpow.pop %v1268
    %v1270 = vadd.f32 %v1269, 1.0
    %v1271 = vrcp.pop %v1270
    %v1272 = vmul.f32 1.0, %v1271
    %1274 = vrot.lane.b32.xlu0 %v1263, 64
    %v1275 = vpop.permute.xlu0 %1274
    %v1277 = vmul.f32 %v1272, %v1275
    %1279 = vrot.lane.b32.xlu0 %v1277, 64
    %v1280 = vpop.permute.xlu0 %1279
    %v1282 = vadd.f32 %v1089, %v1280
    %v1283 = vtanh.pop %v1282
    %v1284 = vsub.f32 1.0, %v1272
    %1286 = vrot.lane.b32.xlu0 %v1283, 96
    %v1287 = vpop.permute.xlu0 %1286
    %v1289 = vmul.f32 %v1284, %v1287
    %v1290 = vmul.f32 %v1272, %v1085
    %v1291 = vadd.f32 %v1289, %v1290
    %vm1292 = vcmp.gt.s32.totalorder %v30, 3
    %v1293 = vsel %vm1292, 1, 0
    %v1294 = vcvt.s32.f32 %v1293
    %vm1295 = vcmp.gt.s32.totalorder %v30, 6
    %v1296 = vsel %vm1295, 1, 0
    %v1297 = vcvt.s32.f32 %v1296
    %v1298 = vsub.f32 %v1190, %v1077
    %1300 = vset.pattern.permute.xlu0 0
    %1301 = vperm.xlu0 %1300, %v1294
    %v1302 = vpop.permute.xlu0 %1301
    %v1304 = vmul.f32 %v1302, %v1298
    %v1305 = vadd.f32 %v1077, %v1304
    %v1306 = vsub.f32 %v1291, %v1085
    %1308 = vset.pattern.permute.xlu0 0
    %1309 = vperm.xlu0 %1308, %v1297
    %v1310 = vpop.permute.xlu0 %1309
    %v1312 = vmul.f32 %v1310, %v1306
    %v1313 = vadd.f32 %v1085, %v1312
    %s1314 = scalar_lea.vmem [#allocation2], 32
    %v1315 = vld [vmem:[%s1314] sm:$0xff]
    %s1316 = scalar_lea.vmem [#allocation3], 40
    %v1317 = vld [vmem:[%s1316] sm:$0xff]
    %1319 = vrot.lane.b32.xlu0 %v1305, 96
    %v1320 = vpop.permute.xlu0 %1319
    %v1321 = vsel %vm408, %v1320, 0
    %1323 = vmatprep.subr.mxu0 0.0
    %1324 = vmatpush1.msra.mxu0 %v389
    %1325 = vmatprep.subr.mxu0 0.0
    %1326 = vmatpush1.msra.mxu0 %v390
    %1327 = vmatprep.subr.mxu0 0.0
    %1328 = vmatpush1.msra.mxu0 %v391
    %1329 = vmatprep.subr.mxu0 0.0
    %1330 = vmatpush1.msra.mxu0 %v392
    %1331 = vmatprep.subr.mxu0 0.0
    %1332 = vmatpush1.msra.mxu0 0.0
    %1333 = vmatprep.subr.mxu0 0.0
    %1334 = vmatpush1.msra.mxu0 0.0
    %1335 = vmatprep.subr.mxu0 0.0
    %1336 = vmatpush1.msra.mxu0 0.0
    %1337 = vmatprep.subr.mxu0 0.0
    %1338 = vmatpush1.msra.mxu0 0.0
    %1339 = vmatprep.subr.mxu0 0.0
    %1340 = vmatpush1.msra.mxu0 0.0
    %1341 = vmatprep.subr.mxu0 0.0
    %1342 = vmatpush1.msra.mxu0 0.0
    %1343 = vmatprep.subr.mxu0 0.0
    %1344 = vmatpush1.msra.mxu0 0.0
    %1345 = vmatprep.subr.mxu0 0.0
    %1346 = vmatpush1.msra.mxu0 0.0
    %1347 = vmatprep.subr.mxu0 0.0
    %1348 = vmatpush1.msra.mxu0 0.0
    %1349 = vmatprep.subr.mxu0 0.0
    %1350 = vmatpush1.msra.mxu0 0.0
    %1351 = vmatprep.subr.mxu0 0.0
    %1352 = vmatpush1.msra.mxu0 0.0
    %1353 = vmatprep.subr.mxu0 0.0
    %1354 = vmatpush1.msra.mxu0 0.0
    %1355 = vmatprep.subr.mxu0 0.0
    %1356 = vmatpush1.msra.mxu0 0.0
    %1357 = vmatprep.subr.mxu0 0.0
    %1358 = vmatpush1.msra.mxu0 0.0
    %1359 = vmatprep.subr.mxu0 0.0
    %1360 = vmatpush1.msra.mxu0 0.0
    %1361 = vmatprep.subr.mxu0 0.0
    %1362 = vmatpush1.msra.mxu0 0.0
    %1363 = vmatprep.subr.mxu0 0.0
    %1364 = vmatpush1.msra.mxu0 0.0
    %1365 = vmatprep.subr.mxu0 0.0
    %1366 = vmatpush1.msra.mxu0 0.0
    %1367 = vmatprep.subr.mxu0 0.0
    %1368 = vmatpush1.msra.mxu0 0.0
    %1369 = vmatprep.subr.mxu0 0.0
    %1370 = vmatpush1.msra.mxu0 0.0
    %1371 = vmatprep.subr.mxu0 0.0
    %1372 = vmatpush1.msra.mxu0 0.0
    %1373 = vmatprep.subr.mxu0 0.0
    %1374 = vmatpush1.msra.mxu0 0.0
    %1375 = vmatprep.subr.mxu0 0.0
    %1376 = vmatpush1.msra.mxu0 0.0
    %1377 = vmatprep.subr.mxu0 0.0
    %1378 = vmatpush1.msra.mxu0 0.0
    %1379 = vmatprep.subr.mxu0 0.0
    %1380 = vmatpush1.msra.mxu0 0.0
    %1381 = vmatprep.subr.mxu0 0.0
    %1382 = vmatpush1.msra.mxu0 0.0
    %1383 = vmatprep.subr.mxu0 0.0
    %1384 = vmatpush1.msra.mxu0 0.0
    %1385 = vmatprep.subr.mxu0 0.0
    %1386 = vmatpush1.msra.mxu0 0.0
    %1387 = vmatprep.mubr.f32.mxu0 0.0
    %1388 = vmatmul.mubr.f32.gmra.mrb[0].mxu0 %v1321
    %v1389 = vpop.f32.mrb[0].mxu0
    %v1390 = vadd.f32 %v406, %v1389
    %v1391 = vpop.f32.mrb[0].mxu0
    %1392 = vdwg.mxu0
    %v1393 = vadd.f32 %v1315, %v1390
    %v1394 = vxor.u32 %v1393, 2147483648
    %v1395 = vmul.f32 %v1394, 1.442695
    %v1396 = vpow.pop %v1395
    %v1397 = vadd.f32 %v1396, 1.0
    %v1398 = vrcp.pop %v1397
    %v1399 = vmul.f32 1.0, %v1398
    %1401 = vrot.lane.b32.xlu0 %v1390, 64
    %v1402 = vpop.permute.xlu0 %1401
    %v1404 = vmul.f32 %v1399, %v1402
    %1406 = vrot.lane.b32.xlu0 %v1404, 64
    %v1407 = vpop.permute.xlu0 %1406
    %v1409 = vadd.f32 %v1315, %v1407
    %v1410 = vtanh.pop %v1409
    %v1411 = vsub.f32 1.0, %v1399
    %1413 = vrot.lane.b32.xlu0 %v1410, 96
    %v1414 = vpop.permute.xlu0 %1413
    %v1416 = vmul.f32 %v1411, %v1414
    %v1417 = vmul.f32 %v1399, %v1305
    %v1418 = vadd.f32 %v1416, %v1417
    %1420 = vrot.lane.b32.xlu0 %v1313, 96
    %v1421 = vpop.permute.xlu0 %1420
    %v1422 = vsel %vm408, %v1421, 0
    %1424 = vmatprep.subr.mxu0 0.0
    %1425 = vmatpush1.msra.mxu0 %v394
    %1426 = vmatprep.subr.mxu0 0.0
    %1427 = vmatpush1.msra.mxu0 %v395
    %1428 = vmatprep.subr.mxu0 0.0
    %1429 = vmatpush1.msra.mxu0 %v396
    %1430 = vmatprep.subr.mxu0 0.0
    %1431 = vmatpush1.msra.mxu0 %v397
    %1432 = vmatprep.subr.mxu0 0.0
    %1433 = vmatpush1.msra.mxu0 0.0
    %1434 = vmatprep.subr.mxu0 0.0
    %1435 = vmatpush1.msra.mxu0 0.0
    %1436 = vmatprep.subr.mxu0 0.0
    %1437 = vmatpush1.msra.mxu0 0.0
    %1438 = vmatprep.subr.mxu0 0.0
    %1439 = vmatpush1.msra.mxu0 0.0
    %1440 = vmatprep.subr.mxu0 0.0
    %1441 = vmatpush1.msra.mxu0 0.0
    %1442 = vmatprep.subr.mxu0 0.0
    %1443 = vmatpush1.msra.mxu0 0.0
    %1444 = vmatprep.subr.mxu0 0.0
    %1445 = vmatpush1.msra.mxu0 0.0
    %1446 = vmatprep.subr.mxu0 0.0
    %1447 = vmatpush1.msra.mxu0 0.0
    %1448 = vmatprep.subr.mxu0 0.0
    %1449 = vmatpush1.msra.mxu0 0.0
    %1450 = vmatprep.subr.mxu0 0.0
    %1451 = vmatpush1.msra.mxu0 0.0
    %1452 = vmatprep.subr.mxu0 0.0
    %1453 = vmatpush1.msra.mxu0 0.0
    %1454 = vmatprep.subr.mxu0 0.0
    %1455 = vmatpush1.msra.mxu0 0.0
    %1456 = vmatprep.subr.mxu0 0.0
    %1457 = vmatpush1.msra.mxu0 0.0
    %1458 = vmatprep.subr.mxu0 0.0
    %1459 = vmatpush1.msra.mxu0 0.0
    %1460 = vmatprep.subr.mxu0 0.0
    %1461 = vmatpush1.msra.mxu0 0.0
    %1462 = vmatprep.subr.mxu0 0.0
    %1463 = vmatpush1.msra.mxu0 0.0
    %1464 = vmatprep.subr.mxu0 0.0
    %1465 = vmatpush1.msra.mxu0 0.0
    %1466 = vmatprep.subr.mxu0 0.0
    %1467 = vmatpush1.msra.mxu0 0.0
    %1468 = vmatprep.subr.mxu0 0.0
    %1469 = vmatpush1.msra.mxu0 0.0
    %1470 = vmatprep.subr.mxu0 0.0
    %1471 = vmatpush1.msra.mxu0 0.0
    %1472 = vmatprep.subr.mxu0 0.0
    %1473 = vmatpush1.msra.mxu0 0.0
    %1474 = vmatprep.subr.mxu0 0.0
    %1475 = vmatpush1.msra.mxu0 0.0
    %1476 = vmatprep.subr.mxu0 0.0
    %1477 = vmatpush1.msra.mxu0 0.0
    %1478 = vmatprep.subr.mxu0 0.0
    %1479 = vmatpush1.msra.mxu0 0.0
    %1480 = vmatprep.subr.mxu0 0.0
    %1481 = vmatpush1.msra.mxu0 0.0
    %1482 = vmatprep.subr.mxu0 0.0
    %1483 = vmatpush1.msra.mxu0 0.0
    %1484 = vmatprep.subr.mxu0 0.0
    %1485 = vmatpush1.msra.mxu0 0.0
    %1486 = vmatprep.subr.mxu0 0.0
    %1487 = vmatpush1.msra.mxu0 0.0
    %1488 = vmatprep.mubr.f32.mxu0 0.0
    %1489 = vmatmul.mubr.f32.gmra.mrb[0].mxu0 %v1422
    %v1490 = vpop.f32.mrb[0].mxu0
    %v1491 = vadd.f32 %v512, %v1490
    %v1492 = vpop.f32.mrb[0].mxu0
    %1493 = vdwg.mxu0
    %v1494 = vadd.f32 %v1317, %v1491
    %v1495 = vxor.u32 %v1494, 2147483648
    %v1496 = vmul.f32 %v1495, 1.442695
    %v1497 = vpow.pop %v1496
    %v1498 = vadd.f32 %v1497, 1.0
    %v1499 = vrcp.pop %v1498
    %v1500 = vmul.f32 1.0, %v1499
    %1502 = vrot.lane.b32.xlu0 %v1491, 64
    %v1503 = vpop.permute.xlu0 %1502
    %v1505 = vmul.f32 %v1500, %v1503
    %1507 = vrot.lane.b32.xlu0 %v1505, 64
    %v1508 = vpop.permute.xlu0 %1507
    %v1510 = vadd.f32 %v1317, %v1508
    %v1511 = vtanh.pop %v1510
    %v1512 = vsub.f32 1.0, %v1500
    %1514 = vrot.lane.b32.xlu0 %v1511, 96
    %v1515 = vpop.permute.xlu0 %1514
    %v1517 = vmul.f32 %v1512, %v1515
    %v1518 = vmul.f32 %v1500, %v1313
    %v1519 = vadd.f32 %v1517, %v1518
    %vm1520 = vcmp.gt.s32.totalorder %v30, 4
    %v1521 = vsel %vm1520, 1, 0
    %v1522 = vcvt.s32.f32 %v1521
    %vm1523 = vcmp.gt.s32.totalorder %v30, 5
    %v1524 = vsel %vm1523, 1, 0
    %v1525 = vcvt.s32.f32 %v1524
    %v1526 = vsub.f32 %v1418, %v1305
    %1528 = vset.pattern.permute.xlu0 0
    %1529 = vperm.xlu0 %1528, %v1522
    %v1530 = vpop.permute.xlu0 %1529
    %v1532 = vmul.f32 %v1530, %v1526
    %v1533 = vadd.f32 %v1305, %v1532
    %v1534 = vsub.f32 %v1519, %v1313
    %1536 = vset.pattern.permute.xlu0 0
    %1537 = vperm.xlu0 %1536, %v1525
    %v1538 = vpop.permute.xlu0 %1537
    %v1540 = vmul.f32 %v1538, %v1534
    %v1541 = vadd.f32 %v1313, %v1540
    %s1542 = scalar_lea.vmem [#allocation2], 40
    %v1543 = vld [vmem:[%s1542] sm:$0xff]
    %s1544 = scalar_lea.vmem [#allocation3], 32
    %v1545 = vld [vmem:[%s1544] sm:$0xff]
    %1547 = vrot.lane.b32.xlu0 %v1533, 96
    %v1548 = vpop.permute.xlu0 %1547
    %v1549 = vsel %vm408, %v1548, 0
    %1551 = vmatprep.subr.mxu0 0.0
    %1552 = vmatpush1.msra.mxu0 %v389
    %1553 = vmatprep.subr.mxu0 0.0
    %1554 = vmatpush1.msra.mxu0 %v390
    %1555 = vmatprep.subr.mxu0 0.0
    %1556 = vmatpush1.msra.mxu0 %v391
    %1557 = vmatprep.subr.mxu0 0.0
    %1558 = vmatpush1.msra.mxu0 %v392
    %1559 = vmatprep.subr.mxu0 0.0
    %1560 = vmatpush1.msra.mxu0 0.0
    %1561 = vmatprep.subr.mxu0 0.0
    %1562 = vmatpush1.msra.mxu0 0.0
    %1563 = vmatprep.subr.mxu0 0.0
    %1564 = vmatpush1.msra.mxu0 0.0
    %1565 = vmatprep.subr.mxu0 0.0
    %1566 = vmatpush1.msra.mxu0 0.0
    %1567 = vmatprep.subr.mxu0 0.0
    %1568 = vmatpush1.msra.mxu0 0.0
    %1569 = vmatprep.subr.mxu0 0.0
    %1570 = vmatpush1.msra.mxu0 0.0
    %1571 = vmatprep.subr.mxu0 0.0
    %1572 = vmatpush1.msra.mxu0 0.0
    %1573 = vmatprep.subr.mxu0 0.0
    %1574 = vmatpush1.msra.mxu0 0.0
    %1575 = vmatprep.subr.mxu0 0.0
    %1576 = vmatpush1.msra.mxu0 0.0
    %1577 = vmatprep.subr.mxu0 0.0
    %1578 = vmatpush1.msra.mxu0 0.0
    %1579 = vmatprep.subr.mxu0 0.0
    %1580 = vmatpush1.msra.mxu0 0.0
    %1581 = vmatprep.subr.mxu0 0.0
    %1582 = vmatpush1.msra.mxu0 0.0
    %1583 = vmatprep.subr.mxu0 0.0
    %1584 = vmatpush1.msra.mxu0 0.0
    %1585 = vmatprep.subr.mxu0 0.0
    %1586 = vmatpush1.msra.mxu0 0.0
    %1587 = vmatprep.subr.mxu0 0.0
    %1588 = vmatpush1.msra.mxu0 0.0
    %1589 = vmatprep.subr.mxu0 0.0
    %1590 = vmatpush1.msra.mxu0 0.0
    %1591 = vmatprep.subr.mxu0 0.0
    %1592 = vmatpush1.msra.mxu0 0.0
    %1593 = vmatprep.subr.mxu0 0.0
    %1594 = vmatpush1.msra.mxu0 0.0
    %1595 = vmatprep.subr.mxu0 0.0
    %1596 = vmatpush1.msra.mxu0 0.0
    %1597 = vmatprep.subr.mxu0 0.0
    %1598 = vmatpush1.msra.mxu0 0.0
    %1599 = vmatprep.subr.mxu0 0.0
    %1600 = vmatpush1.msra.mxu0 0.0
    %1601 = vmatprep.subr.mxu0 0.0
    %1602 = vmatpush1.msra.mxu0 0.0
    %1603 = vmatprep.subr.mxu0 0.0
    %1604 = vmatpush1.msra.mxu0 0.0
    %1605 = vmatprep.subr.mxu0 0.0
    %1606 = vmatpush1.msra.mxu0 0.0
    %1607 = vmatprep.subr.mxu0 0.0
    %1608 = vmatpush1.msra.mxu0 0.0
    %1609 = vmatprep.subr.mxu0 0.0
    %1610 = vmatpush1.msra.mxu0 0.0
    %1611 = vmatprep.subr.mxu0 0.0
    %1612 = vmatpush1.msra.mxu0 0.0
    %1613 = vmatprep.subr.mxu0 0.0
    %1614 = vmatpush1.msra.mxu0 0.0
    %1615 = vmatprep.mubr.f32.mxu0 0.0
    %1616 = vmatmul.mubr.f32.gmra.mrb[0].mxu0 %v1549
    %v1617 = vpop.f32.mrb[0].mxu0
    %v1618 = vadd.f32 %v406, %v1617
    %v1619 = vpop.f32.mrb[0].mxu0
    %1620 = vdwg.mxu0
    %v1621 = vadd.f32 %v1543, %v1618
    %v1622 = vxor.u32 %v1621, 2147483648
    %v1623 = vmul.f32 %v1622, 1.442695
    %v1624 = vpow.pop %v1623
    %v1625 = vadd.f32 %v1624, 1.0
    %v1626 = vrcp.pop %v1625
    %v1627 = vmul.f32 1.0, %v1626
    %1629 = vrot.lane.b32.xlu0 %v1618, 64
    %v1630 = vpop.permute.xlu0 %1629
    %v1632 = vmul.f32 %v1627, %v1630
    %1634 = vrot.lane.b32.xlu0 %v1632, 64
    %v1635 = vpop.permute.xlu0 %1634
    %v1637 = vadd.f32 %v1543, %v1635
    %v1638 = vtanh.pop %v1637
    %v1639 = vsub.f32 1.0, %v1627
    %1641 = vrot.lane.b32.xlu0 %v1638, 96
    %v1642 = vpop.permute.xlu0 %1641
    %v1644 = vmul.f32 %v1639, %v1642
    %v1645 = vmul.f32 %v1627, %v1533
    %v1646 = vadd.f32 %v1644, %v1645
    %1648 = vrot.lane.b32.xlu0 %v1541, 96
    %v1649 = vpop.permute.xlu0 %1648
    %v1650 = vsel %vm408, %v1649, 0
    %1652 = vmatprep.subr.mxu0 0.0
    %1653 = vmatpush1.msra.mxu0 %v394
    %1654 = vmatprep.subr.mxu0 0.0
    %1655 = vmatpush1.msra.mxu0 %v395
    %1656 = vmatprep.subr.mxu0 0.0
    %1657 = vmatpush1.msra.mxu0 %v396
    %1658 = vmatprep.subr.mxu0 0.0
    %1659 = vmatpush1.msra.mxu0 %v397
    %1660 = vmatprep.subr.mxu0 0.0
    %1661 = vmatpush1.msra.mxu0 0.0
    %1662 = vmatprep.subr.mxu0 0.0
    %1663 = vmatpush1.msra.mxu0 0.0
    %1664 = vmatprep.subr.mxu0 0.0
    %1665 = vmatpush1.msra.mxu0 0.0
    %1666 = vmatprep.subr.mxu0 0.0
    %1667 = vmatpush1.msra.mxu0 0.0
    %1668 = vmatprep.subr.mxu0 0.0
    %1669 = vmatpush1.msra.mxu0 0.0
    %1670 = vmatprep.subr.mxu0 0.0
    %1671 = vmatpush1.msra.mxu0 0.0
    %1672 = vmatprep.subr.mxu0 0.0
    %1673 = vmatpush1.msra.mxu0 0.0
    %1674 = vmatprep.subr.mxu0 0.0
    %1675 = vmatpush1.msra.mxu0 0.0
    %1676 = vmatprep.subr.mxu0 0.0
    %1677 = vmatpush1.msra.mxu0 0.0
    %1678 = vmatprep.subr.mxu0 0.0
    %1679 = vmatpush1.msra.mxu0 0.0
    %1680 = vmatprep.subr.mxu0 0.0
    %1681 = vmatpush1.msra.mxu0 0.0
    %1682 = vmatprep.subr.mxu0 0.0
    %1683 = vmatpush1.msra.mxu0 0.0
    %1684 = vmatprep.subr.mxu0 0.0
    %1685 = vmatpush1.msra.mxu0 0.0
    %1686 = vmatprep.subr.mxu0 0.0
    %1687 = vmatpush1.msra.mxu0 0.0
    %1688 = vmatprep.subr.mxu0 0.0
    %1689 = vmatpush1.msra.mxu0 0.0
    %1690 = vmatprep.subr.mxu0 0.0
    %1691 = vmatpush1.msra.mxu0 0.0
    %1692 = vmatprep.subr.mxu0 0.0
    %1693 = vmatpush1.msra.mxu0 0.0
    %1694 = vmatprep.subr.mxu0 0.0
    %1695 = vmatpush1.msra.mxu0 0.0
    %1696 = vmatprep.subr.mxu0 0.0
    %1697 = vmatpush1.msra.mxu0 0.0
    %1698 = vmatprep.subr.mxu0 0.0
    %1699 = vmatpush1.msra.mxu0 0.0
    %1700 = vmatprep.subr.mxu0 0.0
    %1701 = vmatpush1.msra.mxu0 0.0
    %1702 = vmatprep.subr.mxu0 0.0
    %1703 = vmatpush1.msra.mxu0 0.0
    %1704 = vmatprep.subr.mxu0 0.0
    %1705 = vmatpush1.msra.mxu0 0.0
    %1706 = vmatprep.subr.mxu0 0.0
    %1707 = vmatpush1.msra.mxu0 0.0
    %1708 = vmatprep.subr.mxu0 0.0
    %1709 = vmatpush1.msra.mxu0 0.0
    %1710 = vmatprep.subr.mxu0 0.0
    %1711 = vmatpush1.msra.mxu0 0.0
    %1712 = vmatprep.subr.mxu0 0.0
    %1713 = vmatpush1.msra.mxu0 0.0
    %1714 = vmatprep.subr.mxu0 0.0
    %1715 = vmatpush1.msra.mxu0 0.0
    %1716 = vmatprep.mubr.f32.mxu0 0.0
    %1717 = vmatmul.mubr.f32.gmra.mrb[0].mxu0 %v1650
    %v1718 = vpop.f32.mrb[0].mxu0
    %v1719 = vadd.f32 %v512, %v1718
    %v1720 = vpop.f32.mrb[0].mxu0
    %1721 = vdwg.mxu0
    %v1722 = vadd.f32 %v1545, %v1719
    %v1723 = vxor.u32 %v1722, 2147483648
    %v1724 = vmul.f32 %v1723, 1.442695
    %v1725 = vpow.pop %v1724
    %v1726 = vadd.f32 %v1725, 1.0
    %v1727 = vrcp.pop %v1726
    %v1728 = vmul.f32 1.0, %v1727
    %1730 = vrot.lane.b32.xlu0 %v1719, 64
    %v1731 = vpop.permute.xlu0 %1730
    %v1733 = vmul.f32 %v1728, %v1731
    %1735 = vrot.lane.b32.xlu0 %v1733, 64
    %v1736 = vpop.permute.xlu0 %1735
    %v1738 = vadd.f32 %v1545, %v1736
    %v1739 = vtanh.pop %v1738
    %v1740 = vsub.f32 1.0, %v1728
    %1742 = vrot.lane.b32.xlu0 %v1739, 96
    %v1743 = vpop.permute.xlu0 %1742
    %v1745 = vmul.f32 %v1740, %v1743
    %v1746 = vmul.f32 %v1728, %v1541
    %v1747 = vadd.f32 %v1745, %v1746
    %v1748 = vsub.f32 %v1646, %v1533
    %v1749 = vmul.f32 %v1538, %v1748
    %v1750 = vadd.f32 %v1533, %v1749
    %v1751 = vsub.f32 %v1747, %v1541
    %v1752 = vmul.f32 %v1530, %v1751
    %v1753 = vadd.f32 %v1541, %v1752
    %s1754 = scalar_lea.vmem [#allocation2], 48
    %v1755 = vld [vmem:[%s1754] sm:$0xff]
    %s1756 = scalar_lea.vmem [#allocation3], 24
    %v1757 = vld [vmem:[%s1756] sm:$0xff]
    %1759 = vrot.lane.b32.xlu0 %v1750, 96
    %v1760 = vpop.permute.xlu0 %1759
    %v1761 = vsel %vm408, %v1760, 0
    %1763 = vmatprep.subr.mxu0 0.0
    %1764 = vmatpush1.msra.mxu0 %v389
    %1765 = vmatprep.subr.mxu0 0.0
    %1766 = vmatpush1.msra.mxu0 %v390
    %1767 = vmatprep.subr.mxu0 0.0
    %1768 = vmatpush1.msra.mxu0 %v391
    %1769 = vmatprep.subr.mxu0 0.0
    %1770 = vmatpush1.msra.mxu0 %v392
    %1771 = vmatprep.subr.mxu0 0.0
    %1772 = vmatpush1.msra.mxu0 0.0
    %1773 = vmatprep.subr.mxu0 0.0
    %1774 = vmatpush1.msra.mxu0 0.0
    %1775 = vmatprep.subr.mxu0 0.0
    %1776 = vmatpush1.msra.mxu0 0.0
    %1777 = vmatprep.subr.mxu0 0.0
    %1778 = vmatpush1.msra.mxu0 0.0
    %1779 = vmatprep.subr.mxu0 0.0
    %1780 = vmatpush1.msra.mxu0 0.0
    %1781 = vmatprep.subr.mxu0 0.0
    %1782 = vmatpush1.msra.mxu0 0.0
    %1783 = vmatprep.subr.mxu0 0.0
    %1784 = vmatpush1.msra.mxu0 0.0
    %1785 = vmatprep.subr.mxu0 0.0
    %1786 = vmatpush1.msra.mxu0 0.0
    %1787 = vmatprep.subr.mxu0 0.0
    %1788 = vmatpush1.msra.mxu0 0.0
    %1789 = vmatprep.subr.mxu0 0.0
    %1790 = vmatpush1.msra.mxu0 0.0
    %1791 = vmatprep.subr.mxu0 0.0
    %1792 = vmatpush1.msra.mxu0 0.0
    %1793 = vmatprep.subr.mxu0 0.0
    %1794 = vmatpush1.msra.mxu0 0.0
    %1795 = vmatprep.subr.mxu0 0.0
    %1796 = vmatpush1.msra.mxu0 0.0
    %1797 = vmatprep.subr.mxu0 0.0
    %1798 = vmatpush1.msra.mxu0 0.0
    %1799 = vmatprep.subr.mxu0 0.0
    %1800 = vmatpush1.msra.mxu0 0.0
    %1801 = vmatprep.subr.mxu0 0.0
    %1802 = vmatpush1.msra.mxu0 0.0
    %1803 = vmatprep.subr.mxu0 0.0
    %1804 = vmatpush1.msra.mxu0 0.0
    %1805 = vmatprep.subr.mxu0 0.0
    %1806 = vmatpush1.msra.mxu0 0.0
    %1807 = vmatprep.subr.mxu0 0.0
    %1808 = vmatpush1.msra.mxu0 0.0
    %1809 = vmatprep.subr.mxu0 0.0
    %1810 = vmatpush1.msra.mxu0 0.0
    %1811 = vmatprep.subr.mxu0 0.0
    %1812 = vmatpush1.msra.mxu0 0.0
    %1813 = vmatprep.subr.mxu0 0.0
    %1814 = vmatpush1.msra.mxu0 0.0
    %1815 = vmatprep.subr.mxu0 0.0
    %1816 = vmatpush1.msra.mxu0 0.0
    %1817 = vmatprep.subr.mxu0 0.0
    %1818 = vmatpush1.msra.mxu0 0.0
    %1819 = vmatprep.subr.mxu0 0.0
    %1820 = vmatpush1.msra.mxu0 0.0
    %1821 = vmatprep.subr.mxu0 0.0
    %1822 = vmatpush1.msra.mxu0 0.0
    %1823 = vmatprep.subr.mxu0 0.0
    %1824 = vmatpush1.msra.mxu0 0.0
    %1825 = vmatprep.subr.mxu0 0.0
    %1826 = vmatpush1.msra.mxu0 0.0
    %1827 = vmatprep.mubr.f32.mxu0 0.0
    %1828 = vmatmul.mubr.f32.gmra.mrb[0].mxu0 %v1761
    %v1829 = vpop.f32.mrb[0].mxu0
    %v1830 = vadd.f32 %v406, %v1829
    %v1831 = vpop.f32.mrb[0].mxu0
    %1832 = vdwg.mxu0
    %v1833 = vadd.f32 %v1755, %v1830
    %v1834 = vxor.u32 %v1833, 2147483648
    %v1835 = vmul.f32 %v1834, 1.442695
    %v1836 = vpow.pop %v1835
    %v1837 = vadd.f32 %v1836, 1.0
    %v1838 = vrcp.pop %v1837
    %v1839 = vmul.f32 1.0, %v1838
    %1841 = vrot.lane.b32.xlu0 %v1830, 64
    %v1842 = vpop.permute.xlu0 %1841
    %v1844 = vmul.f32 %v1839, %v1842
    %1846 = vrot.lane.b32.xlu0 %v1844, 64
    %v1847 = vpop.permute.xlu0 %1846
    %v1849 = vadd.f32 %v1755, %v1847
    %v1850 = vtanh.pop %v1849
    %v1851 = vsub.f32 1.0, %v1839
    %1853 = vrot.lane.b32.xlu0 %v1850, 96
    %v1854 = vpop.permute.xlu0 %1853
    %v1856 = vmul.f32 %v1851, %v1854
    %v1857 = vmul.f32 %v1839, %v1750
    %v1858 = vadd.f32 %v1856, %v1857
    %1860 = vrot.lane.b32.xlu0 %v1753, 96
    %v1861 = vpop.permute.xlu0 %1860
    %v1862 = vsel %vm408, %v1861, 0
    %1864 = vmatprep.subr.mxu0 0.0
    %1865 = vmatpush1.msra.mxu0 %v394
    %1866 = vmatprep.subr.mxu0 0.0
    %1867 = vmatpush1.msra.mxu0 %v395
    %1868 = vmatprep.subr.mxu0 0.0
    %1869 = vmatpush1.msra.mxu0 %v396
    %1870 = vmatprep.subr.mxu0 0.0
    %1871 = vmatpush1.msra.mxu0 %v397
    %1872 = vmatprep.subr.mxu0 0.0
    %1873 = vmatpush1.msra.mxu0 0.0
    %1874 = vmatprep.subr.mxu0 0.0
    %1875 = vmatpush1.msra.mxu0 0.0
    %1876 = vmatprep.subr.mxu0 0.0
    %1877 = vmatpush1.msra.mxu0 0.0
    %1878 = vmatprep.subr.mxu0 0.0
    %1879 = vmatpush1.msra.mxu0 0.0
    %1880 = vmatprep.subr.mxu0 0.0
    %1881 = vmatpush1.msra.mxu0 0.0
    %1882 = vmatprep.subr.mxu0 0.0
    %1883 = vmatpush1.msra.mxu0 0.0
    %1884 = vmatprep.subr.mxu0 0.0
    %1885 = vmatpush1.msra.mxu0 0.0
    %1886 = vmatprep.subr.mxu0 0.0
    %1887 = vmatpush1.msra.mxu0 0.0
    %1888 = vmatprep.subr.mxu0 0.0
    %1889 = vmatpush1.msra.mxu0 0.0
    %1890 = vmatprep.subr.mxu0 0.0
    %1891 = vmatpush1.msra.mxu0 0.0
    %1892 = vmatprep.subr.mxu0 0.0
    %1893 = vmatpush1.msra.mxu0 0.0
    %1894 = vmatprep.subr.mxu0 0.0
    %1895 = vmatpush1.msra.mxu0 0.0
    %1896 = vmatprep.subr.mxu0 0.0
    %1897 = vmatpush1.msra.mxu0 0.0
    %1898 = vmatprep.subr.mxu0 0.0
    %1899 = vmatpush1.msra.mxu0 0.0
    %1900 = vmatprep.subr.mxu0 0.0
    %1901 = vmatpush1.msra.mxu0 0.0
    %1902 = vmatprep.subr.mxu0 0.0
    %1903 = vmatpush1.msra.mxu0 0.0
    %1904 = vmatprep.subr.mxu0 0.0
    %1905 = vmatpush1.msra.mxu0 0.0
    %1906 = vmatprep.subr.mxu0 0.0
    %1907 = vmatpush1.msra.mxu0 0.0
    %1908 = vmatprep.subr.mxu0 0.0
    %1909 = vmatpush1.msra.mxu0 0.0
    %1910 = vmatprep.subr.mxu0 0.0
    %1911 = vmatpush1.msra.mxu0 0.0
    %1912 = vmatprep.subr.mxu0 0.0
    %1913 = vmatpush1.msra.mxu0 0.0
    %1914 = vmatprep.subr.mxu0 0.0
    %1915 = vmatpush1.msra.mxu0 0.0
    %1916 = vmatprep.subr.mxu0 0.0
    %1917 = vmatpush1.msra.mxu0 0.0
    %1918 = vmatprep.subr.mxu0 0.0
    %1919 = vmatpush1.msra.mxu0 0.0
    %1920 = vmatprep.subr.mxu0 0.0
    %1921 = vmatpush1.msra.mxu0 0.0
    %1922 = vmatprep.subr.mxu0 0.0
    %1923 = vmatpush1.msra.mxu0 0.0
    %1924 = vmatprep.subr.mxu0 0.0
    %1925 = vmatpush1.msra.mxu0 0.0
    %1926 = vmatprep.subr.mxu0 0.0
    %1927 = vmatpush1.msra.mxu0 0.0
    %1928 = vmatprep.mubr.f32.mxu0 0.0
    %1929 = vmatmul.mubr.f32.gmra.mrb[0].mxu0 %v1862
    %v1930 = vpop.f32.mrb[0].mxu0
    %v1931 = vadd.f32 %v512, %v1930
    %v1932 = vpop.f32.mrb[0].mxu0
    %1933 = vdwg.mxu0
    %v1934 = vadd.f32 %v1757, %v1931
    %v1935 = vxor.u32 %v1934, 2147483648
    %v1936 = vmul.f32 %v1935, 1.442695
    %v1937 = vpow.pop %v1936
    %v1938 = vadd.f32 %v1937, 1.0
    %v1939 = vrcp.pop %v1938
    %v1940 = vmul.f32 1.0, %v1939
    %1942 = vrot.lane.b32.xlu0 %v1931, 64
    %v1943 = vpop.permute.xlu0 %1942
    %v1945 = vmul.f32 %v1940, %v1943
    %1947 = vrot.lane.b32.xlu0 %v1945, 64
    %v1948 = vpop.permute.xlu0 %1947
    %v1950 = vadd.f32 %v1757, %v1948
    %v1951 = vtanh.pop %v1950
    %v1952 = vsub.f32 1.0, %v1940
    %1954 = vrot.lane.b32.xlu0 %v1951, 96
    %v1955 = vpop.permute.xlu0 %1954
    %v1957 = vmul.f32 %v1952, %v1955
    %v1958 = vmul.f32 %v1940, %v1753
    %v1959 = vadd.f32 %v1957, %v1958
    %v1960 = vsub.f32 %v1858, %v1750
    %v1961 = vmul.f32 %v1310, %v1960
    %v1962 = vadd.f32 %v1750, %v1961
    %v1963 = vsub.f32 %v1959, %v1753
    %v1964 = vmul.f32 %v1302, %v1963
    %v1965 = vadd.f32 %v1753, %v1964
    %s1966 = scalar_lea.vmem [#allocation2], 56
    %v1967 = vld [vmem:[%s1966] sm:$0xff]
    %s1968 = scalar_lea.vmem [#allocation3], 16
    %v1969 = vld [vmem:[%s1968] sm:$0xff]
    %1971 = vrot.lane.b32.xlu0 %v1962, 96
    %v1972 = vpop.permute.xlu0 %1971
    %v1973 = vsel %vm408, %v1972, 0
    %1975 = vmatprep.subr.mxu0 0.0
    %1976 = vmatpush1.msra.mxu0 %v389
    %1977 = vmatprep.subr.mxu0 0.0
    %1978 = vmatpush1.msra.mxu0 %v390
    %1979 = vmatprep.subr.mxu0 0.0
    %1980 = vmatpush1.msra.mxu0 %v391
    %1981 = vmatprep.subr.mxu0 0.0
    %1982 = vmatpush1.msra.mxu0 %v392
    %1983 = vmatprep.subr.mxu0 0.0
    %1984 = vmatpush1.msra.mxu0 0.0
    %1985 = vmatprep.subr.mxu0 0.0
    %1986 = vmatpush1.msra.mxu0 0.0
    %1987 = vmatprep.subr.mxu0 0.0
    %1988 = vmatpush1.msra.mxu0 0.0
    %1989 = vmatprep.subr.mxu0 0.0
    %1990 = vmatpush1.msra.mxu0 0.0
    %1991 = vmatprep.subr.mxu0 0.0
    %1992 = vmatpush1.msra.mxu0 0.0
    %1993 = vmatprep.subr.mxu0 0.0
    %1994 = vmatpush1.msra.mxu0 0.0
    %1995 = vmatprep.subr.mxu0 0.0
    %1996 = vmatpush1.msra.mxu0 0.0
    %1997 = vmatprep.subr.mxu0 0.0
    %1998 = vmatpush1.msra.mxu0 0.0
    %1999 = vmatprep.subr.mxu0 0.0
    %2000 = vmatpush1.msra.mxu0 0.0
    %2001 = vmatprep.subr.mxu0 0.0
    %2002 = vmatpush1.msra.mxu0 0.0
    %2003 = vmatprep.subr.mxu0 0.0
    %2004 = vmatpush1.msra.mxu0 0.0
    %2005 = vmatprep.subr.mxu0 0.0
    %2006 = vmatpush1.msra.mxu0 0.0
    %2007 = vmatprep.subr.mxu0 0.0
    %2008 = vmatpush1.msra.mxu0 0.0
    %2009 = vmatprep.subr.mxu0 0.0
    %2010 = vmatpush1.msra.mxu0 0.0
    %2011 = vmatprep.subr.mxu0 0.0
    %2012 = vmatpush1.msra.mxu0 0.0
    %2013 = vmatprep.subr.mxu0 0.0
    %2014 = vmatpush1.msra.mxu0 0.0
    %2015 = vmatprep.subr.mxu0 0.0
    %2016 = vmatpush1.msra.mxu0 0.0
    %2017 = vmatprep.subr.mxu0 0.0
    %2018 = vmatpush1.msra.mxu0 0.0
    %2019 = vmatprep.subr.mxu0 0.0
    %2020 = vmatpush1.msra.mxu0 0.0
    %2021 = vmatprep.subr.mxu0 0.0
    %2022 = vmatpush1.msra.mxu0 0.0
    %2023 = vmatprep.subr.mxu0 0.0
    %2024 = vmatpush1.msra.mxu0 0.0
    %2025 = vmatprep.subr.mxu0 0.0
    %2026 = vmatpush1.msra.mxu0 0.0
    %2027 = vmatprep.subr.mxu0 0.0
    %2028 = vmatpush1.msra.mxu0 0.0
    %2029 = vmatprep.subr.mxu0 0.0
    %2030 = vmatpush1.msra.mxu0 0.0
    %2031 = vmatprep.subr.mxu0 0.0
    %2032 = vmatpush1.msra.mxu0 0.0
    %2033 = vmatprep.subr.mxu0 0.0
    %2034 = vmatpush1.msra.mxu0 0.0
    %2035 = vmatprep.subr.mxu0 0.0
    %2036 = vmatpush1.msra.mxu0 0.0
    %2037 = vmatprep.subr.mxu0 0.0
    %2038 = vmatpush1.msra.mxu0 0.0
    %2039 = vmatprep.mubr.f32.mxu0 0.0
    %2040 = vmatmul.mubr.f32.gmra.mrb[0].mxu0 %v1973
    %v2041 = vpop.f32.mrb[0].mxu0
    %v2042 = vadd.f32 %v406, %v2041
    %v2043 = vpop.f32.mrb[0].mxu0
    %2044 = vdwg.mxu0
    %v2045 = vadd.f32 %v1967, %v2042
    %v2046 = vxor.u32 %v2045, 2147483648
    %v2047 = vmul.f32 %v2046, 1.442695
    %v2048 = vpow.pop %v2047
    %v2049 = vadd.f32 %v2048, 1.0
    %v2050 = vrcp.pop %v2049
    %v2051 = vmul.f32 1.0, %v2050
    %2053 = vrot.lane.b32.xlu0 %v2042, 64
    %v2054 = vpop.permute.xlu0 %2053
    %v2056 = vmul.f32 %v2051, %v2054
    %2058 = vrot.lane.b32.xlu0 %v2056, 64
    %v2059 = vpop.permute.xlu0 %2058
    %v2061 = vadd.f32 %v1967, %v2059
    %v2062 = vtanh.pop %v2061
    %v2063 = vsub.f32 1.0, %v2051
    %2065 = vrot.lane.b32.xlu0 %v2062, 96
    %v2066 = vpop.permute.xlu0 %2065
    %v2068 = vmul.f32 %v2063, %v2066
    %v2069 = vmul.f32 %v2051, %v1962
    %v2070 = vadd.f32 %v2068, %v2069
    %2072 = vrot.lane.b32.xlu0 %v1965, 96
    %v2073 = vpop.permute.xlu0 %2072
    %v2074 = vsel %vm408, %v2073, 0
    %2076 = vmatprep.subr.mxu0 0.0
    %2077 = vmatpush1.msra.mxu0 %v394
    %2078 = vmatprep.subr.mxu0 0.0
    %2079 = vmatpush1.msra.mxu0 %v395
    %2080 = vmatprep.subr.mxu0 0.0
    %2081 = vmatpush1.msra.mxu0 %v396
    %2082 = vmatprep.subr.mxu0 0.0
    %2083 = vmatpush1.msra.mxu0 %v397
    %2084 = vmatprep.subr.mxu0 0.0
    %2085 = vmatpush1.msra.mxu0 0.0
    %2086 = vmatprep.subr.mxu0 0.0
    %2087 = vmatpush1.msra.mxu0 0.0
    %2088 = vmatprep.subr.mxu0 0.0
    %2089 = vmatpush1.msra.mxu0 0.0
    %2090 = vmatprep.subr.mxu0 0.0
    %2091 = vmatpush1.msra.mxu0 0.0
    %2092 = vmatprep.subr.mxu0 0.0
    %2093 = vmatpush1.msra.mxu0 0.0
    %2094 = vmatprep.subr.mxu0 0.0
    %2095 = vmatpush1.msra.mxu0 0.0
    %2096 = vmatprep.subr.mxu0 0.0
    %2097 = vmatpush1.msra.mxu0 0.0
    %2098 = vmatprep.subr.mxu0 0.0
    %2099 = vmatpush1.msra.mxu0 0.0
    %2100 = vmatprep.subr.mxu0 0.0
    %2101 = vmatpush1.msra.mxu0 0.0
    %2102 = vmatprep.subr.mxu0 0.0
    %2103 = vmatpush1.msra.mxu0 0.0
    %2104 = vmatprep.subr.mxu0 0.0
    %2105 = vmatpush1.msra.mxu0 0.0
    %2106 = vmatprep.subr.mxu0 0.0
    %2107 = vmatpush1.msra.mxu0 0.0
    %2108 = vmatprep.subr.mxu0 0.0
    %2109 = vmatpush1.msra.mxu0 0.0
    %2110 = vmatprep.subr.mxu0 0.0
    %2111 = vmatpush1.msra.mxu0 0.0
    %2112 = vmatprep.subr.mxu0 0.0
    %2113 = vmatpush1.msra.mxu0 0.0
    %2114 = vmatprep.subr.mxu0 0.0
    %2115 = vmatpush1.msra.mxu0 0.0
    %2116 = vmatprep.subr.mxu0 0.0
    %2117 = vmatpush1.msra.mxu0 0.0
    %2118 = vmatprep.subr.mxu0 0.0
    %2119 = vmatpush1.msra.mxu0 0.0
    %2120 = vmatprep.subr.mxu0 0.0
    %2121 = vmatpush1.msra.mxu0 0.0
    %2122 = vmatprep.subr.mxu0 0.0
    %2123 = vmatpush1.msra.mxu0 0.0
    %2124 = vmatprep.subr.mxu0 0.0
    %2125 = vmatpush1.msra.mxu0 0.0
    %2126 = vmatprep.subr.mxu0 0.0
    %2127 = vmatpush1.msra.mxu0 0.0
    %2128 = vmatprep.subr.mxu0 0.0
    %2129 = vmatpush1.msra.mxu0 0.0
    %2130 = vmatprep.subr.mxu0 0.0
    %2131 = vmatpush1.msra.mxu0 0.0
    %2132 = vmatprep.subr.mxu0 0.0
    %2133 = vmatpush1.msra.mxu0 0.0
    %2134 = vmatprep.subr.mxu0 0.0
    %2135 = vmatpush1.msra.mxu0 0.0
    %2136 = vmatprep.subr.mxu0 0.0
    %2137 = vmatpush1.msra.mxu0 0.0
    %2138 = vmatprep.subr.mxu0 0.0
    %2139 = vmatpush1.msra.mxu0 0.0
    %2140 = vmatprep.mubr.f32.mxu0 0.0
    %2141 = vmatmul.mubr.f32.gmra.mrb[0].mxu0 %v2074
    %v2142 = vpop.f32.mrb[0].mxu0
    %v2143 = vadd.f32 %v512, %v2142
    %v2144 = vpop.f32.mrb[0].mxu0
    %2145 = vdwg.mxu0
    %v2146 = vadd.f32 %v1969, %v2143
    %v2147 = vxor.u32 %v2146, 2147483648
    %v2148 = vmul.f32 %v2147, 1.442695
    %v2149 = vpow.pop %v2148
    %v2150 = vadd.f32 %v2149, 1.0
    %v2151 = vrcp.pop %v2150
    %v2152 = vmul.f32 1.0, %v2151
    %2154 = vrot.lane.b32.xlu0 %v2143, 64
    %v2155 = vpop.permute.xlu0 %2154
    %v2157 = vmul.f32 %v2152, %v2155
    %2159 = vrot.lane.b32.xlu0 %v2157, 64
    %v2160 = vpop.permute.xlu0 %2159
    %v2162 = vadd.f32 %v1969, %v2160
    %v2163 = vtanh.pop %v2162
    %v2164 = vsub.f32 1.0, %v2152
    %2166 = vrot.lane.b32.xlu0 %v2163, 96
    %v2167 = vpop.permute.xlu0 %2166
    %v2169 = vmul.f32 %v2164, %v2167
    %v2170 = vmul.f32 %v2152, %v1965
    %v2171 = vadd.f32 %v2169, %v2170
    %v2172 = vsub.f32 %v2070, %v1962
    %v2173 = vmul.f32 %v1082, %v2172
    %v2174 = vadd.f32 %v1962, %v2173
    %v2175 = vsub.f32 %v2171, %v1965
    %v2176 = vmul.f32 %v1074, %v2175
    %v2177 = vadd.f32 %v1965, %v2176
    %s2178 = scalar_lea.vmem [#allocation2], 64
    %v2179 = vld [vmem:[%s2178] sm:$0xff]
    %s2180 = scalar_lea.vmem [#allocation3], 8
    %v2181 = vld [vmem:[%s2180] sm:$0xff]
    %2183 = vrot.lane.b32.xlu0 %v2174, 96
    %v2184 = vpop.permute.xlu0 %2183
    %v2185 = vsel %vm408, %v2184, 0
    %2187 = vmatprep.subr.mxu0 0.0
    %2188 = vmatpush1.msra.mxu0 %v389
    %2189 = vmatprep.subr.mxu0 0.0
    %2190 = vmatpush1.msra.mxu0 %v390
    %2191 = vmatprep.subr.mxu0 0.0
    %2192 = vmatpush1.msra.mxu0 %v391
    %2193 = vmatprep.subr.mxu0 0.0
    %2194 = vmatpush1.msra.mxu0 %v392
    %2195 = vmatprep.subr.mxu0 0.0
    %2196 = vmatpush1.msra.mxu0 0.0
    %2197 = vmatprep.subr.mxu0 0.0
    %2198 = vmatpush1.msra.mxu0 0.0
    %2199 = vmatprep.subr.mxu0 0.0
    %2200 = vmatpush1.msra.mxu0 0.0
    %2201 = vmatprep.subr.mxu0 0.0
    %2202 = vmatpush1.msra.mxu0 0.0
    %2203 = vmatprep.subr.mxu0 0.0
    %2204 = vmatpush1.msra.mxu0 0.0
    %2205 = vmatprep.subr.mxu0 0.0
    %2206 = vmatpush1.msra.mxu0 0.0
    %2207 = vmatprep.subr.mxu0 0.0
    %2208 = vmatpush1.msra.mxu0 0.0
    %2209 = vmatprep.subr.mxu0 0.0
    %2210 = vmatpush1.msra.mxu0 0.0
    %2211 = vmatprep.subr.mxu0 0.0
    %2212 = vmatpush1.msra.mxu0 0.0
    %2213 = vmatprep.subr.mxu0 0.0
    %2214 = vmatpush1.msra.mxu0 0.0
    %2215 = vmatprep.subr.mxu0 0.0
    %2216 = vmatpush1.msra.mxu0 0.0
    %2217 = vmatprep.subr.mxu0 0.0
    %2218 = vmatpush1.msra.mxu0 0.0
    %2219 = vmatprep.subr.mxu0 0.0
    %2220 = vmatpush1.msra.mxu0 0.0
    %2221 = vmatprep.subr.mxu0 0.0
    %2222 = vmatpush1.msra.mxu0 0.0
    %2223 = vmatprep.subr.mxu0 0.0
    %2224 = vmatpush1.msra.mxu0 0.0
    %2225 = vmatprep.subr.mxu0 0.0
    %2226 = vmatpush1.msra.mxu0 0.0
    %2227 = vmatprep.subr.mxu0 0.0
    %2228 = vmatpush1.msra.mxu0 0.0
    %2229 = vmatprep.subr.mxu0 0.0
    %2230 = vmatpush1.msra.mxu0 0.0
    %2231 = vmatprep.subr.mxu0 0.0
    %2232 = vmatpush1.msra.mxu0 0.0
    %2233 = vmatprep.subr.mxu0 0.0
    %2234 = vmatpush1.msra.mxu0 0.0
    %2235 = vmatprep.subr.mxu0 0.0
    %2236 = vmatpush1.msra.mxu0 0.0
    %2237 = vmatprep.subr.mxu0 0.0
    %2238 = vmatpush1.msra.mxu0 0.0
    %2239 = vmatprep.subr.mxu0 0.0
    %2240 = vmatpush1.msra.mxu0 0.0
    %2241 = vmatprep.subr.mxu0 0.0
    %2242 = vmatpush1.msra.mxu0 0.0
    %2243 = vmatprep.subr.mxu0 0.0
    %2244 = vmatpush1.msra.mxu0 0.0
    %2245 = vmatprep.subr.mxu0 0.0
    %2246 = vmatpush1.msra.mxu0 0.0
    %2247 = vmatprep.subr.mxu0 0.0
    %2248 = vmatpush1.msra.mxu0 0.0
    %2249 = vmatprep.subr.mxu0 0.0
    %2250 = vmatpush1.msra.mxu0 0.0
    %2251 = vmatprep.mubr.f32.mxu0 0.0
    %2252 = vmatmul.mubr.f32.gmra.mrb[0].mxu0 %v2185
    %v2253 = vpop.f32.mrb[0].mxu0
    %v2254 = vadd.f32 %v406, %v2253
    %v2255 = vpop.f32.mrb[0].mxu0
    %2256 = vdwg.mxu0
    %v2257 = vadd.f32 %v2179, %v2254
    %v2258 = vxor.u32 %v2257, 2147483648
    %v2259 = vmul.f32 %v2258, 1.442695
    %v2260 = vpow.pop %v2259
    %v2261 = vadd.f32 %v2260, 1.0
    %v2262 = vrcp.pop %v2261
    %v2263 = vmul.f32 1.0, %v2262
    %2265 = vrot.lane.b32.xlu0 %v2254, 64
    %v2266 = vpop.permute.xlu0 %2265
    %v2268 = vmul.f32 %v2263, %v2266
    %2270 = vrot.lane.b32.xlu0 %v2268, 64
    %v2271 = vpop.permute.xlu0 %2270
    %v2273 = vadd.f32 %v2179, %v2271
    %v2274 = vtanh.pop %v2273
    %v2275 = vsub.f32 1.0, %v2263
    %2277 = vrot.lane.b32.xlu0 %v2274, 96
    %v2278 = vpop.permute.xlu0 %2277
    %v2280 = vmul.f32 %v2275, %v2278
    %v2281 = vmul.f32 %v2263, %v2174
    %v2282 = vadd.f32 %v2280, %v2281
    %2284 = vrot.lane.b32.xlu0 %v2177, 96
    %v2285 = vpop.permute.xlu0 %2284
    %v2286 = vsel %vm408, %v2285, 0
    %2288 = vmatprep.subr.mxu0 0.0
    %2289 = vmatpush1.msra.mxu0 %v394
    %2290 = vmatprep.subr.mxu0 0.0
    %2291 = vmatpush1.msra.mxu0 %v395
    %2292 = vmatprep.subr.mxu0 0.0
    %2293 = vmatpush1.msra.mxu0 %v396
    %2294 = vmatprep.subr.mxu0 0.0
    %2295 = vmatpush1.msra.mxu0 %v397
    %2296 = vmatprep.subr.mxu0 0.0
    %2297 = vmatpush1.msra.mxu0 0.0
    %2298 = vmatprep.subr.mxu0 0.0
    %2299 = vmatpush1.msra.mxu0 0.0
    %2300 = vmatprep.subr.mxu0 0.0
    %2301 = vmatpush1.msra.mxu0 0.0
    %2302 = vmatprep.subr.mxu0 0.0
    %2303 = vmatpush1.msra.mxu0 0.0
    %2304 = vmatprep.subr.mxu0 0.0
    %2305 = vmatpush1.msra.mxu0 0.0
    %2306 = vmatprep.subr.mxu0 0.0
    %2307 = vmatpush1.msra.mxu0 0.0
    %2308 = vmatprep.subr.mxu0 0.0
    %2309 = vmatpush1.msra.mxu0 0.0
    %2310 = vmatprep.subr.mxu0 0.0
    %2311 = vmatpush1.msra.mxu0 0.0
    %2312 = vmatprep.subr.mxu0 0.0
    %2313 = vmatpush1.msra.mxu0 0.0
    %2314 = vmatprep.subr.mxu0 0.0
    %2315 = vmatpush1.msra.mxu0 0.0
    %2316 = vmatprep.subr.mxu0 0.0
    %2317 = vmatpush1.msra.mxu0 0.0
    %2318 = vmatprep.subr.mxu0 0.0
    %2319 = vmatpush1.msra.mxu0 0.0
    %2320 = vmatprep.subr.mxu0 0.0
    %2321 = vmatpush1.msra.mxu0 0.0
    %2322 = vmatprep.subr.mxu0 0.0
    %2323 = vmatpush1.msra.mxu0 0.0
    %2324 = vmatprep.subr.mxu0 0.0
    %2325 = vmatpush1.msra.mxu0 0.0
    %2326 = vmatprep.subr.mxu0 0.0
    %2327 = vmatpush1.msra.mxu0 0.0
    %2328 = vmatprep.subr.mxu0 0.0
    %2329 = vmatpush1.msra.mxu0 0.0
    %2330 = vmatprep.subr.mxu0 0.0
    %2331 = vmatpush1.msra.mxu0 0.0
    %2332 = vmatprep.subr.mxu0 0.0
    %2333 = vmatpush1.msra.mxu0 0.0
    %2334 = vmatprep.subr.mxu0 0.0
    %2335 = vmatpush1.msra.mxu0 0.0
    %2336 = vmatprep.subr.mxu0 0.0
    %2337 = vmatpush1.msra.mxu0 0.0
    %2338 = vmatprep.subr.mxu0 0.0
    %2339 = vmatpush1.msra.mxu0 0.0
    %2340 = vmatprep.subr.mxu0 0.0
    %2341 = vmatpush1.msra.mxu0 0.0
    %2342 = vmatprep.subr.mxu0 0.0
    %2343 = vmatpush1.msra.mxu0 0.0
    %2344 = vmatprep.subr.mxu0 0.0
    %2345 = vmatpush1.msra.mxu0 0.0
    %2346 = vmatprep.subr.mxu0 0.0
    %2347 = vmatpush1.msra.mxu0 0.0
    %2348 = vmatprep.subr.mxu0 0.0
    %2349 = vmatpush1.msra.mxu0 0.0
    %2350 = vmatprep.subr.mxu0 0.0
    %2351 = vmatpush1.msra.mxu0 0.0
    %2352 = vmatprep.mubr.f32.mxu0 0.0
    %2353 = vmatmul.mubr.f32.gmra.mrb[0].mxu0 %v2286
    %v2354 = vpop.f32.mrb[0].mxu0
    %v2355 = vadd.f32 %v512, %v2354
    %v2356 = vpop.f32.mrb[0].mxu0
    %2357 = vdwg.mxu0
    %v2358 = vadd.f32 %v2181, %v2355
    %v2359 = vxor.u32 %v2358, 2147483648
    %v2360 = vmul.f32 %v2359, 1.442695
    %v2361 = vpow.pop %v2360
    %v2362 = vadd.f32 %v2361, 1.0
    %v2363 = vrcp.pop %v2362
    %v2364 = vmul.f32 1.0, %v2363
    %2366 = vrot.lane.b32.xlu0 %v2355, 64
    %v2367 = vpop.permute.xlu0 %2366
    %v2369 = vmul.f32 %v2364, %v2367
    %2371 = vrot.lane.b32.xlu0 %v2369, 64
    %v2372 = vpop.permute.xlu0 %2371
    %v2374 = vadd.f32 %v2181, %v2372
    %v2375 = vtanh.pop %v2374
    %v2376 = vsub.f32 1.0, %v2364
    %2378 = vrot.lane.b32.xlu0 %v2375, 96
    %v2379 = vpop.permute.xlu0 %2378
    %v2381 = vmul.f32 %v2376, %v2379
    %v2382 = vmul.f32 %v2364, %v2177
    %v2383 = vadd.f32 %v2381, %v2382
    %v2384 = vsub.f32 %v2282, %v2174
    %v2385 = vmul.f32 %v854, %v2384
    %v2386 = vadd.f32 %v2174, %v2385
    %v2387 = vsub.f32 %v2383, %v2177
    %v2388 = vmul.f32 %v846, %v2387
    %v2389 = vadd.f32 %v2177, %v2388
    %s2390 = scalar_lea.vmem [#allocation2], 72
    %v2391 = vld [vmem:[%s2390] sm:$0xff]
    %v2392 = vld [vmem:[#allocation3] sm:$0xff]
    %2394 = vrot.lane.b32.xlu0 %v2386, 96
    %v2395 = vpop.permute.xlu0 %2394
    %v2396 = vsel %vm408, %v2395, 0
    %2398 = vmatprep.subr.mxu0 0.0
    %2399 = vmatpush1.msra.mxu0 %v389
    %2400 = vmatprep.subr.mxu0 0.0
    %2401 = vmatpush1.msra.mxu0 %v390
    %2402 = vmatprep.subr.mxu0 0.0
    %2403 = vmatpush1.msra.mxu0 %v391
    %2404 = vmatprep.subr.mxu0 0.0
    %2405 = vmatpush1.msra.mxu0 %v392
    %2406 = vmatprep.subr.mxu0 0.0
    %2407 = vmatpush1.msra.mxu0 0.0
    %2408 = vmatprep.subr.mxu0 0.0
    %2409 = vmatpush1.msra.mxu0 0.0
    %2410 = vmatprep.subr.mxu0 0.0
    %2411 = vmatpush1.msra.mxu0 0.0
    %2412 = vmatprep.subr.mxu0 0.0
    %2413 = vmatpush1.msra.mxu0 0.0
    %2414 = vmatprep.subr.mxu0 0.0
    %2415 = vmatpush1.msra.mxu0 0.0
    %2416 = vmatprep.subr.mxu0 0.0
    %2417 = vmatpush1.msra.mxu0 0.0
    %2418 = vmatprep.subr.mxu0 0.0
    %2419 = vmatpush1.msra.mxu0 0.0
    %2420 = vmatprep.subr.mxu0 0.0
    %2421 = vmatpush1.msra.mxu0 0.0
    %2422 = vmatprep.subr.mxu0 0.0
    %2423 = vmatpush1.msra.mxu0 0.0
    %2424 = vmatprep.subr.mxu0 0.0
    %2425 = vmatpush1.msra.mxu0 0.0
    %2426 = vmatprep.subr.mxu0 0.0
    %2427 = vmatpush1.msra.mxu0 0.0
    %2428 = vmatprep.subr.mxu0 0.0
    %2429 = vmatpush1.msra.mxu0 0.0
    %2430 = vmatprep.subr.mxu0 0.0
    %2431 = vmatpush1.msra.mxu0 0.0
    %2432 = vmatprep.subr.mxu0 0.0
    %2433 = vmatpush1.msra.mxu0 0.0
    %2434 = vmatprep.subr.mxu0 0.0
    %2435 = vmatpush1.msra.mxu0 0.0
    %2436 = vmatprep.subr.mxu0 0.0
    %2437 = vmatpush1.msra.mxu0 0.0
    %2438 = vmatprep.subr.mxu0 0.0
    %2439 = vmatpush1.msra.mxu0 0.0
    %2440 = vmatprep.subr.mxu0 0.0
    %2441 = vmatpush1.msra.mxu0 0.0
    %2442 = vmatprep.subr.mxu0 0.0
    %2443 = vmatpush1.msra.mxu0 0.0
    %2444 = vmatprep.subr.mxu0 0.0
    %2445 = vmatpush1.msra.mxu0 0.0
    %2446 = vmatprep.subr.mxu0 0.0
    %2447 = vmatpush1.msra.mxu0 0.0
    %2448 = vmatprep.subr.mxu0 0.0
    %2449 = vmatpush1.msra.mxu0 0.0
    %2450 = vmatprep.subr.mxu0 0.0
    %2451 = vmatpush1.msra.mxu0 0.0
    %2452 = vmatprep.subr.mxu0 0.0
    %2453 = vmatpush1.msra.mxu0 0.0
    %2454 = vmatprep.subr.mxu0 0.0
    %2455 = vmatpush1.msra.mxu0 0.0
    %2456 = vmatprep.subr.mxu0 0.0
    %2457 = vmatpush1.msra.mxu0 0.0
    %2458 = vmatprep.subr.mxu0 0.0
    %2459 = vmatpush1.msra.mxu0 0.0
    %2460 = vmatprep.subr.mxu0 0.0
    %2461 = vmatpush1.msra.mxu0 0.0
    %2462 = vmatprep.mubr.f32.mxu0 0.0
    %2463 = vmatmul.mubr.f32.gmra.mrb[0].mxu0 %v2396
    %v2464 = vpop.f32.mrb[0].mxu0
    %v2465 = vadd.f32 %v406, %v2464
    %v2466 = vpop.f32.mrb[0].mxu0
    %2467 = vdwg.mxu0
    %v2468 = vadd.f32 %v2391, %v2465
    %v2469 = vxor.u32 %v2468, 2147483648
    %v2470 = vmul.f32 %v2469, 1.442695
    %v2471 = vpow.pop %v2470
    %v2472 = vadd.f32 %v2471, 1.0
    %v2473 = vrcp.pop %v2472
    %v2474 = vmul.f32 1.0, %v2473
    %2476 = vrot.lane.b32.xlu0 %v2465, 64
    %v2477 = vpop.permute.xlu0 %2476
    %v2479 = vmul.f32 %v2474, %v2477
    %2481 = vrot.lane.b32.xlu0 %v2479, 64
    %v2482 = vpop.permute.xlu0 %2481
    %v2484 = vadd.f32 %v2391, %v2482
    %v2485 = vtanh.pop %v2484
    %v2486 = vsub.f32 1.0, %v2474
    %2488 = vrot.lane.b32.xlu0 %v2485, 96
    %v2489 = vpop.permute.xlu0 %2488
    %v2491 = vmul.f32 %v2486, %v2489
    %v2492 = vmul.f32 %v2474, %v2386
    %v2493 = vadd.f32 %v2491, %v2492
    %2495 = vrot.lane.b32.xlu0 %v2389, 96
    %v2496 = vpop.permute.xlu0 %2495
    %v2497 = vsel %vm408, %v2496, 0
    %2499 = vmatprep.subr.mxu0 0.0
    %2500 = vmatpush1.msra.mxu0 %v394
    %2501 = vmatprep.subr.mxu0 0.0
    %2502 = vmatpush1.msra.mxu0 %v395
    %2503 = vmatprep.subr.mxu0 0.0
    %2504 = vmatpush1.msra.mxu0 %v396
    %2505 = vmatprep.subr.mxu0 0.0
    %2506 = vmatpush1.msra.mxu0 %v397
    %2507 = vmatprep.subr.mxu0 0.0
    %2508 = vmatpush1.msra.mxu0 0.0
    %2509 = vmatprep.subr.mxu0 0.0
    %2510 = vmatpush1.msra.mxu0 0.0
    %2511 = vmatprep.subr.mxu0 0.0
    %2512 = vmatpush1.msra.mxu0 0.0
    %2513 = vmatprep.subr.mxu0 0.0
    %2514 = vmatpush1.msra.mxu0 0.0
    %2515 = vmatprep.subr.mxu0 0.0
    %2516 = vmatpush1.msra.mxu0 0.0
    %2517 = vmatprep.subr.mxu0 0.0
    %2518 = vmatpush1.msra.mxu0 0.0
    %2519 = vmatprep.subr.mxu0 0.0
    %2520 = vmatpush1.msra.mxu0 0.0
    %2521 = vmatprep.subr.mxu0 0.0
    %2522 = vmatpush1.msra.mxu0 0.0
    %2523 = vmatprep.subr.mxu0 0.0
    %2524 = vmatpush1.msra.mxu0 0.0
    %2525 = vmatprep.subr.mxu0 0.0
    %2526 = vmatpush1.msra.mxu0 0.0
    %2527 = vmatprep.subr.mxu0 0.0
    %2528 = vmatpush1.msra.mxu0 0.0
    %2529 = vmatprep.subr.mxu0 0.0
    %2530 = vmatpush1.msra.mxu0 0.0
    %2531 = vmatprep.subr.mxu0 0.0
    %2532 = vmatpush1.msra.mxu0 0.0
    %2533 = vmatprep.subr.mxu0 0.0
    %2534 = vmatpush1.msra.mxu0 0.0
    %2535 = vmatprep.subr.mxu0 0.0
    %2536 = vmatpush1.msra.mxu0 0.0
    %2537 = vmatprep.subr.mxu0 0.0
    %2538 = vmatpush1.msra.mxu0 0.0
    %2539 = vmatprep.subr.mxu0 0.0
    %2540 = vmatpush1.msra.mxu0 0.0
    %2541 = vmatprep.subr.mxu0 0.0
    %2542 = vmatpush1.msra.mxu0 0.0
    %2543 = vmatprep.subr.mxu0 0.0
    %2544 = vmatpush1.msra.mxu0 0.0
    %2545 = vmatprep.subr.mxu0 0.0
    %2546 = vmatpush1.msra.mxu0 0.0
    %2547 = vmatprep.subr.mxu0 0.0
    %2548 = vmatpush1.msra.mxu0 0.0
    %2549 = vmatprep.subr.mxu0 0.0
    %2550 = vmatpush1.msra.mxu0 0.0
    %2551 = vmatprep.subr.mxu0 0.0
    %2552 = vmatpush1.msra.mxu0 0.0
    %2553 = vmatprep.subr.mxu0 0.0
    %2554 = vmatpush1.msra.mxu0 0.0
    %2555 = vmatprep.subr.mxu0 0.0
    %2556 = vmatpush1.msra.mxu0 0.0
    %2557 = vmatprep.subr.mxu0 0.0
    %2558 = vmatpush1.msra.mxu0 0.0
    %2559 = vmatprep.subr.mxu0 0.0
    %2560 = vmatpush1.msra.mxu0 0.0
    %2561 = vmatprep.subr.mxu0 0.0
    %2562 = vmatpush1.msra.mxu0 0.0
    %2563 = vmatprep.mubr.f32.mxu0 0.0
    %2564 = vmatmul.mubr.f32.gmra.mrb[0].mxu0 %v2497
    %v2565 = vpop.f32.mrb[0].mxu0
    %v2566 = vadd.f32 %v512, %v2565
    %v2567 = vpop.f32.mrb[0].mxu0
    %2568 = vdwg.mxu0
    %v2569 = vadd.f32 %v2392, %v2566
    %v2570 = vxor.u32 %v2569, 2147483648
    %v2571 = vmul.f32 %v2570, 1.442695
    %v2572 = vpow.pop %v2571
    %v2573 = vadd.f32 %v2572, 1.0
    %v2574 = vrcp.pop %v2573
    %v2575 = vmul.f32 1.0, %v2574
    %2577 = vrot.lane.b32.xlu0 %v2566, 64
    %v2578 = vpop.permute.xlu0 %2577
    %v2580 = vmul.f32 %v2575, %v2578
    %2582 = vrot.lane.b32.xlu0 %v2580, 64
    %v2583 = vpop.permute.xlu0 %2582
    %v2585 = vadd.f32 %v2392, %v2583
    %v2586 = vtanh.pop %v2585
    %v2587 = vsub.f32 1.0, %v2575
    %2589 = vrot.lane.b32.xlu0 %v2586, 96
    %v2590 = vpop.permute.xlu0 %2589
    %v2592 = vmul.f32 %v2587, %v2590
    %v2593 = vmul.f32 %v2575, %v2389
    %v2594 = vadd.f32 %v2592, %v2593
    %v2595 = vsub.f32 %v2493, %v2386
    %v2596 = vmul.f32 %v626, %v2595
    %v2597 = vadd.f32 %v2386, %v2596
    %v2598 = vsub.f32 %v2594, %v2389
    %v2599 = vmul.f32 %v619, %v2598
    %v2600 = vadd.f32 %v2389, %v2599
    %v2601 = vadd.f32 %v2597, %v2600
    %vm2602 = vcmask 523520
    %v2603 = vsel %vm2602, %v2601, 0.0
    %v2604 = vrot.slane %v2603, 4
    %v2605 = vadd.f32 %v2603, %v2604
    %v2606 = vrot.slane %v2605, 2
    %v2607 = vadd.f32 %v2605, %v2606
    %v2608 = vrot.slane %v2607, 1
    %v2609 = vadd.f32 %v2607, %v2608
    %v2610 = vmul.f32 %v2609, 0.2
    %2612 = vrot.lane.b32.xlu0 %v2610, 96
    %v2613 = vpop.permute.xlu0 %2612
    %vm2615 = vcmask 253952
    %2616 = vst.msk [vmem:[#allocation4] sm:$0x1] %vm2615, %v2613
    // Predicated region
    $region34: #{tpu_custom_call.1} parent=1 // pred_check
      _
    $region35: #{tpu_custom_call.1} parent=1 // pred_check_branch
      %2618 = sbr.rel (0) target = $region37
    $region36: #{tpu_custom_call.1} parent=1 // pred_region
      %s2620 = ssub.s32 16, 16
      %2621 = vsyncadd [#allocation5], %s2620
      %s2623 = sshll.u32 [#allocation4], 4
      %s2624 = int_to_ptr.vmem [resolvable:$true] %s2623
      %2626 = dma.vmem_to_hbm [thread:$0]  %s2624, 16, %s8, [#allocation5]
    $region37: #{tpu_custom_call.1} parent=1 // pred_fallthru
      _
    // Predicated region
    $region38: #{tpu_custom_call.1} parent=1 // pred_check
      _
    $region39: #{tpu_custom_call.1} parent=1 // pred_check_branch
      %2628 = sbr.rel (0) target = $region41
    $region40: #{tpu_custom_call.1} parent=1 // pred_region
      %2629 = dma.done [#allocation5], 16
    $region41: #{tpu_custom_call.1} parent=1 // pred_fallthru
      _
    %2630 = vsyncpa [#allocation5], 1

</llo_original>
